<compile_context>
chip_gen: v5e
topology: v5e:2x2
jax: 0.10.0
libtpu: 0.0.40
codegen_flags: <defaults>
</compile_context>

<pallas_src>
import jax
import jax.numpy as jnp
import numpy as np
from jax.experimental import pallas as pl
from jax.experimental.pallas import tpu as pltpu


def _round_up(x, m):
    return (x + m - 1) // m * m


# ----------------------------------------------------------------------------
# Kernel 1: fused hidden layers   h = relu(relu(x @ W1 + b1) @ W2 + b2)
# Single grid step; everything fits comfortably in VMEM (W2 bf16 = 2 MiB).
# ----------------------------------------------------------------------------
def _hidden_kernel(x_ref, w1_ref, b1_ref, w2_ref, b2_ref, h_ref):
    h1 = jnp.dot(x_ref[...], w1_ref[...], preferred_element_type=jnp.float32)
    h1 = jnp.maximum(h1 + b1_ref[...], 0.0)                       # f32 bias + ReLU
    h2 = jnp.dot(h1.astype(w2_ref.dtype), w2_ref[...],
                 preferred_element_type=jnp.float32)
    h2 = jnp.maximum(h2 + b2_ref[...], 0.0)
    h_ref[...] = h2.astype(h_ref.dtype)                           # bf16 out -> next kernel


# ----------------------------------------------------------------------------
# Kernel 2: final layer, tiled over output features (lane-dense tiles).
#   out[:, j*tn:(j+1)*tn] = h @ W3[:, j*tn:(j+1)*tn] + b3[j*tn:(j+1)*tn]
# No cross-step state -> safe to mark the grid axis "parallel" (v7x megacore).
# ----------------------------------------------------------------------------
def _output_kernel(h_ref, w3_ref, b3_ref, out_ref):
    acc = jnp.dot(h_ref[...], w3_ref[...], preferred_element_type=jnp.float32)
    out_ref[...] = acc + b3_ref[...]


def cloth_simulation_forward(thetas, betas, gammas, params, *, tile_out=512,
                             compute_dtype=jnp.bfloat16):
    """params = (w1, b1, w2, b2, w3, b3) with w_i stored (in_features, out_features)."""
    w1, b1, w2, b2, w3, b3 = params
    B = thetas.shape[0]
    x = jnp.concatenate([thetas, betas, gammas], axis=1).astype(jnp.float32)  # (B, 86)

    Din = x.shape[1]
    H = w1.shape[1]
    O = w3.shape[1]
    vtnum = O // 3

    # Pad instead of asserting divisibility; padded rows/cols are zero -> no contribution.
    B_pad = _round_up(max(B, 8), 8)
    Din_pad = _round_up(Din, 128)
    tn = min(tile_out, _round_up(O, 128))        # lane-dense tile, multiple of 128
    O_pad = _round_up(O, tn)

    x_p = jnp.zeros((B_pad, Din_pad), jnp.float32).at[:B, :Din].set(x).astype(compute_dtype)
    w1_p = jnp.zeros((Din_pad, H), jnp.float32).at[:Din, :].set(w1).astype(compute_dtype)
    w2_p = w2.astype(compute_dtype)
    w3_p = jnp.zeros((H, O_pad), jnp.float32).at[:, :O].set(w3).astype(compute_dtype)
    b1_p = b1.reshape(1, H).astype(jnp.float32)
    b2_p = b2.reshape(1, H).astype(jnp.float32)
    b3_p = jnp.zeros((1, O_pad), jnp.float32).at[0, :O].set(b3.astype(jnp.float32))

    # --- call 1: hidden layers (computed once, reused by every output tile) ---
    h = pl.pallas_call(
        _hidden_kernel,
        out_shape=jax.ShapeDtypeStruct((B_pad, H), compute_dtype),
        grid_spec=pltpu.PrefetchScalarGridSpec(
            num_scalar_prefetch=0,
            grid=(1,),
            in_specs=[
                pl.BlockSpec((B_pad, Din_pad), lambda i: (0, 0)),
                pl.BlockSpec((Din_pad, H), lambda i: (0, 0)),
                pl.BlockSpec((1, H), lambda i: (0, 0)),
                pl.BlockSpec((H, H), lambda i: (0, 0)),
                pl.BlockSpec((1, H), lambda i: (0, 0)),
            ],
            out_specs=pl.BlockSpec((B_pad, H), lambda i: (0, 0)),
        ),
        compiler_params=pltpu.CompilerParams(dimension_semantics=("arbitrary",)),
    )(x_p, w1_p, b1_p, w2_p, b2_p)

    # --- call 2: big output layer, parallel over lane-dense output tiles ---
    out_p = pl.pallas_call(
        _output_kernel,
        out_shape=jax.ShapeDtypeStruct((B_pad, O_pad), jnp.float32),
        grid_spec=pltpu.PrefetchScalarGridSpec(
            num_scalar_prefetch=0,
            grid=(O_pad // tn,),
            in_specs=[
                pl.BlockSpec((B_pad, H), lambda j: (0, 0)),   # invariant block, not re-DMA'd
                pl.BlockSpec((H, tn), lambda j: (0, j)),      # W3 tile streamed per step
                pl.BlockSpec((1, tn), lambda j: (0, j)),
            ],
            out_specs=pl.BlockSpec((B_pad, tn), lambda j: (0, j)),
        ),
        compiler_params=pltpu.CompilerParams(
            dimension_semantics=("parallel",),
            vmem_limit_bytes=64 * 1024 * 1024,                # headroom for large tiles / v5e
        ),
    )(h, w3_p, b3_p)

    return out_p[:B, :O].reshape(B, vtnum, 3)


# ----------------------------------------------------------------------------
# Pure-JAX reference (mirrors the kernel's bf16-operand / f32-accumulate math).
# ----------------------------------------------------------------------------
def _reference_forward(thetas, betas, gammas, params, compute_dtype=jnp.bfloat16):
    w1, b1, w2, b2, w3, b3 = params
    B = thetas.shape[0]
    x = jnp.concatenate([thetas, betas, gammas], axis=1).astype(jnp.float32)
    h = jnp.dot(x.astype(compute_dtype), w1.astype(compute_dtype),
                preferred_element_type=jnp.float32) + b1
    h = jnp.maximum(h, 0.0).astype(compute_dtype)
    h = jnp.dot(h, w2.astype(compute_dtype),
                preferred_element_type=jnp.float32) + b2
    h = jnp.maximum(h, 0.0).astype(compute_dtype)
    out = jnp.dot(h, w3.astype(compute_dtype),
                  preferred_element_type=jnp.float32) + b3
    return out.reshape(B, -1, 3)


def _init_linear(key, fan_in, fan_out):
    """PyTorch nn.Linear default init: U(-1/sqrt(fan_in), 1/sqrt(fan_in)).
    Weight returned as (in, out) so the kernel computes x @ W directly."""
    kw, kb = jax.random.split(key)
    bound = 1.0 / np.sqrt(fan_in)
    w = jax.random.uniform(kw, (fan_in, fan_out), jnp.float32, -bound, bound)
    b = jax.random.uniform(kb, (fan_out,), jnp.float32, -bound, bound)
    return w, b


if __name__ == "__main__":
    B = 2
    theta_dim, beta_dim, gamma_dim = 72, 10, 4        # input_size = 86
    hidden = 1024
    vtnum = 400                                       # stand-in for clothes_vert.txt size
    out_dim = vtnum * 3

    key = jax.random.PRNGKey(0)
    k_t, k_b, k_g, k1, k2, k3 = jax.random.split(key, 6)
    thetas = jax.random.normal(k_t, (B, theta_dim), jnp.float32)
    betas = jax.random.normal(k_b, (B, beta_dim), jnp.float32)
    gammas = jax.random.normal(k_g, (B, gamma_dim), jnp.float32)

    w1, b1 = _init_linear(k1, theta_dim + beta_dim + gamma_dim, hidden)
    w2, b2 = _init_linear(k2, hidden, hidden)
    w3, b3 = _init_linear(k3, hidden, out_dim)
    params = (w1, b1, w2, b2, w3, b3)

    pred_verts = cloth_simulation_forward(thetas, betas, gammas, params)
    pred_verts = jax.block_until_ready(pred_verts)
    assert pred_verts.shape == (B, vtnum, 3)

    ref = _reference_forward(thetas, betas, gammas, params)
    np.testing.assert_allclose(np.asarray(pred_verts), np.asarray(ref),
                               rtol=1e-2, atol=1e-2)

    print("KERNEL_OK")
</pallas_src>

<mosaic_0001>
module attributes {stable_mosaic.version = 11 : i64} {
  func.func @_hidden_kernel(%arg0: i32, %arg1: memref<8x128xbf16, #tpu.memory_space<vmem>>, %arg2: memref<128x1024xbf16, #tpu.memory_space<vmem>>, %arg3: memref<1x1024xf32, #tpu.memory_space<vmem>>, %arg4: memref<1024x1024xbf16, #tpu.memory_space<vmem>>, %arg5: memref<1x1024xf32, #tpu.memory_space<vmem>>, %arg6: memref<8x1024xbf16, #tpu.memory_space<vmem>>) attributes {dimension_semantics = [#tpu.dimension_semantics<arbitrary>], iteration_bounds = array<i64: 1>, scalar_prefetch = 0 : i64, scratch_operands = 0 : i64, tpu.core_type = #tpu.core_type<tc>, window_params = [{pipeline_mode = #tpu.pipeline_mode<synchronous>, transform_indices = @transform_0, window_bounds = array<i64: 8, 128>}, {pipeline_mode = #tpu.pipeline_mode<synchronous>, transform_indices = @transform_1, window_bounds = array<i64: 128, 1024>}, {pipeline_mode = #tpu.pipeline_mode<synchronous>, transform_indices = @transform_2, window_bounds = array<i64: 1, 1024>}, {pipeline_mode = #tpu.pipeline_mode<synchronous>, transform_indices = @transform_3, window_bounds = array<i64: 1024, 1024>}, {pipeline_mode = #tpu.pipeline_mode<synchronous>, transform_indices = @transform_4, window_bounds = array<i64: 1, 1024>}, {pipeline_mode = #tpu.pipeline_mode<synchronous>, transform_indices = @transform_5, window_bounds = array<i64: 8, 1024>}]} {
    %c0 = arith.constant 0 : index
    %c0_0 = arith.constant 0 : index
    %0 = vector.load %arg1[%c0, %c0_0] : memref<8x128xbf16, #tpu.memory_space<vmem>>, vector<8x128xbf16>
    %c0_1 = arith.constant 0 : index
    %c0_2 = arith.constant 0 : index
    %1 = vector.load %arg2[%c0_1, %c0_2] : memref<128x1024xbf16, #tpu.memory_space<vmem>>, vector<128x1024xbf16>
    %cst = arith.constant dense<0.000000e+00> : vector<8x1024xf32>
    %2 = tpu.matmul %0, %1, %cst {dimension_numbers = #tpu.dot_dimension_numbers<[1], [0], [0], [1], [0, 0, 1, 1], [], []>} : vector<8x128xbf16>, vector<128x1024xbf16>, vector<8x1024xf32> -> vector<8x1024xf32>
    %c0_3 = arith.constant 0 : index
    %c0_4 = arith.constant 0 : index
    %3 = vector.load %arg3[%c0_3, %c0_4] : memref<1x1024xf32, #tpu.memory_space<vmem>>, vector<1x1024xf32>
    %4 = vector.broadcast %3 : vector<1x1024xf32> to vector<8x1024xf32>
    %5 = arith.addf %2, %4 : vector<8x1024xf32>
    %cst_5 = arith.constant 0.000000e+00 : f32
    %6 = vector.broadcast %cst_5 : f32 to vector<8x1024xf32>
    %7 = arith.maximumf %5, %6 : vector<8x1024xf32>
    %8 = arith.truncf %7 : vector<8x1024xf32> to vector<8x1024xbf16>
    %c0_6 = arith.constant 0 : index
    %c0_7 = arith.constant 0 : index
    %9 = vector.load %arg4[%c0_6, %c0_7] : memref<1024x1024xbf16, #tpu.memory_space<vmem>>, vector<1024x1024xbf16>
    %cst_8 = arith.constant dense<0.000000e+00> : vector<8x1024xf32>
    %10 = tpu.matmul %8, %9, %cst_8 {dimension_numbers = #tpu.dot_dimension_numbers<[1], [0], [0], [1], [0, 0, 1, 1], [], []>} : vector<8x1024xbf16>, vector<1024x1024xbf16>, vector<8x1024xf32> -> vector<8x1024xf32>
    %c0_9 = arith.constant 0 : index
    %c0_10 = arith.constant 0 : index
    %11 = vector.load %arg5[%c0_9, %c0_10] : memref<1x1024xf32, #tpu.memory_space<vmem>>, vector<1x1024xf32>
    %12 = vector.broadcast %11 : vector<1x1024xf32> to vector<8x1024xf32>
    %13 = arith.addf %10, %12 : vector<8x1024xf32>
    %cst_11 = arith.constant 0.000000e+00 : f32
    %14 = vector.broadcast %cst_11 : f32 to vector<8x1024xf32>
    %15 = arith.maximumf %13, %14 : vector<8x1024xf32>
    %16 = arith.truncf %15 : vector<8x1024xf32> to vector<8x1024xbf16>
    %c0_12 = arith.constant 0 : index
    %c0_13 = arith.constant 0 : index
    %17 = vector.load %arg6[%c0_12, %c0_13] : memref<8x1024xbf16, #tpu.memory_space<vmem>>, vector<8x1024xbf16>
    tpu.vector_store %arg6[%c0_12, %c0_13], %16 {strides = array<i32>} : memref<8x1024xbf16, #tpu.memory_space<vmem>>, vector<8x1024xbf16>,
    return
  }
  func.func @transform_0(%arg0: i32) -> (i32, i32) {
    %c0_i32 = arith.constant 0 : i32
    %c0_i32_0 = arith.constant 0 : i32
    %c0_i32_1 = arith.constant 0 : i32
    return %c0_i32, %c0_i32_0 : i32, i32
  }
  func.func @transform_1(%arg0: i32) -> (i32, i32) {
    %c0_i32 = arith.constant 0 : i32
    %c0_i32_0 = arith.constant 0 : i32
    %c0_i32_1 = arith.constant 0 : i32
    return %c0_i32, %c0_i32_0 : i32, i32
  }
  func.func @transform_2(%arg0: i32) -> (i32, i32) {
    %c0_i32 = arith.constant 0 : i32
    %c0_i32_0 = arith.constant 0 : i32
    %c0_i32_1 = arith.constant 0 : i32
    return %c0_i32, %c0_i32_0 : i32, i32
  }
  func.func @transform_3(%arg0: i32) -> (i32, i32) {
    %c0_i32 = arith.constant 0 : i32
    %c0_i32_0 = arith.constant 0 : i32
    %c0_i32_1 = arith.constant 0 : i32
    return %c0_i32, %c0_i32_0 : i32, i32
  }
  func.func @transform_4(%arg0: i32) -> (i32, i32) {
    %c0_i32 = arith.constant 0 : i32
    %c0_i32_0 = arith.constant 0 : i32
    %c0_i32_1 = arith.constant 0 : i32
    return %c0_i32, %c0_i32_0 : i32, i32
  }
  func.func @transform_5(%arg0: i32) -> (i32, i32) {
    %c0_i32 = arith.constant 0 : i32
    %c0_i32_0 = arith.constant 0 : i32
    %c0_i32_1 = arith.constant 0 : i32
    return %c0_i32, %c0_i32_0 : i32, i32
  }
}

</mosaic_0001>

<llo_original>
// kernel: tpu_custom_call.1
$region0: #{tpu_custom_call.1}
  #allocation0 [shape = 'u32[]', space=smem, size = 0x4, offset = 0x4, fixed_abs, tag = 'smem constant byte address 0x4 - core index']
  #allocation1 [shape = 'u32[72,128]{1,0:T(1,128)}', space=vmem, size = 0x9000, scoped, tag = 'internal scratch']
  %s0 = inlined_call_operand.hbm [shape: bf16[8,128], index: 0, kind: input, shape index: {}]
  %s1 = inlined_call_operand.hbm [shape: bf16[128,1024], index: 1, kind: input, shape index: {}]
  %s2 = inlined_call_operand.hbm [shape: f32[1,1024], index: 2, kind: input, shape index: {}]
  %s3 = inlined_call_operand.hbm [shape: bf16[1024,1024], index: 3, kind: input, shape index: {}]
  %s4 = inlined_call_operand.hbm [shape: f32[1,1024], index: 4, kind: input, shape index: {}]
  %s5 = inlined_call_operand.hbm [shape: bf16[8,1024], index: 5, kind: output, shape index: {}]
  %s6 = sld [smem:[#allocation0]]
  $region50: #{tpu_custom_call.1} parent=0
    _
  %s8 = ssub.s32 1, %s6
  %s9 = scalar_select 0, %s8, %s6
  $region1: #{tpu_custom_call.1} parent=0
    #allocation2 [shape = 'u8[2048]{0}', space=vmem, size = 0x800, scoped, tag = 'input window, operand 0, single buffered']
    #allocation3 [shape = 's32[1]{0}', space=sflag, size = 0x4, scoped, tag = 'scoped memory for tpu_custom_call.1']
    #allocation4 [shape = 's32[1]{0}', space=sflag, size = 0x4, scoped, tag = 'scoped memory for tpu_custom_call.1']
    #allocation5 [shape = 'u8[262144]{0}', space=vmem, size = 0x40000, scoped, tag = 'input window, operand 1, single buffered']
    #allocation6 [shape = 's32[1]{0}', space=sflag, size = 0x4, scoped, tag = 'scoped memory for tpu_custom_call.1']
    #allocation7 [shape = 'u8[4096]{0}', space=vmem, size = 0x1000, scoped, tag = 'input window, operand 2, single buffered']
    #allocation8 [shape = 'u8[2097152]{0}', space=vmem, size = 0x200000, scoped, tag = 'input window, operand 3, single buffered']
    #allocation9 [shape = 's32[1]{0}', space=sflag, size = 0x4, scoped, tag = 'scoped memory for tpu_custom_call.1']
    #allocation10 [shape = 'u8[4096]{0}', space=vmem, size = 0x1000, scoped, tag = 'input window, operand 4, single buffered']
    #allocation11 [shape = 'u8[16384]{0}', space=vmem, size = 0x4000, scoped, tag = 'output window, operand 0, single buffered']
    %10 = vsyncpa [#allocation3], 0
    %11 = vsyncpa [#allocation6], 0
    %12 = vsyncpa [#allocation9], 0
    %13 = vsyncpa [#allocation4], 0
    // Predicated region
    $region2: #{tpu_custom_call.1} parent=1 // pred_check
      _
    $region3: #{tpu_custom_call.1} parent=1 // pred_check_branch
      %15 = sbr.rel (0) target = $region5
    $region4: #{tpu_custom_call.1} parent=1 // pred_region
      %17 = vsyncadd [#allocation3], 0
      %s19 = sshll.u32 %s0, 4
      %s20 = int_to_ptr.hbm [resolvable:$true] %s19
      %s21 = sshll.u32 [#allocation2], 4
      %s22 = int_to_ptr.vmem [resolvable:$true] %s21
      %24 = dma.hbm_to_vmem [thread:$0]  %s20, 64, %s22, [#allocation3]
    $region5: #{tpu_custom_call.1} parent=1 // pred_fallthru
      _
    // Predicated region
    $region6: #{tpu_custom_call.1} parent=1 // pred_check
      _
    $region7: #{tpu_custom_call.1} parent=1 // pred_check_branch
      %26 = sbr.rel (0) target = $region9
    $region8: #{tpu_custom_call.1} parent=1 // pred_region
      %28 = vsyncadd [#allocation6], 0
      %s29 = sshll.u32 %s1, 4
      %s30 = int_to_ptr.hbm [resolvable:$true] %s29
      %s31 = sshll.u32 [#allocation5], 4
      %s32 = int_to_ptr.vmem [resolvable:$true] %s31
      %37 = dma.hbm_to_vmem [thread:$0]  %s30, 8192, %s32, [#allocation6], 512, 512, 32
    $region9: #{tpu_custom_call.1} parent=1 // pred_fallthru
      _
    // Predicated region
    $region10: #{tpu_custom_call.1} parent=1 // pred_check
      _
    $region11: #{tpu_custom_call.1} parent=1 // pred_check_branch
      %39 = sbr.rel (0) target = $region13
    $region12: #{tpu_custom_call.1} parent=1 // pred_region
      %41 = vsyncadd [#allocation6], 0
      %s43 = sshll.u32 %s2, 4
      %s44 = int_to_ptr.hbm [resolvable:$true] %s43
      %s45 = sshll.u32 [#allocation7], 4
      %s46 = int_to_ptr.vmem [resolvable:$true] %s45
      %48 = dma.hbm_to_vmem [thread:$0]  %s44, 128, %s46, [#allocation6]
    $region13: #{tpu_custom_call.1} parent=1 // pred_fallthru
      _
    // Predicated region
    $region14: #{tpu_custom_call.1} parent=1 // pred_check
      _
    $region15: #{tpu_custom_call.1} parent=1 // pred_check_branch
      %50 = sbr.rel (0) target = $region17
    $region16: #{tpu_custom_call.1} parent=1 // pred_region
      %52 = vsyncadd [#allocation9], 0
      %s53 = sshll.u32 %s3, 4
      %s54 = int_to_ptr.hbm [resolvable:$true] %s53
      %s55 = sshll.u32 [#allocation8], 4
      %s56 = int_to_ptr.vmem [resolvable:$true] %s55
      %61 = dma.hbm_to_vmem [thread:$0]  %s54, 65536, %s56, [#allocation9], 512, 512, 32
    $region17: #{tpu_custom_call.1} parent=1 // pred_fallthru
      _
    // Predicated region
    $region18: #{tpu_custom_call.1} parent=1 // pred_check
      _
    $region19: #{tpu_custom_call.1} parent=1 // pred_check_branch
      %63 = sbr.rel (0) target = $region21
    $region20: #{tpu_custom_call.1} parent=1 // pred_region
      %65 = vsyncadd [#allocation9], 0
      %s67 = sshll.u32 %s4, 4
      %s68 = int_to_ptr.hbm [resolvable:$true] %s67
      %s69 = sshll.u32 [#allocation10], 4
      %s70 = int_to_ptr.vmem [resolvable:$true] %s69
      %72 = dma.hbm_to_vmem [thread:$0]  %s68, 128, %s70, [#allocation9]
    $region21: #{tpu_custom_call.1} parent=1 // pred_fallthru
      _
    // Predicated region
    $region22: #{tpu_custom_call.1} parent=1 // pred_check
      _
    $region23: #{tpu_custom_call.1} parent=1 // pred_check_branch
      %74 = sbr.rel (0) target = $region25
    $region24: #{tpu_custom_call.1} parent=1 // pred_region
      %76 = dma.done [#allocation3], 64
    $region25: #{tpu_custom_call.1} parent=1 // pred_fallthru
      _
    // Predicated region
    $region26: #{tpu_custom_call.1} parent=1 // pred_check
      _
    $region27: #{tpu_custom_call.1} parent=1 // pred_check_branch
      %78 = sbr.rel (0) target = $region29
    $region28: #{tpu_custom_call.1} parent=1 // pred_region
      %80 = dma.done [#allocation6], 8192
    $region29: #{tpu_custom_call.1} parent=1 // pred_fallthru
      _
    // Predicated region
    $region30: #{tpu_custom_call.1} parent=1 // pred_check
      _
    $region31: #{tpu_custom_call.1} parent=1 // pred_check_branch
      %82 = sbr.rel (0) target = $region33
    $region32: #{tpu_custom_call.1} parent=1 // pred_region
      %84 = dma.done [#allocation6], 128
    $region33: #{tpu_custom_call.1} parent=1 // pred_fallthru
      _
    // Predicated region
    $region34: #{tpu_custom_call.1} parent=1 // pred_check
      _
    $region35: #{tpu_custom_call.1} parent=1 // pred_check_branch
      %86 = sbr.rel (0) target = $region37
    $region36: #{tpu_custom_call.1} parent=1 // pred_region
      %88 = dma.done [#allocation9], 65536
    $region37: #{tpu_custom_call.1} parent=1 // pred_fallthru
      _
    // Predicated region
    $region38: #{tpu_custom_call.1} parent=1 // pred_check
      _
    $region39: #{tpu_custom_call.1} parent=1 // pred_check_branch
      %90 = sbr.rel (0) target = $region41
    $region40: #{tpu_custom_call.1} parent=1 // pred_region
      %92 = dma.done [#allocation9], 128
    $region41: #{tpu_custom_call.1} parent=1 // pred_fallthru
      _
    %v93 = vld [vmem:[#allocation2] sm:$0xf]
    %v94 = vld [vmem:[#allocation5] sm:$0xff]
    %v95 = vld [vmem:[#allocation5 + $0x8] sm:$0xff]
    %v96 = vld [vmem:[#allocation5 + $0x10] sm:$0xff]
    %v97 = vld [vmem:[#allocation5 + $0x18] sm:$0xff]
    %v98 = vld [vmem:[#allocation5 + $0x20] sm:$0xff]
    %v99 = vld [vmem:[#allocation5 + $0x28] sm:$0xff]
    %v100 = vld [vmem:[#allocation5 + $0x30] sm:$0xff]
    %v101 = vld [vmem:[#allocation5 + $0x38] sm:$0xff]
    %v102 = vld [vmem:[#allocation5 + $0x40] sm:$0xff]
    %v103 = vld [vmem:[#allocation5 + $0x48] sm:$0xff]
    %v104 = vld [vmem:[#allocation5 + $0x50] sm:$0xff]
    %v105 = vld [vmem:[#allocation5 + $0x58] sm:$0xff]
    %v106 = vld [vmem:[#allocation5 + $0x60] sm:$0xff]
    %v107 = vld [vmem:[#allocation5 + $0x68] sm:$0xff]
    %v108 = vld [vmem:[#allocation5 + $0x70] sm:$0xff]
    %v109 = vld [vmem:[#allocation5 + $0x78] sm:$0xff]
    %v110 = vld [vmem:[#allocation5 + $0x80] sm:$0xff]
    %v111 = vld [vmem:[#allocation5 + $0x88] sm:$0xff]
    %v112 = vld [vmem:[#allocation5 + $0x90] sm:$0xff]
    %v113 = vld [vmem:[#allocation5 + $0x98] sm:$0xff]
    %v114 = vld [vmem:[#allocation5 + $0xa0] sm:$0xff]
    %v115 = vld [vmem:[#allocation5 + $0xa8] sm:$0xff]
    %v116 = vld [vmem:[#allocation5 + $0xb0] sm:$0xff]
    %v117 = vld [vmem:[#allocation5 + $0xb8] sm:$0xff]
    %v118 = vld [vmem:[#allocation5 + $0xc0] sm:$0xff]
    %v119 = vld [vmem:[#allocation5 + $0xc8] sm:$0xff]
    %v120 = vld [vmem:[#allocation5 + $0xd0] sm:$0xff]
    %v121 = vld [vmem:[#allocation5 + $0xd8] sm:$0xff]
    %v122 = vld [vmem:[#allocation5 + $0xe0] sm:$0xff]
    %v123 = vld [vmem:[#allocation5 + $0xe8] sm:$0xff]
    %v124 = vld [vmem:[#allocation5 + $0xf0] sm:$0xff]
    %v125 = vld [vmem:[#allocation5 + $0xf8] sm:$0xff]
    %v126 = vld [vmem:[#allocation5 + $0x100] sm:$0xff]
    %v127 = vld [vmem:[#allocation5 + $0x108] sm:$0xff]
    %v128 = vld [vmem:[#allocation5 + $0x110] sm:$0xff]
    %v129 = vld [vmem:[#allocation5 + $0x118] sm:$0xff]
    %v130 = vld [vmem:[#allocation5 + $0x120] sm:$0xff]
    %v131 = vld [vmem:[#allocation5 + $0x128] sm:$0xff]
    %v132 = vld [vmem:[#allocation5 + $0x130] sm:$0xff]
    %v133 = vld [vmem:[#allocation5 + $0x138] sm:$0xff]
    %v134 = vld [vmem:[#allocation5 + $0x140] sm:$0xff]
    %v135 = vld [vmem:[#allocation5 + $0x148] sm:$0xff]
    %v136 = vld [vmem:[#allocation5 + $0x150] sm:$0xff]
    %v137 = vld [vmem:[#allocation5 + $0x158] sm:$0xff]
    %v138 = vld [vmem:[#allocation5 + $0x160] sm:$0xff]
    %v139 = vld [vmem:[#allocation5 + $0x168] sm:$0xff]
    %v140 = vld [vmem:[#allocation5 + $0x170] sm:$0xff]
    %v141 = vld [vmem:[#allocation5 + $0x178] sm:$0xff]
    %v142 = vld [vmem:[#allocation5 + $0x180] sm:$0xff]
    %v143 = vld [vmem:[#allocation5 + $0x188] sm:$0xff]
    %v144 = vld [vmem:[#allocation5 + $0x190] sm:$0xff]
    %v145 = vld [vmem:[#allocation5 + $0x198] sm:$0xff]
    %v146 = vld [vmem:[#allocation5 + $0x1a0] sm:$0xff]
    %v147 = vld [vmem:[#allocation5 + $0x1a8] sm:$0xff]
    %v148 = vld [vmem:[#allocation5 + $0x1b0] sm:$0xff]
    %v149 = vld [vmem:[#allocation5 + $0x1b8] sm:$0xff]
    %v150 = vld [vmem:[#allocation5 + $0x1c0] sm:$0xff]
    %v151 = vld [vmem:[#allocation5 + $0x1c8] sm:$0xff]
    %v152 = vld [vmem:[#allocation5 + $0x1d0] sm:$0xff]
    %v153 = vld [vmem:[#allocation5 + $0x1d8] sm:$0xff]
    %v154 = vld [vmem:[#allocation5 + $0x1e0] sm:$0xff]
    %v155 = vld [vmem:[#allocation5 + $0x1e8] sm:$0xff]
    %v156 = vld [vmem:[#allocation5 + $0x1f0] sm:$0xff]
    %v157 = vld [vmem:[#allocation5 + $0x1f8] sm:$0xff]
    %v158 = vld [vmem:[#allocation7] sm:$0xff]
    %v160 = vperm.slane %v158, 0
    %v161 = vperm.slane %v158, 1
    %v162 = vperm.slane %v158, 2
    %v163 = vperm.slane %v158, 3
    %v164 = vperm.slane %v158, 4
    %v165 = vperm.slane %v158, 5
    %v166 = vperm.slane %v158, 6
    %v167 = vperm.slane %v158, 7
    %v240 = vunpack.c.l.b16 %v94
    %v241 = vunpack.c.h.b16 %v94
    %v242 = vunpack.c.l.b16 %v95
    %v243 = vunpack.c.h.b16 %v95
    %v244 = vunpack.c.l.b16 %v96
    %v245 = vunpack.c.h.b16 %v96
    %v246 = vunpack.c.l.b16 %v97
    %v247 = vunpack.c.h.b16 %v97
    %v248 = vunpack.c.l.b16 %v98
    %v249 = vunpack.c.h.b16 %v98
    %v250 = vunpack.c.l.b16 %v99
    %v251 = vunpack.c.h.b16 %v99
    %v252 = vunpack.c.l.b16 %v100
    %v253 = vunpack.c.h.b16 %v100
    %v254 = vunpack.c.l.b16 %v101
    %v255 = vunpack.c.h.b16 %v101
    %v256 = vunpack.c.l.b16 %v102
    %v257 = vunpack.c.h.b16 %v102
    %v258 = vunpack.c.l.b16 %v103
    %v259 = vunpack.c.h.b16 %v103
    %v260 = vunpack.c.l.b16 %v104
    %v261 = vunpack.c.h.b16 %v104
    %v262 = vunpack.c.l.b16 %v105
    %v263 = vunpack.c.h.b16 %v105
    %v264 = vunpack.c.l.b16 %v106
    %v265 = vunpack.c.h.b16 %v106
    %v266 = vunpack.c.l.b16 %v107
    %v267 = vunpack.c.h.b16 %v107
    %v268 = vunpack.c.l.b16 %v108
    %v269 = vunpack.c.h.b16 %v108
    %v270 = vunpack.c.l.b16 %v109
    %v271 = vunpack.c.h.b16 %v109
    %v272 = vunpack.c.l.b16 %v110
    %v273 = vunpack.c.h.b16 %v110
    %v274 = vunpack.c.l.b16 %v111
    %v275 = vunpack.c.h.b16 %v111
    %v276 = vunpack.c.l.b16 %v112
    %v277 = vunpack.c.h.b16 %v112
    %v278 = vunpack.c.l.b16 %v113
    %v279 = vunpack.c.h.b16 %v113
    %v280 = vunpack.c.l.b16 %v114
    %v281 = vunpack.c.h.b16 %v114
    %v282 = vunpack.c.l.b16 %v115
    %v283 = vunpack.c.h.b16 %v115
    %v284 = vunpack.c.l.b16 %v116
    %v285 = vunpack.c.h.b16 %v116
    %v286 = vunpack.c.l.b16 %v117
    %v287 = vunpack.c.h.b16 %v117
    %v288 = vunpack.c.l.b16 %v118
    %v289 = vunpack.c.h.b16 %v118
    %v290 = vunpack.c.l.b16 %v119
    %v291 = vunpack.c.h.b16 %v119
    %v292 = vunpack.c.l.b16 %v120
    %v293 = vunpack.c.h.b16 %v120
    %v294 = vunpack.c.l.b16 %v121
    %v295 = vunpack.c.h.b16 %v121
    %v296 = vunpack.c.l.b16 %v122
    %v297 = vunpack.c.h.b16 %v122
    %v298 = vunpack.c.l.b16 %v123
    %v299 = vunpack.c.h.b16 %v123
    %v300 = vunpack.c.l.b16 %v124
    %v301 = vunpack.c.h.b16 %v124
    %v302 = vunpack.c.l.b16 %v125
    %v303 = vunpack.c.h.b16 %v125
    %v304 = vunpack.c.l.b16 %v126
    %v305 = vunpack.c.h.b16 %v126
    %v306 = vunpack.c.l.b16 %v127
    %v307 = vunpack.c.h.b16 %v127
    %v308 = vunpack.c.l.b16 %v128
    %v309 = vunpack.c.h.b16 %v128
    %v310 = vunpack.c.l.b16 %v129
    %v311 = vunpack.c.h.b16 %v129
    %v312 = vunpack.c.l.b16 %v130
    %v313 = vunpack.c.h.b16 %v130
    %v314 = vunpack.c.l.b16 %v131
    %v315 = vunpack.c.h.b16 %v131
    %v316 = vunpack.c.l.b16 %v132
    %v317 = vunpack.c.h.b16 %v132
    %v318 = vunpack.c.l.b16 %v133
    %v319 = vunpack.c.h.b16 %v133
    %v320 = vunpack.c.l.b16 %v134
    %v321 = vunpack.c.h.b16 %v134
    %v322 = vunpack.c.l.b16 %v135
    %v323 = vunpack.c.h.b16 %v135
    %v324 = vunpack.c.l.b16 %v136
    %v325 = vunpack.c.h.b16 %v136
    %v326 = vunpack.c.l.b16 %v137
    %v327 = vunpack.c.h.b16 %v137
    %v328 = vunpack.c.l.b16 %v138
    %v329 = vunpack.c.h.b16 %v138
    %v330 = vunpack.c.l.b16 %v139
    %v331 = vunpack.c.h.b16 %v139
    %v332 = vunpack.c.l.b16 %v140
    %v333 = vunpack.c.h.b16 %v140
    %v334 = vunpack.c.l.b16 %v141
    %v335 = vunpack.c.h.b16 %v141
    %v336 = vunpack.c.l.b16 %v142
    %v337 = vunpack.c.h.b16 %v142
    %v338 = vunpack.c.l.b16 %v143
    %v339 = vunpack.c.h.b16 %v143
    %v340 = vunpack.c.l.b16 %v144
    %v341 = vunpack.c.h.b16 %v144
    %v342 = vunpack.c.l.b16 %v145
    %v343 = vunpack.c.h.b16 %v145
    %v344 = vunpack.c.l.b16 %v146
    %v345 = vunpack.c.h.b16 %v146
    %v346 = vunpack.c.l.b16 %v147
    %v347 = vunpack.c.h.b16 %v147
    %v348 = vunpack.c.l.b16 %v148
    %v349 = vunpack.c.h.b16 %v148
    %v350 = vunpack.c.l.b16 %v149
    %v351 = vunpack.c.h.b16 %v149
    %v352 = vunpack.c.l.b16 %v150
    %v353 = vunpack.c.h.b16 %v150
    %v354 = vunpack.c.l.b16 %v151
    %v355 = vunpack.c.h.b16 %v151
    %v356 = vunpack.c.l.b16 %v152
    %v357 = vunpack.c.h.b16 %v152
    %v358 = vunpack.c.l.b16 %v153
    %v359 = vunpack.c.h.b16 %v153
    %v360 = vunpack.c.l.b16 %v154
    %v361 = vunpack.c.h.b16 %v154
    %v362 = vunpack.c.l.b16 %v155
    %v363 = vunpack.c.h.b16 %v155
    %v364 = vunpack.c.l.b16 %v156
    %v365 = vunpack.c.h.b16 %v156
    %v366 = vunpack.c.l.b16 %v157
    %v367 = vunpack.c.h.b16 %v157
    %v368 = vpack.c.b16 %v248, %v240
    %v369 = vpack.c.b16 %v249, %v241
    %v370 = vpack.c.b16 %v250, %v242
    %v371 = vpack.c.b16 %v251, %v243
    %v372 = vpack.c.b16 %v252, %v244
    %v373 = vpack.c.b16 %v253, %v245
    %v374 = vpack.c.b16 %v254, %v246
    %v375 = vpack.c.b16 %v255, %v247
    %v376 = vpack.c.b16 %v264, %v256
    %v377 = vpack.c.b16 %v265, %v257
    %v378 = vpack.c.b16 %v266, %v258
    %v379 = vpack.c.b16 %v267, %v259
    %v380 = vpack.c.b16 %v268, %v260
    %v381 = vpack.c.b16 %v269, %v261
    %v382 = vpack.c.b16 %v270, %v262
    %v383 = vpack.c.b16 %v271, %v263
    %v384 = vpack.c.b16 %v280, %v272
    %v385 = vpack.c.b16 %v281, %v273
    %v386 = vpack.c.b16 %v282, %v274
    %v387 = vpack.c.b16 %v283, %v275
    %v388 = vpack.c.b16 %v284, %v276
    %v389 = vpack.c.b16 %v285, %v277
    %v390 = vpack.c.b16 %v286, %v278
    %v391 = vpack.c.b16 %v287, %v279
    %v392 = vpack.c.b16 %v296, %v288
    %v393 = vpack.c.b16 %v297, %v289
    %v394 = vpack.c.b16 %v298, %v290
    %v395 = vpack.c.b16 %v299, %v291
    %v396 = vpack.c.b16 %v300, %v292
    %v397 = vpack.c.b16 %v301, %v293
    %v398 = vpack.c.b16 %v302, %v294
    %v399 = vpack.c.b16 %v303, %v295
    %v400 = vpack.c.b16 %v312, %v304
    %v401 = vpack.c.b16 %v313, %v305
    %v402 = vpack.c.b16 %v314, %v306
    %v403 = vpack.c.b16 %v315, %v307
    %v404 = vpack.c.b16 %v316, %v308
    %v405 = vpack.c.b16 %v317, %v309
    %v406 = vpack.c.b16 %v318, %v310
    %v407 = vpack.c.b16 %v319, %v311
    %v408 = vpack.c.b16 %v328, %v320
    %v409 = vpack.c.b16 %v329, %v321
    %v410 = vpack.c.b16 %v330, %v322
    %v411 = vpack.c.b16 %v331, %v323
    %v412 = vpack.c.b16 %v332, %v324
    %v413 = vpack.c.b16 %v333, %v325
    %v414 = vpack.c.b16 %v334, %v326
    %v415 = vpack.c.b16 %v335, %v327
    %v416 = vpack.c.b16 %v344, %v336
    %v417 = vpack.c.b16 %v345, %v337
    %v418 = vpack.c.b16 %v346, %v338
    %v419 = vpack.c.b16 %v347, %v339
    %v420 = vpack.c.b16 %v348, %v340
    %v421 = vpack.c.b16 %v349, %v341
    %v422 = vpack.c.b16 %v350, %v342
    %v423 = vpack.c.b16 %v351, %v343
    %v424 = vpack.c.b16 %v360, %v352
    %v425 = vpack.c.b16 %v361, %v353
    %v426 = vpack.c.b16 %v362, %v354
    %v427 = vpack.c.b16 %v363, %v355
    %v428 = vpack.c.b16 %v364, %v356
    %v429 = vpack.c.b16 %v365, %v357
    %v430 = vpack.c.b16 %v366, %v358
    %v431 = vpack.c.b16 %v367, %v359
    %496 = vmatpush.bf16.msra.mxu0 %v424
    %497 = vmatpush.bf16.msra.mxu0 %v416
    %498 = vmatpush.bf16.msra.mxu0 %v408
    %499 = vmatpush.bf16.msra.mxu0 %v400
    %500 = vmatpush.bf16.msra.mxu0 %v392
    %501 = vmatpush.bf16.msra.mxu0 %v384
    %502 = vmatpush.bf16.msra.mxu0 %v376
    %503 = vmatpush.bf16.msra.mxu0 %v368
    %504 = vmatmul.bf16.gmra.mxu0 %v93
    %v505 = vpop.f32.mrf.mxu0
    %v506 = vadd.f32 %v160, %v505
    %v507 = vpop.f32.mrf.mxu0
    %508 = vdwg.mxu0
    %509 = vmatpush.bf16.msra.mxu0 %v425
    %510 = vmatpush.bf16.msra.mxu0 %v417
    %511 = vmatpush.bf16.msra.mxu0 %v409
    %512 = vmatpush.bf16.msra.mxu0 %v401
    %513 = vmatpush.bf16.msra.mxu0 %v393
    %514 = vmatpush.bf16.msra.mxu0 %v385
    %515 = vmatpush.bf16.msra.mxu0 %v377
    %516 = vmatpush.bf16.msra.mxu0 %v369
    %517 = vmatmul.bf16.gmra.mxu0 %v93
    %v518 = vpop.f32.mrf.mxu0
    %v519 = vadd.f32 %v161, %v518
    %v520 = vpop.f32.mrf.mxu0
    %521 = vdwg.mxu0
    %522 = vmatpush.bf16.msra.mxu0 %v426
    %523 = vmatpush.bf16.msra.mxu0 %v418
    %524 = vmatpush.bf16.msra.mxu0 %v410
    %525 = vmatpush.bf16.msra.mxu0 %v402
    %526 = vmatpush.bf16.msra.mxu0 %v394
    %527 = vmatpush.bf16.msra.mxu0 %v386
    %528 = vmatpush.bf16.msra.mxu0 %v378
    %529 = vmatpush.bf16.msra.mxu0 %v370
    %530 = vmatmul.bf16.gmra.mxu0 %v93
    %v531 = vpop.f32.mrf.mxu0
    %v532 = vadd.f32 %v162, %v531
    %v533 = vpop.f32.mrf.mxu0
    %534 = vdwg.mxu0
    %535 = vmatpush.bf16.msra.mxu0 %v427
    %536 = vmatpush.bf16.msra.mxu0 %v419
    %537 = vmatpush.bf16.msra.mxu0 %v411
    %538 = vmatpush.bf16.msra.mxu0 %v403
    %539 = vmatpush.bf16.msra.mxu0 %v395
    %540 = vmatpush.bf16.msra.mxu0 %v387
    %541 = vmatpush.bf16.msra.mxu0 %v379
    %542 = vmatpush.bf16.msra.mxu0 %v371
    %543 = vmatmul.bf16.gmra.mxu0 %v93
    %v544 = vpop.f32.mrf.mxu0
    %v545 = vadd.f32 %v163, %v544
    %v546 = vpop.f32.mrf.mxu0
    %547 = vdwg.mxu0
    %548 = vmatpush.bf16.msra.mxu0 %v428
    %549 = vmatpush.bf16.msra.mxu0 %v420
    %550 = vmatpush.bf16.msra.mxu0 %v412
    %551 = vmatpush.bf16.msra.mxu0 %v404
    %552 = vmatpush.bf16.msra.mxu0 %v396
    %553 = vmatpush.bf16.msra.mxu0 %v388
    %554 = vmatpush.bf16.msra.mxu0 %v380
    %555 = vmatpush.bf16.msra.mxu0 %v372
    %556 = vmatmul.bf16.gmra.mxu0 %v93
    %v557 = vpop.f32.mrf.mxu0
    %v558 = vadd.f32 %v164, %v557
    %v559 = vpop.f32.mrf.mxu0
    %560 = vdwg.mxu0
    %561 = vmatpush.bf16.msra.mxu0 %v429
    %562 = vmatpush.bf16.msra.mxu0 %v421
    %563 = vmatpush.bf16.msra.mxu0 %v413
    %564 = vmatpush.bf16.msra.mxu0 %v405
    %565 = vmatpush.bf16.msra.mxu0 %v397
    %566 = vmatpush.bf16.msra.mxu0 %v389
    %567 = vmatpush.bf16.msra.mxu0 %v381
    %568 = vmatpush.bf16.msra.mxu0 %v373
    %569 = vmatmul.bf16.gmra.mxu0 %v93
    %v570 = vpop.f32.mrf.mxu0
    %v571 = vadd.f32 %v165, %v570
    %v572 = vpop.f32.mrf.mxu0
    %573 = vdwg.mxu0
    %574 = vmatpush.bf16.msra.mxu0 %v430
    %575 = vmatpush.bf16.msra.mxu0 %v422
    %576 = vmatpush.bf16.msra.mxu0 %v414
    %577 = vmatpush.bf16.msra.mxu0 %v406
    %578 = vmatpush.bf16.msra.mxu0 %v398
    %579 = vmatpush.bf16.msra.mxu0 %v390
    %580 = vmatpush.bf16.msra.mxu0 %v382
    %581 = vmatpush.bf16.msra.mxu0 %v374
    %582 = vmatmul.bf16.gmra.mxu0 %v93
    %v583 = vpop.f32.mrf.mxu0
    %v584 = vadd.f32 %v166, %v583
    %v585 = vpop.f32.mrf.mxu0
    %586 = vdwg.mxu0
    %587 = vmatpush.bf16.msra.mxu0 %v431
    %588 = vmatpush.bf16.msra.mxu0 %v423
    %589 = vmatpush.bf16.msra.mxu0 %v415
    %590 = vmatpush.bf16.msra.mxu0 %v407
    %591 = vmatpush.bf16.msra.mxu0 %v399
    %592 = vmatpush.bf16.msra.mxu0 %v391
    %593 = vmatpush.bf16.msra.mxu0 %v383
    %594 = vmatpush.bf16.msra.mxu0 %v375
    %595 = vmatmul.bf16.gmra.mxu0 %v93
    %v596 = vpop.f32.mrf.mxu0
    %v597 = vadd.f32 %v167, %v596
    %v598 = vpop.f32.mrf.mxu0
    %599 = vdwg.mxu0
    %v600 = vmax.f32 %v506, 0.0
    %v601 = vmax.f32 %v519, 0.0
    %v602 = vmax.f32 %v532, 0.0
    %v603 = vmax.f32 %v545, 0.0
    %v604 = vmax.f32 %v558, 0.0
    %v605 = vmax.f32 %v571, 0.0
    %v606 = vmax.f32 %v584, 0.0
    %v607 = vmax.f32 %v597, 0.0
    %v608 = vpack.c.bf16 %v600, %v600
    %v609 = vpack.c.bf16 %v601, %v601
    %v610 = vpack.c.bf16 %v602, %v602
    %v611 = vpack.c.bf16 %v603, %v603
    %v612 = vpack.c.bf16 %v604, %v604
    %v613 = vpack.c.bf16 %v605, %v605
    %v614 = vpack.c.bf16 %v606, %v606
    %v615 = vpack.c.bf16 %v607, %v607
    %v616 = vld [vmem:[#allocation8] sm:$0xff]
    %v617 = vld [vmem:[#allocation8 + $0x8] sm:$0xff]
    %v618 = vld [vmem:[#allocation8 + $0x10] sm:$0xff]
    %v619 = vld [vmem:[#allocation8 + $0x18] sm:$0xff]
    %v620 = vld [vmem:[#allocation8 + $0x20] sm:$0xff]
    %v621 = vld [vmem:[#allocation8 + $0x28] sm:$0xff]
    %v622 = vld [vmem:[#allocation8 + $0x30] sm:$0xff]
    %v623 = vld [vmem:[#allocation8 + $0x38] sm:$0xff]
    %v624 = vld [vmem:[#allocation8 + $0x40] sm:$0xff]
    %v625 = vld [vmem:[#allocation8 + $0x48] sm:$0xff]
    %v626 = vld [vmem:[#allocation8 + $0x50] sm:$0xff]
    %v627 = vld [vmem:[#allocation8 + $0x58] sm:$0xff]
    %v628 = vld [vmem:[#allocation8 + $0x60] sm:$0xff]
    %v629 = vld [vmem:[#allocation8 + $0x68] sm:$0xff]
    %v630 = vld [vmem:[#allocation8 + $0x70] sm:$0xff]
    %v631 = vld [vmem:[#allocation8 + $0x78] sm:$0xff]
    %v632 = vld [vmem:[#allocation8 + $0x80] sm:$0xff]
    %v633 = vld [vmem:[#allocation8 + $0x88] sm:$0xff]
    %v634 = vld [vmem:[#allocation8 + $0x90] sm:$0xff]
    %v635 = vld [vmem:[#allocation8 + $0x98] sm:$0xff]
    %v636 = vld [vmem:[#allocation8 + $0xa0] sm:$0xff]
    %v637 = vld [vmem:[#allocation8 + $0xa8] sm:$0xff]
    %v638 = vld [vmem:[#allocation8 + $0xb0] sm:$0xff]
    %v639 = vld [vmem:[#allocation8 + $0xb8] sm:$0xff]
    %v640 = vld [vmem:[#allocation8 + $0xc0] sm:$0xff]
    %v641 = vld [vmem:[#allocation8 + $0xc8] sm:$0xff]
    %v642 = vld [vmem:[#allocation8 + $0xd0] sm:$0xff]
    %v643 = vld [vmem:[#allocation8 + $0xd8] sm:$0xff]
    %v644 = vld [vmem:[#allocation8 + $0xe0] sm:$0xff]
    %v645 = vld [vmem:[#allocation8 + $0xe8] sm:$0xff]
    %v646 = vld [vmem:[#allocation8 + $0xf0] sm:$0xff]
    %v647 = vld [vmem:[#allocation8 + $0xf8] sm:$0xff]
    %v648 = vld [vmem:[#allocation8 + $0x100] sm:$0xff]
    %v649 = vld [vmem:[#allocation8 + $0x108] sm:$0xff]
    %v650 = vld [vmem:[#allocation8 + $0x110] sm:$0xff]
    %v651 = vld [vmem:[#allocation8 + $0x118] sm:$0xff]
    %v652 = vld [vmem:[#allocation8 + $0x120] sm:$0xff]
    %v653 = vld [vmem:[#allocation8 + $0x128] sm:$0xff]
    %v654 = vld [vmem:[#allocation8 + $0x130] sm:$0xff]
    %v655 = vld [vmem:[#allocation8 + $0x138] sm:$0xff]
    %v656 = vld [vmem:[#allocation8 + $0x140] sm:$0xff]
    %v657 = vld [vmem:[#allocation8 + $0x148] sm:$0xff]
    %v658 = vld [vmem:[#allocation8 + $0x150] sm:$0xff]
    %v659 = vld [vmem:[#allocation8 + $0x158] sm:$0xff]
    %v660 = vld [vmem:[#allocation8 + $0x160] sm:$0xff]
    %v661 = vld [vmem:[#allocation8 + $0x168] sm:$0xff]
    %v662 = vld [vmem:[#allocation8 + $0x170] sm:$0xff]
    %v663 = vld [vmem:[#allocation8 + $0x178] sm:$0xff]
    %v664 = vld [vmem:[#allocation8 + $0x180] sm:$0xff]
    %v665 = vld [vmem:[#allocation8 + $0x188] sm:$0xff]
    %v666 = vld [vmem:[#allocation8 + $0x190] sm:$0xff]
    %v667 = vld [vmem:[#allocation8 + $0x198] sm:$0xff]
    %v668 = vld [vmem:[#allocation8 + $0x1a0] sm:$0xff]
    %v669 = vld [vmem:[#allocation8 + $0x1a8] sm:$0xff]
    %v670 = vld [vmem:[#allocation8 + $0x1b0] sm:$0xff]
    %v671 = vld [vmem:[#allocation8 + $0x1b8] sm:$0xff]
    %v672 = vld [vmem:[#allocation8 + $0x1c0] sm:$0xff]
    %v673 = vld [vmem:[#allocation8 + $0x1c8] sm:$0xff]
    %v674 = vld [vmem:[#allocation8 + $0x1d0] sm:$0xff]
    %v675 = vld [vmem:[#allocation8 + $0x1d8] sm:$0xff]
    %v676 = vld [vmem:[#allocation8 + $0x1e0] sm:$0xff]
    %v677 = vld [vmem:[#allocation8 + $0x1e8] sm:$0xff]
    %v678 = vld [vmem:[#allocation8 + $0x1f0] sm:$0xff]
    %v679 = vld [vmem:[#allocation8 + $0x1f8] sm:$0xff]
    %v680 = vld [vmem:[#allocation8 + $0x200] sm:$0xff]
    %v681 = vld [vmem:[#allocation8 + $0x208] sm:$0xff]
    %v682 = vld [vmem:[#allocation8 + $0x210] sm:$0xff]
    %v683 = vld [vmem:[#allocation8 + $0x218] sm:$0xff]
    %v684 = vld [vmem:[#allocation8 + $0x220] sm:$0xff]
    %v685 = vld [vmem:[#allocation8 + $0x228] sm:$0xff]
    %v686 = vld [vmem:[#allocation8 + $0x230] sm:$0xff]
    %v687 = vld [vmem:[#allocation8 + $0x238] sm:$0xff]
    %v688 = vld [vmem:[#allocation8 + $0x240] sm:$0xff]
    %v689 = vld [vmem:[#allocation8 + $0x248] sm:$0xff]
    %v690 = vld [vmem:[#allocation8 + $0x250] sm:$0xff]
    %v691 = vld [vmem:[#allocation8 + $0x258] sm:$0xff]
    %v692 = vld [vmem:[#allocation8 + $0x260] sm:$0xff]
    %v693 = vld [vmem:[#allocation8 + $0x268] sm:$0xff]
    %v694 = vld [vmem:[#allocation8 + $0x270] sm:$0xff]
    %v695 = vld [vmem:[#allocation8 + $0x278] sm:$0xff]
    %v696 = vld [vmem:[#allocation8 + $0x280] sm:$0xff]
    %v697 = vld [vmem:[#allocation8 + $0x288] sm:$0xff]
    %v698 = vld [vmem:[#allocation8 + $0x290] sm:$0xff]
    %v699 = vld [vmem:[#allocation8 + $0x298] sm:$0xff]
    %v700 = vld [vmem:[#allocation8 + $0x2a0] sm:$0xff]
    %v701 = vld [vmem:[#allocation8 + $0x2a8] sm:$0xff]
    %v702 = vld [vmem:[#allocation8 + $0x2b0] sm:$0xff]
    %v703 = vld [vmem:[#allocation8 + $0x2b8] sm:$0xff]
    %v704 = vld [vmem:[#allocation8 + $0x2c0] sm:$0xff]
    %v705 = vld [vmem:[#allocation8 + $0x2c8] sm:$0xff]
    %v706 = vld [vmem:[#allocation8 + $0x2d0] sm:$0xff]
    %v707 = vld [vmem:[#allocation8 + $0x2d8] sm:$0xff]
    %v708 = vld [vmem:[#allocation8 + $0x2e0] sm:$0xff]
    %v709 = vld [vmem:[#allocation8 + $0x2e8] sm:$0xff]
    %v710 = vld [vmem:[#allocation8 + $0x2f0] sm:$0xff]
    %v711 = vld [vmem:[#allocation8 + $0x2f8] sm:$0xff]
    %v712 = vld [vmem:[#allocation8 + $0x300] sm:$0xff]
    %v713 = vld [vmem:[#allocation8 + $0x308] sm:$0xff]
    %v714 = vld [vmem:[#allocation8 + $0x310] sm:$0xff]
    %v715 = vld [vmem:[#allocation8 + $0x318] sm:$0xff]
    %v716 = vld [vmem:[#allocation8 + $0x320] sm:$0xff]
    %v717 = vld [vmem:[#allocation8 + $0x328] sm:$0xff]
    %v718 = vld [vmem:[#allocation8 + $0x330] sm:$0xff]
    %v719 = vld [vmem:[#allocation8 + $0x338] sm:$0xff]
    %v720 = vld [vmem:[#allocation8 + $0x340] sm:$0xff]
    %v721 = vld [vmem:[#allocation8 + $0x348] sm:$0xff]
    %v722 = vld [vmem:[#allocation8 + $0x350] sm:$0xff]
    %v723 = vld [vmem:[#allocation8 + $0x358] sm:$0xff]
    %v724 = vld [vmem:[#allocation8 + $0x360] sm:$0xff]
    %v725 = vld [vmem:[#allocation8 + $0x368] sm:$0xff]
    %v726 = vld [vmem:[#allocation8 + $0x370] sm:$0xff]
    %v727 = vld [vmem:[#allocation8 + $0x378] sm:$0xff]
    %v728 = vld [vmem:[#allocation8 + $0x380] sm:$0xff]
    %v729 = vld [vmem:[#allocation8 + $0x388] sm:$0xff]
    %v730 = vld [vmem:[#allocation8 + $0x390] sm:$0xff]
    %v731 = vld [vmem:[#allocation8 + $0x398] sm:$0xff]
    %v732 = vld [vmem:[#allocation8 + $0x3a0] sm:$0xff]
    %v733 = vld [vmem:[#allocation8 + $0x3a8] sm:$0xff]
    %v734 = vld [vmem:[#allocation8 + $0x3b0] sm:$0xff]
    %v735 = vld [vmem:[#allocation8 + $0x3b8] sm:$0xff]
    %v736 = vld [vmem:[#allocation8 + $0x3c0] sm:$0xff]
    %v737 = vld [vmem:[#allocation8 + $0x3c8] sm:$0xff]
    %v738 = vld [vmem:[#allocation8 + $0x3d0] sm:$0xff]
    %v739 = vld [vmem:[#allocation8 + $0x3d8] sm:$0xff]
    %v740 = vld [vmem:[#allocation8 + $0x3e0] sm:$0xff]
    %v741 = vld [vmem:[#allocation8 + $0x3e8] sm:$0xff]
    %v742 = vld [vmem:[#allocation8 + $0x3f0] sm:$0xff]
    %v743 = vld [vmem:[#allocation8 + $0x3f8] sm:$0xff]
    %v744 = vld [vmem:[#allocation8 + $0x400] sm:$0xff]
    %v745 = vld [vmem:[#allocation8 + $0x408] sm:$0xff]
    %v746 = vld [vmem:[#allocation8 + $0x410] sm:$0xff]
    %v747 = vld [vmem:[#allocation8 + $0x418] sm:$0xff]
    %v748 = vld [vmem:[#allocation8 + $0x420] sm:$0xff]
    %v749 = vld [vmem:[#allocation8 + $0x428] sm:$0xff]
    %v750 = vld [vmem:[#allocation8 + $0x430] sm:$0xff]
    %v751 = vld [vmem:[#allocation8 + $0x438] sm:$0xff]
    %v752 = vld [vmem:[#allocation8 + $0x440] sm:$0xff]
    %v753 = vld [vmem:[#allocation8 + $0x448] sm:$0xff]
    %v754 = vld [vmem:[#allocation8 + $0x450] sm:$0xff]
    %v755 = vld [vmem:[#allocation8 + $0x458] sm:$0xff]
    %v756 = vld [vmem:[#allocation8 + $0x460] sm:$0xff]
    %v757 = vld [vmem:[#allocation8 + $0x468] sm:$0xff]
    %v758 = vld [vmem:[#allocation8 + $0x470] sm:$0xff]
    %v759 = vld [vmem:[#allocation8 + $0x478] sm:$0xff]
    %v760 = vld [vmem:[#allocation8 + $0x480] sm:$0xff]
    %v761 = vld [vmem:[#allocation8 + $0x488] sm:$0xff]
    %v762 = vld [vmem:[#allocation8 + $0x490] sm:$0xff]
    %v763 = vld [vmem:[#allocation8 + $0x498] sm:$0xff]
    %v764 = vld [vmem:[#allocation8 + $0x4a0] sm:$0xff]
    %v765 = vld [vmem:[#allocation8 + $0x4a8] sm:$0xff]
    %v766 = vld [vmem:[#allocation8 + $0x4b0] sm:$0xff]
    %v767 = vld [vmem:[#allocation8 + $0x4b8] sm:$0xff]
    %v768 = vld [vmem:[#allocation8 + $0x4c0] sm:$0xff]
    %v769 = vld [vmem:[#allocation8 + $0x4c8] sm:$0xff]
    %v770 = vld [vmem:[#allocation8 + $0x4d0] sm:$0xff]
    %v771 = vld [vmem:[#allocation8 + $0x4d8] sm:$0xff]
    %v772 = vld [vmem:[#allocation8 + $0x4e0] sm:$0xff]
    %v773 = vld [vmem:[#allocation8 + $0x4e8] sm:$0xff]
    %v774 = vld [vmem:[#allocation8 + $0x4f0] sm:$0xff]
    %v775 = vld [vmem:[#allocation8 + $0x4f8] sm:$0xff]
    %v776 = vld [vmem:[#allocation8 + $0x500] sm:$0xff]
    %v777 = vld [vmem:[#allocation8 + $0x508] sm:$0xff]
    %v778 = vld [vmem:[#allocation8 + $0x510] sm:$0xff]
    %v779 = vld [vmem:[#allocation8 + $0x518] sm:$0xff]
    %v780 = vld [vmem:[#allocation8 + $0x520] sm:$0xff]
    %v781 = vld [vmem:[#allocation8 + $0x528] sm:$0xff]
    %v782 = vld [vmem:[#allocation8 + $0x530] sm:$0xff]
    %v783 = vld [vmem:[#allocation8 + $0x538] sm:$0xff]
    %v784 = vld [vmem:[#allocation8 + $0x540] sm:$0xff]
    %v785 = vld [vmem:[#allocation8 + $0x548] sm:$0xff]
    %v786 = vld [vmem:[#allocation8 + $0x550] sm:$0xff]
    %v787 = vld [vmem:[#allocation8 + $0x558] sm:$0xff]
    %v788 = vld [vmem:[#allocation8 + $0x560] sm:$0xff]
    %v789 = vld [vmem:[#allocation8 + $0x568] sm:$0xff]
    %v790 = vld [vmem:[#allocation8 + $0x570] sm:$0xff]
    %v791 = vld [vmem:[#allocation8 + $0x578] sm:$0xff]
    %v792 = vld [vmem:[#allocation8 + $0x580] sm:$0xff]
    %v793 = vld [vmem:[#allocation8 + $0x588] sm:$0xff]
    %v794 = vld [vmem:[#allocation8 + $0x590] sm:$0xff]
    %v795 = vld [vmem:[#allocation8 + $0x598] sm:$0xff]
    %v796 = vld [vmem:[#allocation8 + $0x5a0] sm:$0xff]
    %v797 = vld [vmem:[#allocation8 + $0x5a8] sm:$0xff]
    %v798 = vld [vmem:[#allocation8 + $0x5b0] sm:$0xff]
    %v799 = vld [vmem:[#allocation8 + $0x5b8] sm:$0xff]
    %v800 = vld [vmem:[#allocation8 + $0x5c0] sm:$0xff]
    %v801 = vld [vmem:[#allocation8 + $0x5c8] sm:$0xff]
    %v802 = vld [vmem:[#allocation8 + $0x5d0] sm:$0xff]
    %v803 = vld [vmem:[#allocation8 + $0x5d8] sm:$0xff]
    %v804 = vld [vmem:[#allocation8 + $0x5e0] sm:$0xff]
    %v805 = vld [vmem:[#allocation8 + $0x5e8] sm:$0xff]
    %v806 = vld [vmem:[#allocation8 + $0x5f0] sm:$0xff]
    %v807 = vld [vmem:[#allocation8 + $0x5f8] sm:$0xff]
    %v808 = vld [vmem:[#allocation8 + $0x600] sm:$0xff]
    %v809 = vld [vmem:[#allocation8 + $0x608] sm:$0xff]
    %v810 = vld [vmem:[#allocation8 + $0x610] sm:$0xff]
    %v811 = vld [vmem:[#allocation8 + $0x618] sm:$0xff]
    %v812 = vld [vmem:[#allocation8 + $0x620] sm:$0xff]
    %v813 = vld [vmem:[#allocation8 + $0x628] sm:$0xff]
    %v814 = vld [vmem:[#allocation8 + $0x630] sm:$0xff]
    %v815 = vld [vmem:[#allocation8 + $0x638] sm:$0xff]
    %v816 = vld [vmem:[#allocation8 + $0x640] sm:$0xff]
    %v817 = vld [vmem:[#allocation8 + $0x648] sm:$0xff]
    %v818 = vld [vmem:[#allocation8 + $0x650] sm:$0xff]
    %v819 = vld [vmem:[#allocation8 + $0x658] sm:$0xff]
    %v820 = vld [vmem:[#allocation8 + $0x660] sm:$0xff]
    %v821 = vld [vmem:[#allocation8 + $0x668] sm:$0xff]
    %v822 = vld [vmem:[#allocation8 + $0x670] sm:$0xff]
    %v823 = vld [vmem:[#allocation8 + $0x678] sm:$0xff]
    %v824 = vld [vmem:[#allocation8 + $0x680] sm:$0xff]
    %v825 = vld [vmem:[#allocation8 + $0x688] sm:$0xff]
    %v826 = vld [vmem:[#allocation8 + $0x690] sm:$0xff]
    %v827 = vld [vmem:[#allocation8 + $0x698] sm:$0xff]
    %v828 = vld [vmem:[#allocation8 + $0x6a0] sm:$0xff]
    %v829 = vld [vmem:[#allocation8 + $0x6a8] sm:$0xff]
    %v830 = vld [vmem:[#allocation8 + $0x6b0] sm:$0xff]
    %v831 = vld [vmem:[#allocation8 + $0x6b8] sm:$0xff]
    %v832 = vld [vmem:[#allocation8 + $0x6c0] sm:$0xff]
    %v833 = vld [vmem:[#allocation8 + $0x6c8] sm:$0xff]
    %v834 = vld [vmem:[#allocation8 + $0x6d0] sm:$0xff]
    %v835 = vld [vmem:[#allocation8 + $0x6d8] sm:$0xff]
    %v836 = vld [vmem:[#allocation8 + $0x6e0] sm:$0xff]
    %v837 = vld [vmem:[#allocation8 + $0x6e8] sm:$0xff]
    %v838 = vld [vmem:[#allocation8 + $0x6f0] sm:$0xff]
    %v839 = vld [vmem:[#allocation8 + $0x6f8] sm:$0xff]
    %v840 = vld [vmem:[#allocation8 + $0x700] sm:$0xff]
    %v841 = vld [vmem:[#allocation8 + $0x708] sm:$0xff]
    %v842 = vld [vmem:[#allocation8 + $0x710] sm:$0xff]
    %v843 = vld [vmem:[#allocation8 + $0x718] sm:$0xff]
    %v844 = vld [vmem:[#allocation8 + $0x720] sm:$0xff]
    %v845 = vld [vmem:[#allocation8 + $0x728] sm:$0xff]
    %v846 = vld [vmem:[#allocation8 + $0x730] sm:$0xff]
    %v847 = vld [vmem:[#allocation8 + $0x738] sm:$0xff]
    %v848 = vld [vmem:[#allocation8 + $0x740] sm:$0xff]
    %v849 = vld [vmem:[#allocation8 + $0x748] sm:$0xff]
    %v850 = vld [vmem:[#allocation8 + $0x750] sm:$0xff]
    %v851 = vld [vmem:[#allocation8 + $0x758] sm:$0xff]
    %v852 = vld [vmem:[#allocation8 + $0x760] sm:$0xff]
    %v853 = vld [vmem:[#allocation8 + $0x768] sm:$0xff]
    %v854 = vld [vmem:[#allocation8 + $0x770] sm:$0xff]
    %v855 = vld [vmem:[#allocation8 + $0x778] sm:$0xff]
    %v856 = vld [vmem:[#allocation8 + $0x780] sm:$0xff]
    %v857 = vld [vmem:[#allocation8 + $0x788] sm:$0xff]
    %v858 = vld [vmem:[#allocation8 + $0x790] sm:$0xff]
    %v859 = vld [vmem:[#allocation8 + $0x798] sm:$0xff]
    %v860 = vld [vmem:[#allocation8 + $0x7a0] sm:$0xff]
    %v861 = vld [vmem:[#allocation8 + $0x7a8] sm:$0xff]
    %v862 = vld [vmem:[#allocation8 + $0x7b0] sm:$0xff]
    %v863 = vld [vmem:[#allocation8 + $0x7b8] sm:$0xff]
    %v864 = vld [vmem:[#allocation8 + $0x7c0] sm:$0xff]
    %v865 = vld [vmem:[#allocation8 + $0x7c8] sm:$0xff]
    %v866 = vld [vmem:[#allocation8 + $0x7d0] sm:$0xff]
    %v867 = vld [vmem:[#allocation8 + $0x7d8] sm:$0xff]
    %v868 = vld [vmem:[#allocation8 + $0x7e0] sm:$0xff]
    %v869 = vld [vmem:[#allocation8 + $0x7e8] sm:$0xff]
    %v870 = vld [vmem:[#allocation8 + $0x7f0] sm:$0xff]
    %v871 = vld [vmem:[#allocation8 + $0x7f8] sm:$0xff]
    %v872 = vld [vmem:[#allocation8 + $0x800] sm:$0xff]
    %v873 = vld [vmem:[#allocation8 + $0x808] sm:$0xff]
    %v874 = vld [vmem:[#allocation8 + $0x810] sm:$0xff]
    %v875 = vld [vmem:[#allocation8 + $0x818] sm:$0xff]
    %v876 = vld [vmem:[#allocation8 + $0x820] sm:$0xff]
    %v877 = vld [vmem:[#allocation8 + $0x828] sm:$0xff]
    %v878 = vld [vmem:[#allocation8 + $0x830] sm:$0xff]
    %v879 = vld [vmem:[#allocation8 + $0x838] sm:$0xff]
    %v880 = vld [vmem:[#allocation8 + $0x840] sm:$0xff]
    %v881 = vld [vmem:[#allocation8 + $0x848] sm:$0xff]
    %v882 = vld [vmem:[#allocation8 + $0x850] sm:$0xff]
    %v883 = vld [vmem:[#allocation8 + $0x858] sm:$0xff]
    %v884 = vld [vmem:[#allocation8 + $0x860] sm:$0xff]
    %v885 = vld [vmem:[#allocation8 + $0x868] sm:$0xff]
    %v886 = vld [vmem:[#allocation8 + $0x870] sm:$0xff]
    %v887 = vld [vmem:[#allocation8 + $0x878] sm:$0xff]
    %v888 = vld [vmem:[#allocation8 + $0x880] sm:$0xff]
    %v889 = vld [vmem:[#allocation8 + $0x888] sm:$0xff]
    %v890 = vld [vmem:[#allocation8 + $0x890] sm:$0xff]
    %v891 = vld [vmem:[#allocation8 + $0x898] sm:$0xff]
    %v892 = vld [vmem:[#allocation8 + $0x8a0] sm:$0xff]
    %v893 = vld [vmem:[#allocation8 + $0x8a8] sm:$0xff]
    %v894 = vld [vmem:[#allocation8 + $0x8b0] sm:$0xff]
    %v895 = vld [vmem:[#allocation8 + $0x8b8] sm:$0xff]
    %v896 = vld [vmem:[#allocation8 + $0x8c0] sm:$0xff]
    %v897 = vld [vmem:[#allocation8 + $0x8c8] sm:$0xff]
    %v898 = vld [vmem:[#allocation8 + $0x8d0] sm:$0xff]
    %v899 = vld [vmem:[#allocation8 + $0x8d8] sm:$0xff]
    %v900 = vld [vmem:[#allocation8 + $0x8e0] sm:$0xff]
    %v901 = vld [vmem:[#allocation8 + $0x8e8] sm:$0xff]
    %v902 = vld [vmem:[#allocation8 + $0x8f0] sm:$0xff]
    %v903 = vld [vmem:[#allocation8 + $0x8f8] sm:$0xff]
    %v904 = vld [vmem:[#allocation8 + $0x900] sm:$0xff]
    %v905 = vld [vmem:[#allocation8 + $0x908] sm:$0xff]
    %v906 = vld [vmem:[#allocation8 + $0x910] sm:$0xff]
    %v907 = vld [vmem:[#allocation8 + $0x918] sm:$0xff]
    %v908 = vld [vmem:[#allocation8 + $0x920] sm:$0xff]
    %v909 = vld [vmem:[#allocation8 + $0x928] sm:$0xff]
    %v910 = vld [vmem:[#allocation8 + $0x930] sm:$0xff]
    %v911 = vld [vmem:[#allocation8 + $0x938] sm:$0xff]
    %v912 = vld [vmem:[#allocation8 + $0x940] sm:$0xff]
    %v913 = vld [vmem:[#allocation8 + $0x948] sm:$0xff]
    %v914 = vld [vmem:[#allocation8 + $0x950] sm:$0xff]
    %v915 = vld [vmem:[#allocation8 + $0x958] sm:$0xff]
    %v916 = vld [vmem:[#allocation8 + $0x960] sm:$0xff]
    %v917 = vld [vmem:[#allocation8 + $0x968] sm:$0xff]
    %v918 = vld [vmem:[#allocation8 + $0x970] sm:$0xff]
    %v919 = vld [vmem:[#allocation8 + $0x978] sm:$0xff]
    %v920 = vld [vmem:[#allocation8 + $0x980] sm:$0xff]
    %v921 = vld [vmem:[#allocation8 + $0x988] sm:$0xff]
    %v922 = vld [vmem:[#allocation8 + $0x990] sm:$0xff]
    %v923 = vld [vmem:[#allocation8 + $0x998] sm:$0xff]
    %v924 = vld [vmem:[#allocation8 + $0x9a0] sm:$0xff]
    %v925 = vld [vmem:[#allocation8 + $0x9a8] sm:$0xff]
    %v926 = vld [vmem:[#allocation8 + $0x9b0] sm:$0xff]
    %v927 = vld [vmem:[#allocation8 + $0x9b8] sm:$0xff]
    %v928 = vld [vmem:[#allocation8 + $0x9c0] sm:$0xff]
    %v929 = vld [vmem:[#allocation8 + $0x9c8] sm:$0xff]
    %v930 = vld [vmem:[#allocation8 + $0x9d0] sm:$0xff]
    %v931 = vld [vmem:[#allocation8 + $0x9d8] sm:$0xff]
    %v932 = vld [vmem:[#allocation8 + $0x9e0] sm:$0xff]
    %v933 = vld [vmem:[#allocation8 + $0x9e8] sm:$0xff]
    %v934 = vld [vmem:[#allocation8 + $0x9f0] sm:$0xff]
    %v935 = vld [vmem:[#allocation8 + $0x9f8] sm:$0xff]
    %v936 = vld [vmem:[#allocation8 + $0xa00] sm:$0xff]
    %v937 = vld [vmem:[#allocation8 + $0xa08] sm:$0xff]
    %v938 = vld [vmem:[#allocation8 + $0xa10] sm:$0xff]
    %v939 = vld [vmem:[#allocation8 + $0xa18] sm:$0xff]
    %v940 = vld [vmem:[#allocation8 + $0xa20] sm:$0xff]
    %v941 = vld [vmem:[#allocation8 + $0xa28] sm:$0xff]
    %v942 = vld [vmem:[#allocation8 + $0xa30] sm:$0xff]
    %v943 = vld [vmem:[#allocation8 + $0xa38] sm:$0xff]
    %v944 = vld [vmem:[#allocation8 + $0xa40] sm:$0xff]
    %v945 = vld [vmem:[#allocation8 + $0xa48] sm:$0xff]
    %v946 = vld [vmem:[#allocation8 + $0xa50] sm:$0xff]
    %v947 = vld [vmem:[#allocation8 + $0xa58] sm:$0xff]
    %v948 = vld [vmem:[#allocation8 + $0xa60] sm:$0xff]
    %v949 = vld [vmem:[#allocation8 + $0xa68] sm:$0xff]
    %v950 = vld [vmem:[#allocation8 + $0xa70] sm:$0xff]
    %v951 = vld [vmem:[#allocation8 + $0xa78] sm:$0xff]
    %v952 = vld [vmem:[#allocation8 + $0xa80] sm:$0xff]
    %v953 = vld [vmem:[#allocation8 + $0xa88] sm:$0xff]
    %v954 = vld [vmem:[#allocation8 + $0xa90] sm:$0xff]
    %v955 = vld [vmem:[#allocation8 + $0xa98] sm:$0xff]
    %v956 = vld [vmem:[#allocation8 + $0xaa0] sm:$0xff]
    %v957 = vld [vmem:[#allocation8 + $0xaa8] sm:$0xff]
    %v958 = vld [vmem:[#allocation8 + $0xab0] sm:$0xff]
    %v959 = vld [vmem:[#allocation8 + $0xab8] sm:$0xff]
    %v960 = vld [vmem:[#allocation8 + $0xac0] sm:$0xff]
    %v961 = vld [vmem:[#allocation8 + $0xac8] sm:$0xff]
    %v962 = vld [vmem:[#allocation8 + $0xad0] sm:$0xff]
    %v963 = vld [vmem:[#allocation8 + $0xad8] sm:$0xff]
    %v964 = vld [vmem:[#allocation8 + $0xae0] sm:$0xff]
    %v965 = vld [vmem:[#allocation8 + $0xae8] sm:$0xff]
    %v966 = vld [vmem:[#allocation8 + $0xaf0] sm:$0xff]
    %v967 = vld [vmem:[#allocation8 + $0xaf8] sm:$0xff]
    %v968 = vld [vmem:[#allocation8 + $0xb00] sm:$0xff]
    %v969 = vld [vmem:[#allocation8 + $0xb08] sm:$0xff]
    %v970 = vld [vmem:[#allocation8 + $0xb10] sm:$0xff]
    %v971 = vld [vmem:[#allocation8 + $0xb18] sm:$0xff]
    %v972 = vld [vmem:[#allocation8 + $0xb20] sm:$0xff]
    %v973 = vld [vmem:[#allocation8 + $0xb28] sm:$0xff]
    %v974 = vld [vmem:[#allocation8 + $0xb30] sm:$0xff]
    %v975 = vld [vmem:[#allocation8 + $0xb38] sm:$0xff]
    %v976 = vld [vmem:[#allocation8 + $0xb40] sm:$0xff]
    %v977 = vld [vmem:[#allocation8 + $0xb48] sm:$0xff]
    %v978 = vld [vmem:[#allocation8 + $0xb50] sm:$0xff]
    %v979 = vld [vmem:[#allocation8 + $0xb58] sm:$0xff]
    %v980 = vld [vmem:[#allocation8 + $0xb60] sm:$0xff]
    %v981 = vld [vmem:[#allocation8 + $0xb68] sm:$0xff]
    %v982 = vld [vmem:[#allocation8 + $0xb70] sm:$0xff]
    %v983 = vld [vmem:[#allocation8 + $0xb78] sm:$0xff]
    %v984 = vld [vmem:[#allocation8 + $0xb80] sm:$0xff]
    %v985 = vld [vmem:[#allocation8 + $0xb88] sm:$0xff]
    %v986 = vld [vmem:[#allocation8 + $0xb90] sm:$0xff]
    %v987 = vld [vmem:[#allocation8 + $0xb98] sm:$0xff]
    %v988 = vld [vmem:[#allocation8 + $0xba0] sm:$0xff]
    %v989 = vld [vmem:[#allocation8 + $0xba8] sm:$0xff]
    %v990 = vld [vmem:[#allocation8 + $0xbb0] sm:$0xff]
    %v991 = vld [vmem:[#allocation8 + $0xbb8] sm:$0xff]
    %v992 = vld [vmem:[#allocation8 + $0xbc0] sm:$0xff]
    %v993 = vld [vmem:[#allocation8 + $0xbc8] sm:$0xff]
    %v994 = vld [vmem:[#allocation8 + $0xbd0] sm:$0xff]
    %v995 = vld [vmem:[#allocation8 + $0xbd8] sm:$0xff]
    %v996 = vld [vmem:[#allocation8 + $0xbe0] sm:$0xff]
    %v997 = vld [vmem:[#allocation8 + $0xbe8] sm:$0xff]
    %v998 = vld [vmem:[#allocation8 + $0xbf0] sm:$0xff]
    %v999 = vld [vmem:[#allocation8 + $0xbf8] sm:$0xff]
    %v1000 = vld [vmem:[#allocation8 + $0xc00] sm:$0xff]
    %v1001 = vld [vmem:[#allocation8 + $0xc08] sm:$0xff]
    %v1002 = vld [vmem:[#allocation8 + $0xc10] sm:$0xff]
    %v1003 = vld [vmem:[#allocation8 + $0xc18] sm:$0xff]
    %v1004 = vld [vmem:[#allocation8 + $0xc20] sm:$0xff]
    %v1005 = vld [vmem:[#allocation8 + $0xc28] sm:$0xff]
    %v1006 = vld [vmem:[#allocation8 + $0xc30] sm:$0xff]
    %v1007 = vld [vmem:[#allocation8 + $0xc38] sm:$0xff]
    %v1008 = vld [vmem:[#allocation8 + $0xc40] sm:$0xff]
    %v1009 = vld [vmem:[#allocation8 + $0xc48] sm:$0xff]
    %v1010 = vld [vmem:[#allocation8 + $0xc50] sm:$0xff]
    %v1011 = vld [vmem:[#allocation8 + $0xc58] sm:$0xff]
    %v1012 = vld [vmem:[#allocation8 + $0xc60] sm:$0xff]
    %v1013 = vld [vmem:[#allocation8 + $0xc68] sm:$0xff]
    %v1014 = vld [vmem:[#allocation8 + $0xc70] sm:$0xff]
    %v1015 = vld [vmem:[#allocation8 + $0xc78] sm:$0xff]
    %v1016 = vld [vmem:[#allocation8 + $0xc80] sm:$0xff]
    %v1017 = vld [vmem:[#allocation8 + $0xc88] sm:$0xff]
    %v1018 = vld [vmem:[#allocation8 + $0xc90] sm:$0xff]
    %v1019 = vld [vmem:[#allocation8 + $0xc98] sm:$0xff]
    %v1020 = vld [vmem:[#allocation8 + $0xca0] sm:$0xff]
    %v1021 = vld [vmem:[#allocation8 + $0xca8] sm:$0xff]
    %v1022 = vld [vmem:[#allocation8 + $0xcb0] sm:$0xff]
    %v1023 = vld [vmem:[#allocation8 + $0xcb8] sm:$0xff]
    %v1024 = vld [vmem:[#allocation8 + $0xcc0] sm:$0xff]
    %v1025 = vld [vmem:[#allocation8 + $0xcc8] sm:$0xff]
    %v1026 = vld [vmem:[#allocation8 + $0xcd0] sm:$0xff]
    %v1027 = vld [vmem:[#allocation8 + $0xcd8] sm:$0xff]
    %v1028 = vld [vmem:[#allocation8 + $0xce0] sm:$0xff]
    %v1029 = vld [vmem:[#allocation8 + $0xce8] sm:$0xff]
    %v1030 = vld [vmem:[#allocation8 + $0xcf0] sm:$0xff]
    %v1031 = vld [vmem:[#allocation8 + $0xcf8] sm:$0xff]
    %v1032 = vld [vmem:[#allocation8 + $0xd00] sm:$0xff]
    %v1033 = vld [vmem:[#allocation8 + $0xd08] sm:$0xff]
    %v1034 = vld [vmem:[#allocation8 + $0xd10] sm:$0xff]
    %v1035 = vld [vmem:[#allocation8 + $0xd18] sm:$0xff]
    %v1036 = vld [vmem:[#allocation8 + $0xd20] sm:$0xff]
    %v1037 = vld [vmem:[#allocation8 + $0xd28] sm:$0xff]
    %v1038 = vld [vmem:[#allocation8 + $0xd30] sm:$0xff]
    %v1039 = vld [vmem:[#allocation8 + $0xd38] sm:$0xff]
    %v1040 = vld [vmem:[#allocation8 + $0xd40] sm:$0xff]
    %v1041 = vld [vmem:[#allocation8 + $0xd48] sm:$0xff]
    %v1042 = vld [vmem:[#allocation8 + $0xd50] sm:$0xff]
    %v1043 = vld [vmem:[#allocation8 + $0xd58] sm:$0xff]
    %v1044 = vld [vmem:[#allocation8 + $0xd60] sm:$0xff]
    %v1045 = vld [vmem:[#allocation8 + $0xd68] sm:$0xff]
    %v1046 = vld [vmem:[#allocation8 + $0xd70] sm:$0xff]
    %v1047 = vld [vmem:[#allocation8 + $0xd78] sm:$0xff]
    %v1048 = vld [vmem:[#allocation8 + $0xd80] sm:$0xff]
    %v1049 = vld [vmem:[#allocation8 + $0xd88] sm:$0xff]
    %v1050 = vld [vmem:[#allocation8 + $0xd90] sm:$0xff]
    %v1051 = vld [vmem:[#allocation8 + $0xd98] sm:$0xff]
    %v1052 = vld [vmem:[#allocation8 + $0xda0] sm:$0xff]
    %v1053 = vld [vmem:[#allocation8 + $0xda8] sm:$0xff]
    %v1054 = vld [vmem:[#allocation8 + $0xdb0] sm:$0xff]
    %v1055 = vld [vmem:[#allocation8 + $0xdb8] sm:$0xff]
    %v1056 = vld [vmem:[#allocation8 + $0xdc0] sm:$0xff]
    %v1057 = vld [vmem:[#allocation8 + $0xdc8] sm:$0xff]
    %v1058 = vld [vmem:[#allocation8 + $0xdd0] sm:$0xff]
    %v1059 = vld [vmem:[#allocation8 + $0xdd8] sm:$0xff]
    %v1060 = vld [vmem:[#allocation8 + $0xde0] sm:$0xff]
    %v1061 = vld [vmem:[#allocation8 + $0xde8] sm:$0xff]
    %v1062 = vld [vmem:[#allocation8 + $0xdf0] sm:$0xff]
    %v1063 = vld [vmem:[#allocation8 + $0xdf8] sm:$0xff]
    %v1064 = vld [vmem:[#allocation8 + $0xe00] sm:$0xff]
    %v1065 = vld [vmem:[#allocation8 + $0xe08] sm:$0xff]
    %v1066 = vld [vmem:[#allocation8 + $0xe10] sm:$0xff]
    %v1067 = vld [vmem:[#allocation8 + $0xe18] sm:$0xff]
    %v1068 = vld [vmem:[#allocation8 + $0xe20] sm:$0xff]
    %v1069 = vld [vmem:[#allocation8 + $0xe28] sm:$0xff]
    %v1070 = vld [vmem:[#allocation8 + $0xe30] sm:$0xff]
    %v1071 = vld [vmem:[#allocation8 + $0xe38] sm:$0xff]
    %v1072 = vld [vmem:[#allocation8 + $0xe40] sm:$0xff]
    %v1073 = vld [vmem:[#allocation8 + $0xe48] sm:$0xff]
    %v1074 = vld [vmem:[#allocation8 + $0xe50] sm:$0xff]
    %v1075 = vld [vmem:[#allocation8 + $0xe58] sm:$0xff]
    %v1076 = vld [vmem:[#allocation8 + $0xe60] sm:$0xff]
    %v1077 = vld [vmem:[#allocation8 + $0xe68] sm:$0xff]
    %v1078 = vld [vmem:[#allocation8 + $0xe70] sm:$0xff]
    %v1079 = vld [vmem:[#allocation8 + $0xe78] sm:$0xff]
    %v1080 = vld [vmem:[#allocation8 + $0xe80] sm:$0xff]
    %v1081 = vld [vmem:[#allocation8 + $0xe88] sm:$0xff]
    %v1082 = vld [vmem:[#allocation8 + $0xe90] sm:$0xff]
    %v1083 = vld [vmem:[#allocation8 + $0xe98] sm:$0xff]
    %v1084 = vld [vmem:[#allocation8 + $0xea0] sm:$0xff]
    %v1085 = vld [vmem:[#allocation8 + $0xea8] sm:$0xff]
    %v1086 = vld [vmem:[#allocation8 + $0xeb0] sm:$0xff]
    %v1087 = vld [vmem:[#allocation8 + $0xeb8] sm:$0xff]
    %v1088 = vld [vmem:[#allocation8 + $0xec0] sm:$0xff]
    %v1089 = vld [vmem:[#allocation8 + $0xec8] sm:$0xff]
    %v1090 = vld [vmem:[#allocation8 + $0xed0] sm:$0xff]
    %v1091 = vld [vmem:[#allocation8 + $0xed8] sm:$0xff]
    %v1092 = vld [vmem:[#allocation8 + $0xee0] sm:$0xff]
    %v1093 = vld [vmem:[#allocation8 + $0xee8] sm:$0xff]
    %v1094 = vld [vmem:[#allocation8 + $0xef0] sm:$0xff]
    %v1095 = vld [vmem:[#allocation8 + $0xef8] sm:$0xff]
    %v1096 = vld [vmem:[#allocation8 + $0xf00] sm:$0xff]
    %v1097 = vld [vmem:[#allocation8 + $0xf08] sm:$0xff]
    %v1098 = vld [vmem:[#allocation8 + $0xf10] sm:$0xff]
    %v1099 = vld [vmem:[#allocation8 + $0xf18] sm:$0xff]
    %v1100 = vld [vmem:[#allocation8 + $0xf20] sm:$0xff]
    %v1101 = vld [vmem:[#allocation8 + $0xf28] sm:$0xff]
    %v1102 = vld [vmem:[#allocation8 + $0xf30] sm:$0xff]
    %v1103 = vld [vmem:[#allocation8 + $0xf38] sm:$0xff]
    %v1104 = vld [vmem:[#allocation8 + $0xf40] sm:$0xff]
    %v1105 = vld [vmem:[#allocation8 + $0xf48] sm:$0xff]
    %v1106 = vld [vmem:[#allocation8 + $0xf50] sm:$0xff]
    %v1107 = vld [vmem:[#allocation8 + $0xf58] sm:$0xff]
    %v1108 = vld [vmem:[#allocation8 + $0xf60] sm:$0xff]
    %v1109 = vld [vmem:[#allocation8 + $0xf68] sm:$0xff]
    %v1110 = vld [vmem:[#allocation8 + $0xf70] sm:$0xff]
    %v1111 = vld [vmem:[#allocation8 + $0xf78] sm:$0xff]
    %v1112 = vld [vmem:[#allocation8 + $0xf80] sm:$0xff]
    %v1113 = vld [vmem:[#allocation8 + $0xf88] sm:$0xff]
    %v1114 = vld [vmem:[#allocation8 + $0xf90] sm:$0xff]
    %v1115 = vld [vmem:[#allocation8 + $0xf98] sm:$0xff]
    %v1116 = vld [vmem:[#allocation8 + $0xfa0] sm:$0xff]
    %v1117 = vld [vmem:[#allocation8 + $0xfa8] sm:$0xff]
    %v1118 = vld [vmem:[#allocation8 + $0xfb0] sm:$0xff]
    %v1119 = vld [vmem:[#allocation8 + $0xfb8] sm:$0xff]
    %v1120 = vld [vmem:[#allocation8 + $0xfc0] sm:$0xff]
    %v1121 = vld [vmem:[#allocation8 + $0xfc8] sm:$0xff]
    %v1122 = vld [vmem:[#allocation8 + $0xfd0] sm:$0xff]
    %v1123 = vld [vmem:[#allocation8 + $0xfd8] sm:$0xff]
    %v1124 = vld [vmem:[#allocation8 + $0xfe0] sm:$0xff]
    %v1125 = vld [vmem:[#allocation8 + $0xfe8] sm:$0xff]
    %v1126 = vld [vmem:[#allocation8 + $0xff0] sm:$0xff]
    %v1127 = vld [vmem:[#allocation8 + $0xff8] sm:$0xff]
    %v1128 = vld [vmem:[#allocation10] sm:$0xff]
    %v1130 = vperm.slane %v1128, 0
    %v1131 = vperm.slane %v1128, 1
    %v1132 = vperm.slane %v1128, 2
    %v1133 = vperm.slane %v1128, 3
    %v1134 = vperm.slane %v1128, 4
    %v1135 = vperm.slane %v1128, 5
    %v1136 = vperm.slane %v1128, 6
    %v1137 = vperm.slane %v1128, 7
    %v1658 = vunpack.c.l.b16 %v616
    %v1659 = vunpack.c.h.b16 %v616
    %v1660 = vunpack.c.l.b16 %v617
    %v1661 = vunpack.c.h.b16 %v617
    %v1662 = vunpack.c.l.b16 %v618
    %v1663 = vunpack.c.h.b16 %v618
    %v1664 = vunpack.c.l.b16 %v619
    %v1665 = vunpack.c.h.b16 %v619
    %v1666 = vunpack.c.l.b16 %v620
    %v1667 = vunpack.c.h.b16 %v620
    %v1668 = vunpack.c.l.b16 %v621
    %v1669 = vunpack.c.h.b16 %v621
    %v1670 = vunpack.c.l.b16 %v622
    %v1671 = vunpack.c.h.b16 %v622
    %v1672 = vunpack.c.l.b16 %v623
    %v1673 = vunpack.c.h.b16 %v623
    %v1674 = vunpack.c.l.b16 %v624
    %v1675 = vunpack.c.h.b16 %v624
    %v1676 = vunpack.c.l.b16 %v625
    %v1677 = vunpack.c.h.b16 %v625
    %v1678 = vunpack.c.l.b16 %v626
    %v1679 = vunpack.c.h.b16 %v626
    %v1680 = vunpack.c.l.b16 %v627
    %v1681 = vunpack.c.h.b16 %v627
    %v1682 = vunpack.c.l.b16 %v628
    %v1683 = vunpack.c.h.b16 %v628
    %v1684 = vunpack.c.l.b16 %v629
    %v1685 = vunpack.c.h.b16 %v629
    %v1686 = vunpack.c.l.b16 %v630
    %v1687 = vunpack.c.h.b16 %v630
    %v1688 = vunpack.c.l.b16 %v631
    %v1689 = vunpack.c.h.b16 %v631
    %v1690 = vunpack.c.l.b16 %v632
    %v1691 = vunpack.c.h.b16 %v632
    %v1692 = vunpack.c.l.b16 %v633
    %v1693 = vunpack.c.h.b16 %v633
    %v1694 = vunpack.c.l.b16 %v634
    %v1695 = vunpack.c.h.b16 %v634
    %v1696 = vunpack.c.l.b16 %v635
    %v1697 = vunpack.c.h.b16 %v635
    %v1698 = vunpack.c.l.b16 %v636
    %v1699 = vunpack.c.h.b16 %v636
    %v1700 = vunpack.c.l.b16 %v637
    %v1701 = vunpack.c.h.b16 %v637
    %v1702 = vunpack.c.l.b16 %v638
    %v1703 = vunpack.c.h.b16 %v638
    %v1704 = vunpack.c.l.b16 %v639
    %v1705 = vunpack.c.h.b16 %v639
    %v1706 = vunpack.c.l.b16 %v640
    %v1707 = vunpack.c.h.b16 %v640
    %v1708 = vunpack.c.l.b16 %v641
    %v1709 = vunpack.c.h.b16 %v641
    %v1710 = vunpack.c.l.b16 %v642
    %v1711 = vunpack.c.h.b16 %v642
    %v1712 = vunpack.c.l.b16 %v643
    %v1713 = vunpack.c.h.b16 %v643
    %v1714 = vunpack.c.l.b16 %v644
    %v1715 = vunpack.c.h.b16 %v644
    %v1716 = vunpack.c.l.b16 %v645
    %v1717 = vunpack.c.h.b16 %v645
    %v1718 = vunpack.c.l.b16 %v646
    %v1719 = vunpack.c.h.b16 %v646
    %v1720 = vunpack.c.l.b16 %v647
    %v1721 = vunpack.c.h.b16 %v647
    %v1722 = vunpack.c.l.b16 %v648
    %v1723 = vunpack.c.h.b16 %v648
    %v1724 = vunpack.c.l.b16 %v649
    %v1725 = vunpack.c.h.b16 %v649
    %v1726 = vunpack.c.l.b16 %v650
    %v1727 = vunpack.c.h.b16 %v650
    %v1728 = vunpack.c.l.b16 %v651
    %v1729 = vunpack.c.h.b16 %v651
    %v1730 = vunpack.c.l.b16 %v652
    %v1731 = vunpack.c.h.b16 %v652
    %v1732 = vunpack.c.l.b16 %v653
    %v1733 = vunpack.c.h.b16 %v653
    %v1734 = vunpack.c.l.b16 %v654
    %v1735 = vunpack.c.h.b16 %v654
    %v1736 = vunpack.c.l.b16 %v655
    %v1737 = vunpack.c.h.b16 %v655
    %v1738 = vunpack.c.l.b16 %v656
    %v1739 = vunpack.c.h.b16 %v656
    %v1740 = vunpack.c.l.b16 %v657
    %v1741 = vunpack.c.h.b16 %v657
    %v1742 = vunpack.c.l.b16 %v658
    %v1743 = vunpack.c.h.b16 %v658
    %v1744 = vunpack.c.l.b16 %v659
    %v1745 = vunpack.c.h.b16 %v659
    %v1746 = vunpack.c.l.b16 %v660
    %v1747 = vunpack.c.h.b16 %v660
    %v1748 = vunpack.c.l.b16 %v661
    %v1749 = vunpack.c.h.b16 %v661
    %v1750 = vunpack.c.l.b16 %v662
    %v1751 = vunpack.c.h.b16 %v662
    %v1752 = vunpack.c.l.b16 %v663
    %v1753 = vunpack.c.h.b16 %v663
    %v1754 = vunpack.c.l.b16 %v664
    %v1755 = vunpack.c.h.b16 %v664
    %v1756 = vunpack.c.l.b16 %v665
    %v1757 = vunpack.c.h.b16 %v665
    %v1758 = vunpack.c.l.b16 %v666
    %v1759 = vunpack.c.h.b16 %v666
    %v1760 = vunpack.c.l.b16 %v667
    %v1761 = vunpack.c.h.b16 %v667
    %v1762 = vunpack.c.l.b16 %v668
    %v1763 = vunpack.c.h.b16 %v668
    %v1764 = vunpack.c.l.b16 %v669
    %v1765 = vunpack.c.h.b16 %v669
    %v1766 = vunpack.c.l.b16 %v670
    %v1767 = vunpack.c.h.b16 %v670
    %v1768 = vunpack.c.l.b16 %v671
    %v1769 = vunpack.c.h.b16 %v671
    %v1770 = vunpack.c.l.b16 %v672
    %v1771 = vunpack.c.h.b16 %v672
    %v1772 = vunpack.c.l.b16 %v673
    %v1773 = vunpack.c.h.b16 %v673
    %v1774 = vunpack.c.l.b16 %v674
    %v1775 = vunpack.c.h.b16 %v674
    %v1776 = vunpack.c.l.b16 %v675
    %v1777 = vunpack.c.h.b16 %v675
    %v1778 = vunpack.c.l.b16 %v676
    %v1779 = vunpack.c.h.b16 %v676
    %v1780 = vunpack.c.l.b16 %v677
    %v1781 = vunpack.c.h.b16 %v677
    %v1782 = vunpack.c.l.b16 %v678
    %v1783 = vunpack.c.h.b16 %v678
    %v1784 = vunpack.c.l.b16 %v679
    %v1785 = vunpack.c.h.b16 %v679
    %v1786 = vunpack.c.l.b16 %v680
    %v1787 = vunpack.c.h.b16 %v680
    %v1788 = vunpack.c.l.b16 %v681
    %v1789 = vunpack.c.h.b16 %v681
    %v1790 = vunpack.c.l.b16 %v682
    %v1791 = vunpack.c.h.b16 %v682
    %v1792 = vunpack.c.l.b16 %v683
    %v1793 = vunpack.c.h.b16 %v683
    %v1794 = vunpack.c.l.b16 %v684
    %v1795 = vunpack.c.h.b16 %v684
    %v1796 = vunpack.c.l.b16 %v685
    %v1797 = vunpack.c.h.b16 %v685
    %v1798 = vunpack.c.l.b16 %v686
    %v1799 = vunpack.c.h.b16 %v686
    %v1800 = vunpack.c.l.b16 %v687
    %v1801 = vunpack.c.h.b16 %v687
    %v1802 = vunpack.c.l.b16 %v688
    %v1803 = vunpack.c.h.b16 %v688
    %v1804 = vunpack.c.l.b16 %v689
    %v1805 = vunpack.c.h.b16 %v689
    %v1806 = vunpack.c.l.b16 %v690
    %v1807 = vunpack.c.h.b16 %v690
    %v1808 = vunpack.c.l.b16 %v691
    %v1809 = vunpack.c.h.b16 %v691
    %v1810 = vunpack.c.l.b16 %v692
    %v1811 = vunpack.c.h.b16 %v692
    %v1812 = vunpack.c.l.b16 %v693
    %v1813 = vunpack.c.h.b16 %v693
    %v1814 = vunpack.c.l.b16 %v694
    %v1815 = vunpack.c.h.b16 %v694
    %v1816 = vunpack.c.l.b16 %v695
    %v1817 = vunpack.c.h.b16 %v695
    %v1818 = vunpack.c.l.b16 %v696
    %v1819 = vunpack.c.h.b16 %v696
    %v1820 = vunpack.c.l.b16 %v697
    %v1821 = vunpack.c.h.b16 %v697
    %v1822 = vunpack.c.l.b16 %v698
    %v1823 = vunpack.c.h.b16 %v698
    %v1824 = vunpack.c.l.b16 %v699
    %v1825 = vunpack.c.h.b16 %v699
    %v1826 = vunpack.c.l.b16 %v700
    %v1827 = vunpack.c.h.b16 %v700
    %v1828 = vunpack.c.l.b16 %v701
    %v1829 = vunpack.c.h.b16 %v701
    %v1830 = vunpack.c.l.b16 %v702
    %v1831 = vunpack.c.h.b16 %v702
    %v1832 = vunpack.c.l.b16 %v703
    %v1833 = vunpack.c.h.b16 %v703
    %v1834 = vunpack.c.l.b16 %v704
    %v1835 = vunpack.c.h.b16 %v704
    %v1836 = vunpack.c.l.b16 %v705
    %v1837 = vunpack.c.h.b16 %v705
    %v1838 = vunpack.c.l.b16 %v706
    %v1839 = vunpack.c.h.b16 %v706
    %v1840 = vunpack.c.l.b16 %v707
    %v1841 = vunpack.c.h.b16 %v707
    %v1842 = vunpack.c.l.b16 %v708
    %v1843 = vunpack.c.h.b16 %v708
    %v1844 = vunpack.c.l.b16 %v709
    %v1845 = vunpack.c.h.b16 %v709
    %v1846 = vunpack.c.l.b16 %v710
    %v1847 = vunpack.c.h.b16 %v710
    %v1848 = vunpack.c.l.b16 %v711
    %v1849 = vunpack.c.h.b16 %v711
    %v1850 = vunpack.c.l.b16 %v712
    %v1851 = vunpack.c.h.b16 %v712
    %v1852 = vunpack.c.l.b16 %v713
    %v1853 = vunpack.c.h.b16 %v713
    %v1854 = vunpack.c.l.b16 %v714
    %v1855 = vunpack.c.h.b16 %v714
    %v1856 = vunpack.c.l.b16 %v715
    %v1857 = vunpack.c.h.b16 %v715
    %v1858 = vunpack.c.l.b16 %v716
    %v1859 = vunpack.c.h.b16 %v716
    %v1860 = vunpack.c.l.b16 %v717
    %v1861 = vunpack.c.h.b16 %v717
    %v1862 = vunpack.c.l.b16 %v718
    %v1863 = vunpack.c.h.b16 %v718
    %v1864 = vunpack.c.l.b16 %v719
    %v1865 = vunpack.c.h.b16 %v719
    %v1866 = vunpack.c.l.b16 %v720
    %v1867 = vunpack.c.h.b16 %v720
    %v1868 = vunpack.c.l.b16 %v721
    %v1869 = vunpack.c.h.b16 %v721
    %v1870 = vunpack.c.l.b16 %v722
    %v1871 = vunpack.c.h.b16 %v722
    %v1872 = vunpack.c.l.b16 %v723
    %v1873 = vunpack.c.h.b16 %v723
    %v1874 = vunpack.c.l.b16 %v724
    %v1875 = vunpack.c.h.b16 %v724
    %v1876 = vunpack.c.l.b16 %v725
    %v1877 = vunpack.c.h.b16 %v725
    %v1878 = vunpack.c.l.b16 %v726
    %v1879 = vunpack.c.h.b16 %v726
    %v1880 = vunpack.c.l.b16 %v727
    %v1881 = vunpack.c.h.b16 %v727
    %v1882 = vunpack.c.l.b16 %v728
    %v1883 = vunpack.c.h.b16 %v728
    %v1884 = vunpack.c.l.b16 %v729
    %v1885 = vunpack.c.h.b16 %v729
    %v1886 = vunpack.c.l.b16 %v730
    %v1887 = vunpack.c.h.b16 %v730
    %v1888 = vunpack.c.l.b16 %v731
    %v1889 = vunpack.c.h.b16 %v731
    %v1890 = vunpack.c.l.b16 %v732
    %v1891 = vunpack.c.h.b16 %v732
    %v1892 = vunpack.c.l.b16 %v733
    %v1893 = vunpack.c.h.b16 %v733
    %v1894 = vunpack.c.l.b16 %v734
    %v1895 = vunpack.c.h.b16 %v734
    %v1896 = vunpack.c.l.b16 %v735
    %v1897 = vunpack.c.h.b16 %v735
    %v1898 = vunpack.c.l.b16 %v736
    %v1899 = vunpack.c.h.b16 %v736
    %v1900 = vunpack.c.l.b16 %v737
    %v1901 = vunpack.c.h.b16 %v737
    %v1902 = vunpack.c.l.b16 %v738
    %v1903 = vunpack.c.h.b16 %v738
    %v1904 = vunpack.c.l.b16 %v739
    %v1905 = vunpack.c.h.b16 %v739
    %v1906 = vunpack.c.l.b16 %v740
    %v1907 = vunpack.c.h.b16 %v740
    %v1908 = vunpack.c.l.b16 %v741
    %v1909 = vunpack.c.h.b16 %v741
    %v1910 = vunpack.c.l.b16 %v742
    %v1911 = vunpack.c.h.b16 %v742
    %v1912 = vunpack.c.l.b16 %v743
    %v1913 = vunpack.c.h.b16 %v743
    %v1914 = vunpack.c.l.b16 %v744
    %v1915 = vunpack.c.h.b16 %v744
    %v1916 = vunpack.c.l.b16 %v745
    %v1917 = vunpack.c.h.b16 %v745
    %v1918 = vunpack.c.l.b16 %v746
    %v1919 = vunpack.c.h.b16 %v746
    %v1920 = vunpack.c.l.b16 %v747
    %v1921 = vunpack.c.h.b16 %v747
    %v1922 = vunpack.c.l.b16 %v748
    %v1923 = vunpack.c.h.b16 %v748
    %v1924 = vunpack.c.l.b16 %v749
    %v1925 = vunpack.c.h.b16 %v749
    %v1926 = vunpack.c.l.b16 %v750
    %v1927 = vunpack.c.h.b16 %v750
    %v1928 = vunpack.c.l.b16 %v751
    %v1929 = vunpack.c.h.b16 %v751
    %v1930 = vunpack.c.l.b16 %v752
    %v1931 = vunpack.c.h.b16 %v752
    %v1932 = vunpack.c.l.b16 %v753
    %v1933 = vunpack.c.h.b16 %v753
    %v1934 = vunpack.c.l.b16 %v754
    %v1935 = vunpack.c.h.b16 %v754
    %v1936 = vunpack.c.l.b16 %v755
    %v1937 = vunpack.c.h.b16 %v755
    %v1938 = vunpack.c.l.b16 %v756
    %v1939 = vunpack.c.h.b16 %v756
    %v1940 = vunpack.c.l.b16 %v757
    %v1941 = vunpack.c.h.b16 %v757
    %v1942 = vunpack.c.l.b16 %v758
    %v1943 = vunpack.c.h.b16 %v758
    %v1944 = vunpack.c.l.b16 %v759
    %v1945 = vunpack.c.h.b16 %v759
    %v1946 = vunpack.c.l.b16 %v760
    %v1947 = vunpack.c.h.b16 %v760
    %v1948 = vunpack.c.l.b16 %v761
    %v1949 = vunpack.c.h.b16 %v761
    %v1950 = vunpack.c.l.b16 %v762
    %v1951 = vunpack.c.h.b16 %v762
    %v1952 = vunpack.c.l.b16 %v763
    %v1953 = vunpack.c.h.b16 %v763
    %v1954 = vunpack.c.l.b16 %v764
    %v1955 = vunpack.c.h.b16 %v764
    %v1956 = vunpack.c.l.b16 %v765
    %v1957 = vunpack.c.h.b16 %v765
    %v1958 = vunpack.c.l.b16 %v766
    %v1959 = vunpack.c.h.b16 %v766
    %v1960 = vunpack.c.l.b16 %v767
    %v1961 = vunpack.c.h.b16 %v767
    %v1962 = vunpack.c.l.b16 %v768
    %v1963 = vunpack.c.h.b16 %v768
    %v1964 = vunpack.c.l.b16 %v769
    %v1965 = vunpack.c.h.b16 %v769
    %v1966 = vunpack.c.l.b16 %v770
    %v1967 = vunpack.c.h.b16 %v770
    %v1968 = vunpack.c.l.b16 %v771
    %v1969 = vunpack.c.h.b16 %v771
    %v1970 = vunpack.c.l.b16 %v772
    %v1971 = vunpack.c.h.b16 %v772
    %v1972 = vunpack.c.l.b16 %v773
    %v1973 = vunpack.c.h.b16 %v773
    %v1974 = vunpack.c.l.b16 %v774
    %v1975 = vunpack.c.h.b16 %v774
    %v1976 = vunpack.c.l.b16 %v775
    %v1977 = vunpack.c.h.b16 %v775
    %v1978 = vunpack.c.l.b16 %v776
    %v1979 = vunpack.c.h.b16 %v776
    %v1980 = vunpack.c.l.b16 %v777
    %v1981 = vunpack.c.h.b16 %v777
    %v1982 = vunpack.c.l.b16 %v778
    %v1983 = vunpack.c.h.b16 %v778
    %v1984 = vunpack.c.l.b16 %v779
    %v1985 = vunpack.c.h.b16 %v779
    %v1986 = vunpack.c.l.b16 %v780
    %v1987 = vunpack.c.h.b16 %v780
    %v1988 = vunpack.c.l.b16 %v781
    %v1989 = vunpack.c.h.b16 %v781
    %v1990 = vunpack.c.l.b16 %v782
    %v1991 = vunpack.c.h.b16 %v782
    %v1992 = vunpack.c.l.b16 %v783
    %v1993 = vunpack.c.h.b16 %v783
    %v1994 = vunpack.c.l.b16 %v784
    %v1995 = vunpack.c.h.b16 %v784
    %v1996 = vunpack.c.l.b16 %v785
    %v1997 = vunpack.c.h.b16 %v785
    %v1998 = vunpack.c.l.b16 %v786
    %v1999 = vunpack.c.h.b16 %v786
    %v2000 = vunpack.c.l.b16 %v787
    %v2001 = vunpack.c.h.b16 %v787
    %v2002 = vunpack.c.l.b16 %v788
    %v2003 = vunpack.c.h.b16 %v788
    %v2004 = vunpack.c.l.b16 %v789
    %v2005 = vunpack.c.h.b16 %v789
    %v2006 = vunpack.c.l.b16 %v790
    %v2007 = vunpack.c.h.b16 %v790
    %v2008 = vunpack.c.l.b16 %v791
    %v2009 = vunpack.c.h.b16 %v791
    %v2010 = vunpack.c.l.b16 %v792
    %v2011 = vunpack.c.h.b16 %v792
    %v2012 = vunpack.c.l.b16 %v793
    %v2013 = vunpack.c.h.b16 %v793
    %v2014 = vunpack.c.l.b16 %v794
    %v2015 = vunpack.c.h.b16 %v794
    %v2016 = vunpack.c.l.b16 %v795
    %v2017 = vunpack.c.h.b16 %v795
    %v2018 = vunpack.c.l.b16 %v796
    %v2019 = vunpack.c.h.b16 %v796
    %v2020 = vunpack.c.l.b16 %v797
    %v2021 = vunpack.c.h.b16 %v797
    %v2022 = vunpack.c.l.b16 %v798
    %v2023 = vunpack.c.h.b16 %v798
    %v2024 = vunpack.c.l.b16 %v799
    %v2025 = vunpack.c.h.b16 %v799
    %v2026 = vunpack.c.l.b16 %v800
    %v2027 = vunpack.c.h.b16 %v800
    %v2028 = vunpack.c.l.b16 %v801
    %v2029 = vunpack.c.h.b16 %v801
    %v2030 = vunpack.c.l.b16 %v802
    %v2031 = vunpack.c.h.b16 %v802
    %v2032 = vunpack.c.l.b16 %v803
    %v2033 = vunpack.c.h.b16 %v803
    %v2034 = vunpack.c.l.b16 %v804
    %v2035 = vunpack.c.h.b16 %v804
    %v2036 = vunpack.c.l.b16 %v805
    %v2037 = vunpack.c.h.b16 %v805
    %v2038 = vunpack.c.l.b16 %v806
    %v2039 = vunpack.c.h.b16 %v806
    %v2040 = vunpack.c.l.b16 %v807
    %v2041 = vunpack.c.h.b16 %v807
    %v2042 = vunpack.c.l.b16 %v808
    %v2043 = vunpack.c.h.b16 %v808
    %v2044 = vunpack.c.l.b16 %v809
    %v2045 = vunpack.c.h.b16 %v809
    %v2046 = vunpack.c.l.b16 %v810
    %v2047 = vunpack.c.h.b16 %v810
    %v2048 = vunpack.c.l.b16 %v811
    %v2049 = vunpack.c.h.b16 %v811
    %v2050 = vunpack.c.l.b16 %v812
    %v2051 = vunpack.c.h.b16 %v812
    %v2052 = vunpack.c.l.b16 %v813
    %v2053 = vunpack.c.h.b16 %v813
    %v2054 = vunpack.c.l.b16 %v814
    %v2055 = vunpack.c.h.b16 %v814
    %v2056 = vunpack.c.l.b16 %v815
    %v2057 = vunpack.c.h.b16 %v815
    %v2058 = vunpack.c.l.b16 %v816
    %v2059 = vunpack.c.h.b16 %v816
    %v2060 = vunpack.c.l.b16 %v817
    %v2061 = vunpack.c.h.b16 %v817
    %v2062 = vunpack.c.l.b16 %v818
    %v2063 = vunpack.c.h.b16 %v818
    %v2064 = vunpack.c.l.b16 %v819
    %v2065 = vunpack.c.h.b16 %v819
    %v2066 = vunpack.c.l.b16 %v820
    %v2067 = vunpack.c.h.b16 %v820
    %v2068 = vunpack.c.l.b16 %v821
    %v2069 = vunpack.c.h.b16 %v821
    %v2070 = vunpack.c.l.b16 %v822
    %v2071 = vunpack.c.h.b16 %v822
    %v2072 = vunpack.c.l.b16 %v823
    %v2073 = vunpack.c.h.b16 %v823
    %v2074 = vunpack.c.l.b16 %v824
    %v2075 = vunpack.c.h.b16 %v824
    %v2076 = vunpack.c.l.b16 %v825
    %v2077 = vunpack.c.h.b16 %v825
    %v2078 = vunpack.c.l.b16 %v826
    %v2079 = vunpack.c.h.b16 %v826
    %v2080 = vunpack.c.l.b16 %v827
    %v2081 = vunpack.c.h.b16 %v827
    %v2082 = vunpack.c.l.b16 %v828
    %v2083 = vunpack.c.h.b16 %v828
    %v2084 = vunpack.c.l.b16 %v829
    %v2085 = vunpack.c.h.b16 %v829
    %v2086 = vunpack.c.l.b16 %v830
    %v2087 = vunpack.c.h.b16 %v830
    %v2088 = vunpack.c.l.b16 %v831
    %v2089 = vunpack.c.h.b16 %v831
    %v2090 = vunpack.c.l.b16 %v832
    %v2091 = vunpack.c.h.b16 %v832
    %v2092 = vunpack.c.l.b16 %v833
    %v2093 = vunpack.c.h.b16 %v833
    %v2094 = vunpack.c.l.b16 %v834
    %v2095 = vunpack.c.h.b16 %v834
    %v2096 = vunpack.c.l.b16 %v835
    %v2097 = vunpack.c.h.b16 %v835
    %v2098 = vunpack.c.l.b16 %v836
    %v2099 = vunpack.c.h.b16 %v836
    %v2100 = vunpack.c.l.b16 %v837
    %v2101 = vunpack.c.h.b16 %v837
    %v2102 = vunpack.c.l.b16 %v838
    %v2103 = vunpack.c.h.b16 %v838
    %v2104 = vunpack.c.l.b16 %v839
    %v2105 = vunpack.c.h.b16 %v839
    %v2106 = vunpack.c.l.b16 %v840
    %v2107 = vunpack.c.h.b16 %v840
    %v2108 = vunpack.c.l.b16 %v841
    %v2109 = vunpack.c.h.b16 %v841
    %v2110 = vunpack.c.l.b16 %v842
    %v2111 = vunpack.c.h.b16 %v842
    %v2112 = vunpack.c.l.b16 %v843
    %v2113 = vunpack.c.h.b16 %v843
    %v2114 = vunpack.c.l.b16 %v844
    %v2115 = vunpack.c.h.b16 %v844
    %v2116 = vunpack.c.l.b16 %v845
    %v2117 = vunpack.c.h.b16 %v845
    %v2118 = vunpack.c.l.b16 %v846
    %v2119 = vunpack.c.h.b16 %v846
    %v2120 = vunpack.c.l.b16 %v847
    %v2121 = vunpack.c.h.b16 %v847
    %v2122 = vunpack.c.l.b16 %v848
    %v2123 = vunpack.c.h.b16 %v848
    %v2124 = vunpack.c.l.b16 %v849
    %v2125 = vunpack.c.h.b16 %v849
    %v2126 = vunpack.c.l.b16 %v850
    %v2127 = vunpack.c.h.b16 %v850
    %v2128 = vunpack.c.l.b16 %v851
    %v2129 = vunpack.c.h.b16 %v851
    %v2130 = vunpack.c.l.b16 %v852
    %v2131 = vunpack.c.h.b16 %v852
    %v2132 = vunpack.c.l.b16 %v853
    %v2133 = vunpack.c.h.b16 %v853
    %v2134 = vunpack.c.l.b16 %v854
    %v2135 = vunpack.c.h.b16 %v854
    %v2136 = vunpack.c.l.b16 %v855
    %v2137 = vunpack.c.h.b16 %v855
    %v2138 = vunpack.c.l.b16 %v856
    %v2139 = vunpack.c.h.b16 %v856
    %v2140 = vunpack.c.l.b16 %v857
    %v2141 = vunpack.c.h.b16 %v857
    %v2142 = vunpack.c.l.b16 %v858
    %v2143 = vunpack.c.h.b16 %v858
    %v2144 = vunpack.c.l.b16 %v859
    %v2145 = vunpack.c.h.b16 %v859
    %v2146 = vunpack.c.l.b16 %v860
    %v2147 = vunpack.c.h.b16 %v860
    %v2148 = vunpack.c.l.b16 %v861
    %v2149 = vunpack.c.h.b16 %v861
    %v2150 = vunpack.c.l.b16 %v862
    %v2151 = vunpack.c.h.b16 %v862
    %v2152 = vunpack.c.l.b16 %v863
    %v2153 = vunpack.c.h.b16 %v863
    %v2154 = vunpack.c.l.b16 %v864
    %v2155 = vunpack.c.h.b16 %v864
    %v2156 = vunpack.c.l.b16 %v865
    %v2157 = vunpack.c.h.b16 %v865
    %v2158 = vunpack.c.l.b16 %v866
    %v2159 = vunpack.c.h.b16 %v866
    %v2160 = vunpack.c.l.b16 %v867
    %v2161 = vunpack.c.h.b16 %v867
    %v2162 = vunpack.c.l.b16 %v868
    %v2163 = vunpack.c.h.b16 %v868
    %v2164 = vunpack.c.l.b16 %v869
    %v2165 = vunpack.c.h.b16 %v869
    %v2166 = vunpack.c.l.b16 %v870
    %v2167 = vunpack.c.h.b16 %v870
    %v2168 = vunpack.c.l.b16 %v871
    %v2169 = vunpack.c.h.b16 %v871
    %v2170 = vunpack.c.l.b16 %v872
    %v2171 = vunpack.c.h.b16 %v872
    %v2172 = vunpack.c.l.b16 %v873
    %v2173 = vunpack.c.h.b16 %v873
    %v2174 = vunpack.c.l.b16 %v874
    %v2175 = vunpack.c.h.b16 %v874
    %v2176 = vunpack.c.l.b16 %v875
    %v2177 = vunpack.c.h.b16 %v875
    %v2178 = vunpack.c.l.b16 %v876
    %v2179 = vunpack.c.h.b16 %v876
    %v2180 = vunpack.c.l.b16 %v877
    %v2181 = vunpack.c.h.b16 %v877
    %v2182 = vunpack.c.l.b16 %v878
    %v2183 = vunpack.c.h.b16 %v878
    %v2184 = vunpack.c.l.b16 %v879
    %v2185 = vunpack.c.h.b16 %v879
    %v2186 = vunpack.c.l.b16 %v880
    %v2187 = vunpack.c.h.b16 %v880
    %v2188 = vunpack.c.l.b16 %v881
    %v2189 = vunpack.c.h.b16 %v881
    %v2190 = vunpack.c.l.b16 %v882
    %v2191 = vunpack.c.h.b16 %v882
    %v2192 = vunpack.c.l.b16 %v883
    %v2193 = vunpack.c.h.b16 %v883
    %v2194 = vunpack.c.l.b16 %v884
    %v2195 = vunpack.c.h.b16 %v884
    %v2196 = vunpack.c.l.b16 %v885
    %v2197 = vunpack.c.h.b16 %v885
    %v2198 = vunpack.c.l.b16 %v886
    %v2199 = vunpack.c.h.b16 %v886
    %v2200 = vunpack.c.l.b16 %v887
    %v2201 = vunpack.c.h.b16 %v887
    %v2202 = vunpack.c.l.b16 %v888
    %v2203 = vunpack.c.h.b16 %v888
    %v2204 = vunpack.c.l.b16 %v889
    %v2205 = vunpack.c.h.b16 %v889
    %v2206 = vunpack.c.l.b16 %v890
    %v2207 = vunpack.c.h.b16 %v890
    %v2208 = vunpack.c.l.b16 %v891
    %v2209 = vunpack.c.h.b16 %v891
    %v2210 = vunpack.c.l.b16 %v892
    %v2211 = vunpack.c.h.b16 %v892
    %v2212 = vunpack.c.l.b16 %v893
    %v2213 = vunpack.c.h.b16 %v893
    %v2214 = vunpack.c.l.b16 %v894
    %v2215 = vunpack.c.h.b16 %v894
    %v2216 = vunpack.c.l.b16 %v895
    %v2217 = vunpack.c.h.b16 %v895
    %v2218 = vunpack.c.l.b16 %v896
    %v2219 = vunpack.c.h.b16 %v896
    %v2220 = vunpack.c.l.b16 %v897
    %v2221 = vunpack.c.h.b16 %v897
    %v2222 = vunpack.c.l.b16 %v898
    %v2223 = vunpack.c.h.b16 %v898
    %v2224 = vunpack.c.l.b16 %v899
    %v2225 = vunpack.c.h.b16 %v899
    %v2226 = vunpack.c.l.b16 %v900
    %v2227 = vunpack.c.h.b16 %v900
    %v2228 = vunpack.c.l.b16 %v901
    %v2229 = vunpack.c.h.b16 %v901
    %v2230 = vunpack.c.l.b16 %v902
    %v2231 = vunpack.c.h.b16 %v902
    %v2232 = vunpack.c.l.b16 %v903
    %v2233 = vunpack.c.h.b16 %v903
    %v2234 = vunpack.c.l.b16 %v904
    %v2235 = vunpack.c.h.b16 %v904
    %v2236 = vunpack.c.l.b16 %v905
    %v2237 = vunpack.c.h.b16 %v905
    %v2238 = vunpack.c.l.b16 %v906
    %v2239 = vunpack.c.h.b16 %v906
    %v2240 = vunpack.c.l.b16 %v907
    %v2241 = vunpack.c.h.b16 %v907
    %v2242 = vunpack.c.l.b16 %v908
    %v2243 = vunpack.c.h.b16 %v908
    %v2244 = vunpack.c.l.b16 %v909
    %v2245 = vunpack.c.h.b16 %v909
    %v2246 = vunpack.c.l.b16 %v910
    %v2247 = vunpack.c.h.b16 %v910
    %v2248 = vunpack.c.l.b16 %v911
    %v2249 = vunpack.c.h.b16 %v911
    %v2250 = vunpack.c.l.b16 %v912
    %v2251 = vunpack.c.h.b16 %v912
    %v2252 = vunpack.c.l.b16 %v913
    %v2253 = vunpack.c.h.b16 %v913
    %v2254 = vunpack.c.l.b16 %v914
    %v2255 = vunpack.c.h.b16 %v914
    %v2256 = vunpack.c.l.b16 %v915
    %v2257 = vunpack.c.h.b16 %v915
    %v2258 = vunpack.c.l.b16 %v916
    %v2259 = vunpack.c.h.b16 %v916
    %v2260 = vunpack.c.l.b16 %v917
    %v2261 = vunpack.c.h.b16 %v917
    %v2262 = vunpack.c.l.b16 %v918
    %v2263 = vunpack.c.h.b16 %v918
    %v2264 = vunpack.c.l.b16 %v919
    %v2265 = vunpack.c.h.b16 %v919
    %v2266 = vunpack.c.l.b16 %v920
    %v2267 = vunpack.c.h.b16 %v920
    %v2268 = vunpack.c.l.b16 %v921
    %v2269 = vunpack.c.h.b16 %v921
    %v2270 = vunpack.c.l.b16 %v922
    %v2271 = vunpack.c.h.b16 %v922
    %v2272 = vunpack.c.l.b16 %v923
    %v2273 = vunpack.c.h.b16 %v923
    %v2274 = vunpack.c.l.b16 %v924
    %v2275 = vunpack.c.h.b16 %v924
    %v2276 = vunpack.c.l.b16 %v925
    %v2277 = vunpack.c.h.b16 %v925
    %v2278 = vunpack.c.l.b16 %v926
    %v2279 = vunpack.c.h.b16 %v926
    %v2280 = vunpack.c.l.b16 %v927
    %v2281 = vunpack.c.h.b16 %v927
    %v2282 = vunpack.c.l.b16 %v928
    %v2283 = vunpack.c.h.b16 %v928
    %v2284 = vunpack.c.l.b16 %v929
    %v2285 = vunpack.c.h.b16 %v929
    %v2286 = vunpack.c.l.b16 %v930
    %v2287 = vunpack.c.h.b16 %v930
    %v2288 = vunpack.c.l.b16 %v931
    %v2289 = vunpack.c.h.b16 %v931
    %v2290 = vunpack.c.l.b16 %v932
    %v2291 = vunpack.c.h.b16 %v932
    %v2292 = vunpack.c.l.b16 %v933
    %v2293 = vunpack.c.h.b16 %v933
    %v2294 = vunpack.c.l.b16 %v934
    %v2295 = vunpack.c.h.b16 %v934
    %v2296 = vunpack.c.l.b16 %v935
    %v2297 = vunpack.c.h.b16 %v935
    %v2298 = vunpack.c.l.b16 %v936
    %v2299 = vunpack.c.h.b16 %v936
    %v2300 = vunpack.c.l.b16 %v937
    %v2301 = vunpack.c.h.b16 %v937
    %v2302 = vunpack.c.l.b16 %v938
    %v2303 = vunpack.c.h.b16 %v938
    %v2304 = vunpack.c.l.b16 %v939
    %v2305 = vunpack.c.h.b16 %v939
    %v2306 = vunpack.c.l.b16 %v940
    %v2307 = vunpack.c.h.b16 %v940
    %v2308 = vunpack.c.l.b16 %v941
    %v2309 = vunpack.c.h.b16 %v941
    %v2310 = vunpack.c.l.b16 %v942
    %v2311 = vunpack.c.h.b16 %v942
    %v2312 = vunpack.c.l.b16 %v943
    %v2313 = vunpack.c.h.b16 %v943
    %v2314 = vunpack.c.l.b16 %v944
    %v2315 = vunpack.c.h.b16 %v944
    %v2316 = vunpack.c.l.b16 %v945
    %v2317 = vunpack.c.h.b16 %v945
    %v2318 = vunpack.c.l.b16 %v946
    %v2319 = vunpack.c.h.b16 %v946
    %v2320 = vunpack.c.l.b16 %v947
    %v2321 = vunpack.c.h.b16 %v947
    %v2322 = vunpack.c.l.b16 %v948
    %v2323 = vunpack.c.h.b16 %v948
    %v2324 = vunpack.c.l.b16 %v949
    %v2325 = vunpack.c.h.b16 %v949
    %v2326 = vunpack.c.l.b16 %v950
    %v2327 = vunpack.c.h.b16 %v950
    %v2328 = vunpack.c.l.b16 %v951
    %v2329 = vunpack.c.h.b16 %v951
    %v2330 = vunpack.c.l.b16 %v952
    %v2331 = vunpack.c.h.b16 %v952
    %v2332 = vunpack.c.l.b16 %v953
    %v2333 = vunpack.c.h.b16 %v953
    %v2334 = vunpack.c.l.b16 %v954
    %v2335 = vunpack.c.h.b16 %v954
    %v2336 = vunpack.c.l.b16 %v955
    %v2337 = vunpack.c.h.b16 %v955
    %v2338 = vunpack.c.l.b16 %v956
    %v2339 = vunpack.c.h.b16 %v956
    %v2340 = vunpack.c.l.b16 %v957
    %v2341 = vunpack.c.h.b16 %v957
    %v2342 = vunpack.c.l.b16 %v958
    %v2343 = vunpack.c.h.b16 %v958
    %v2344 = vunpack.c.l.b16 %v959
    %v2345 = vunpack.c.h.b16 %v959
    %v2346 = vunpack.c.l.b16 %v960
    %v2347 = vunpack.c.h.b16 %v960
    %v2348 = vunpack.c.l.b16 %v961
    %v2349 = vunpack.c.h.b16 %v961
    %v2350 = vunpack.c.l.b16 %v962
    %v2351 = vunpack.c.h.b16 %v962
    %v2352 = vunpack.c.l.b16 %v963
    %v2353 = vunpack.c.h.b16 %v963
    %v2354 = vunpack.c.l.b16 %v964
    %v2355 = vunpack.c.h.b16 %v964
    %v2356 = vunpack.c.l.b16 %v965
    %v2357 = vunpack.c.h.b16 %v965
    %v2358 = vunpack.c.l.b16 %v966
    %v2359 = vunpack.c.h.b16 %v966
    %v2360 = vunpack.c.l.b16 %v967
    %v2361 = vunpack.c.h.b16 %v967
    %v2362 = vunpack.c.l.b16 %v968
    %v2363 = vunpack.c.h.b16 %v968
    %v2364 = vunpack.c.l.b16 %v969
    %v2365 = vunpack.c.h.b16 %v969
    %v2366 = vunpack.c.l.b16 %v970
    %v2367 = vunpack.c.h.b16 %v970
    %v2368 = vunpack.c.l.b16 %v971
    %v2369 = vunpack.c.h.b16 %v971
    %v2370 = vunpack.c.l.b16 %v972
    %v2371 = vunpack.c.h.b16 %v972
    %v2372 = vunpack.c.l.b16 %v973
    %v2373 = vunpack.c.h.b16 %v973
    %v2374 = vunpack.c.l.b16 %v974
    %v2375 = vunpack.c.h.b16 %v974
    %v2376 = vunpack.c.l.b16 %v975
    %v2377 = vunpack.c.h.b16 %v975
    %v2378 = vunpack.c.l.b16 %v976
    %v2379 = vunpack.c.h.b16 %v976
    %v2380 = vunpack.c.l.b16 %v977
    %v2381 = vunpack.c.h.b16 %v977
    %v2382 = vunpack.c.l.b16 %v978
    %v2383 = vunpack.c.h.b16 %v978
    %v2384 = vunpack.c.l.b16 %v979
    %v2385 = vunpack.c.h.b16 %v979
    %v2386 = vunpack.c.l.b16 %v980
    %v2387 = vunpack.c.h.b16 %v980
    %v2388 = vunpack.c.l.b16 %v981
    %v2389 = vunpack.c.h.b16 %v981
    %v2390 = vunpack.c.l.b16 %v982
    %v2391 = vunpack.c.h.b16 %v982
    %v2392 = vunpack.c.l.b16 %v983
    %v2393 = vunpack.c.h.b16 %v983
    %v2394 = vunpack.c.l.b16 %v984
    %v2395 = vunpack.c.h.b16 %v984
    %v2396 = vunpack.c.l.b16 %v985
    %v2397 = vunpack.c.h.b16 %v985
    %v2398 = vunpack.c.l.b16 %v986
    %v2399 = vunpack.c.h.b16 %v986
    %v2400 = vunpack.c.l.b16 %v987
    %v2401 = vunpack.c.h.b16 %v987
    %v2402 = vunpack.c.l.b16 %v988
    %v2403 = vunpack.c.h.b16 %v988
    %v2404 = vunpack.c.l.b16 %v989
    %v2405 = vunpack.c.h.b16 %v989
    %v2406 = vunpack.c.l.b16 %v990
    %v2407 = vunpack.c.h.b16 %v990
    %v2408 = vunpack.c.l.b16 %v991
    %v2409 = vunpack.c.h.b16 %v991
    %v2410 = vunpack.c.l.b16 %v992
    %v2411 = vunpack.c.h.b16 %v992
    %v2412 = vunpack.c.l.b16 %v993
    %v2413 = vunpack.c.h.b16 %v993
    %v2414 = vunpack.c.l.b16 %v994
    %v2415 = vunpack.c.h.b16 %v994
    %v2416 = vunpack.c.l.b16 %v995
    %v2417 = vunpack.c.h.b16 %v995
    %v2418 = vunpack.c.l.b16 %v996
    %v2419 = vunpack.c.h.b16 %v996
    %v2420 = vunpack.c.l.b16 %v997
    %v2421 = vunpack.c.h.b16 %v997
    %v2422 = vunpack.c.l.b16 %v998
    %v2423 = vunpack.c.h.b16 %v998
    %v2424 = vunpack.c.l.b16 %v999
    %v2425 = vunpack.c.h.b16 %v999
    %v2426 = vunpack.c.l.b16 %v1000
    %v2427 = vunpack.c.h.b16 %v1000
    %v2428 = vunpack.c.l.b16 %v1001
    %v2429 = vunpack.c.h.b16 %v1001
    %v2430 = vunpack.c.l.b16 %v1002
    %v2431 = vunpack.c.h.b16 %v1002
    %v2432 = vunpack.c.l.b16 %v1003
    %v2433 = vunpack.c.h.b16 %v1003
    %v2434 = vunpack.c.l.b16 %v1004
    %v2435 = vunpack.c.h.b16 %v1004
    %v2436 = vunpack.c.l.b16 %v1005
    %v2437 = vunpack.c.h.b16 %v1005
    %v2438 = vunpack.c.l.b16 %v1006
    %v2439 = vunpack.c.h.b16 %v1006
    %v2440 = vunpack.c.l.b16 %v1007
    %v2441 = vunpack.c.h.b16 %v1007
    %v2442 = vunpack.c.l.b16 %v1008
    %v2443 = vunpack.c.h.b16 %v1008
    %v2444 = vunpack.c.l.b16 %v1009
    %v2445 = vunpack.c.h.b16 %v1009
    %v2446 = vunpack.c.l.b16 %v1010
    %v2447 = vunpack.c.h.b16 %v1010
    %v2448 = vunpack.c.l.b16 %v1011
    %v2449 = vunpack.c.h.b16 %v1011
    %v2450 = vunpack.c.l.b16 %v1012
    %v2451 = vunpack.c.h.b16 %v1012
    %v2452 = vunpack.c.l.b16 %v1013
    %v2453 = vunpack.c.h.b16 %v1013
    %v2454 = vunpack.c.l.b16 %v1014
    %v2455 = vunpack.c.h.b16 %v1014
    %v2456 = vunpack.c.l.b16 %v1015
    %v2457 = vunpack.c.h.b16 %v1015
    %v2458 = vunpack.c.l.b16 %v1016
    %v2459 = vunpack.c.h.b16 %v1016
    %v2460 = vunpack.c.l.b16 %v1017
    %v2461 = vunpack.c.h.b16 %v1017
    %v2462 = vunpack.c.l.b16 %v1018
    %v2463 = vunpack.c.h.b16 %v1018
    %v2464 = vunpack.c.l.b16 %v1019
    %v2465 = vunpack.c.h.b16 %v1019
    %v2466 = vunpack.c.l.b16 %v1020
    %v2467 = vunpack.c.h.b16 %v1020
    %v2468 = vunpack.c.l.b16 %v1021
    %v2469 = vunpack.c.h.b16 %v1021
    %v2470 = vunpack.c.l.b16 %v1022
    %v2471 = vunpack.c.h.b16 %v1022
    %v2472 = vunpack.c.l.b16 %v1023
    %v2473 = vunpack.c.h.b16 %v1023
    %v2474 = vunpack.c.l.b16 %v1024
    %v2475 = vunpack.c.h.b16 %v1024
    %v2476 = vunpack.c.l.b16 %v1025
    %v2477 = vunpack.c.h.b16 %v1025
    %v2478 = vunpack.c.l.b16 %v1026
    %v2479 = vunpack.c.h.b16 %v1026
    %v2480 = vunpack.c.l.b16 %v1027
    %v2481 = vunpack.c.h.b16 %v1027
    %v2482 = vunpack.c.l.b16 %v1028
    %v2483 = vunpack.c.h.b16 %v1028
    %v2484 = vunpack.c.l.b16 %v1029
    %v2485 = vunpack.c.h.b16 %v1029
    %v2486 = vunpack.c.l.b16 %v1030
    %v2487 = vunpack.c.h.b16 %v1030
    %v2488 = vunpack.c.l.b16 %v1031
    %v2489 = vunpack.c.h.b16 %v1031
    %v2490 = vunpack.c.l.b16 %v1032
    %v2491 = vunpack.c.h.b16 %v1032
    %v2492 = vunpack.c.l.b16 %v1033
    %v2493 = vunpack.c.h.b16 %v1033
    %v2494 = vunpack.c.l.b16 %v1034
    %v2495 = vunpack.c.h.b16 %v1034
    %v2496 = vunpack.c.l.b16 %v1035
    %v2497 = vunpack.c.h.b16 %v1035
    %v2498 = vunpack.c.l.b16 %v1036
    %v2499 = vunpack.c.h.b16 %v1036
    %v2500 = vunpack.c.l.b16 %v1037
    %v2501 = vunpack.c.h.b16 %v1037
    %v2502 = vunpack.c.l.b16 %v1038
    %v2503 = vunpack.c.h.b16 %v1038
    %v2504 = vunpack.c.l.b16 %v1039
    %v2505 = vunpack.c.h.b16 %v1039
    %v2506 = vunpack.c.l.b16 %v1040
    %v2507 = vunpack.c.h.b16 %v1040
    %v2508 = vunpack.c.l.b16 %v1041
    %v2509 = vunpack.c.h.b16 %v1041
    %v2510 = vunpack.c.l.b16 %v1042
    %v2511 = vunpack.c.h.b16 %v1042
    %v2512 = vunpack.c.l.b16 %v1043
    %v2513 = vunpack.c.h.b16 %v1043
    %v2514 = vunpack.c.l.b16 %v1044
    %v2515 = vunpack.c.h.b16 %v1044
    %v2516 = vunpack.c.l.b16 %v1045
    %v2517 = vunpack.c.h.b16 %v1045
    %v2518 = vunpack.c.l.b16 %v1046
    %v2519 = vunpack.c.h.b16 %v1046
    %v2520 = vunpack.c.l.b16 %v1047
    %v2521 = vunpack.c.h.b16 %v1047
    %v2522 = vunpack.c.l.b16 %v1048
    %v2523 = vunpack.c.h.b16 %v1048
    %v2524 = vunpack.c.l.b16 %v1049
    %v2525 = vunpack.c.h.b16 %v1049
    %v2526 = vunpack.c.l.b16 %v1050
    %v2527 = vunpack.c.h.b16 %v1050
    %v2528 = vunpack.c.l.b16 %v1051
    %v2529 = vunpack.c.h.b16 %v1051
    %v2530 = vunpack.c.l.b16 %v1052
    %v2531 = vunpack.c.h.b16 %v1052
    %v2532 = vunpack.c.l.b16 %v1053
    %v2533 = vunpack.c.h.b16 %v1053
    %v2534 = vunpack.c.l.b16 %v1054
    %v2535 = vunpack.c.h.b16 %v1054
    %v2536 = vunpack.c.l.b16 %v1055
    %v2537 = vunpack.c.h.b16 %v1055
    %v2538 = vunpack.c.l.b16 %v1056
    %v2539 = vunpack.c.h.b16 %v1056
    %v2540 = vunpack.c.l.b16 %v1057
    %v2541 = vunpack.c.h.b16 %v1057
    %v2542 = vunpack.c.l.b16 %v1058
    %v2543 = vunpack.c.h.b16 %v1058
    %v2544 = vunpack.c.l.b16 %v1059
    %v2545 = vunpack.c.h.b16 %v1059
    %v2546 = vunpack.c.l.b16 %v1060
    %v2547 = vunpack.c.h.b16 %v1060
    %v2548 = vunpack.c.l.b16 %v1061
    %v2549 = vunpack.c.h.b16 %v1061
    %v2550 = vunpack.c.l.b16 %v1062
    %v2551 = vunpack.c.h.b16 %v1062
    %v2552 = vunpack.c.l.b16 %v1063
    %v2553 = vunpack.c.h.b16 %v1063
    %v2554 = vunpack.c.l.b16 %v1064
    %v2555 = vunpack.c.h.b16 %v1064
    %v2556 = vunpack.c.l.b16 %v1065
    %v2557 = vunpack.c.h.b16 %v1065
    %v2558 = vunpack.c.l.b16 %v1066
    %v2559 = vunpack.c.h.b16 %v1066
    %v2560 = vunpack.c.l.b16 %v1067
    %v2561 = vunpack.c.h.b16 %v1067
    %v2562 = vunpack.c.l.b16 %v1068
    %v2563 = vunpack.c.h.b16 %v1068
    %v2564 = vunpack.c.l.b16 %v1069
    %v2565 = vunpack.c.h.b16 %v1069
    %v2566 = vunpack.c.l.b16 %v1070
    %v2567 = vunpack.c.h.b16 %v1070
    %v2568 = vunpack.c.l.b16 %v1071
    %v2569 = vunpack.c.h.b16 %v1071
    %v2570 = vunpack.c.l.b16 %v1072
    %v2571 = vunpack.c.h.b16 %v1072
    %v2572 = vunpack.c.l.b16 %v1073
    %v2573 = vunpack.c.h.b16 %v1073
    %v2574 = vunpack.c.l.b16 %v1074
    %v2575 = vunpack.c.h.b16 %v1074
    %v2576 = vunpack.c.l.b16 %v1075
    %v2577 = vunpack.c.h.b16 %v1075
    %v2578 = vunpack.c.l.b16 %v1076
    %v2579 = vunpack.c.h.b16 %v1076
    %v2580 = vunpack.c.l.b16 %v1077
    %v2581 = vunpack.c.h.b16 %v1077
    %v2582 = vunpack.c.l.b16 %v1078
    %v2583 = vunpack.c.h.b16 %v1078
    %v2584 = vunpack.c.l.b16 %v1079
    %v2585 = vunpack.c.h.b16 %v1079
    %v2586 = vunpack.c.l.b16 %v1080
    %v2587 = vunpack.c.h.b16 %v1080
    %v2588 = vunpack.c.l.b16 %v1081
    %v2589 = vunpack.c.h.b16 %v1081
    %v2590 = vunpack.c.l.b16 %v1082
    %v2591 = vunpack.c.h.b16 %v1082
    %v2592 = vunpack.c.l.b16 %v1083
    %v2593 = vunpack.c.h.b16 %v1083
    %v2594 = vunpack.c.l.b16 %v1084
    %v2595 = vunpack.c.h.b16 %v1084
    %v2596 = vunpack.c.l.b16 %v1085
    %v2597 = vunpack.c.h.b16 %v1085
    %v2598 = vunpack.c.l.b16 %v1086
    %v2599 = vunpack.c.h.b16 %v1086
    %v2600 = vunpack.c.l.b16 %v1087
    %v2601 = vunpack.c.h.b16 %v1087
    %v2602 = vunpack.c.l.b16 %v1088
    %v2603 = vunpack.c.h.b16 %v1088
    %v2604 = vunpack.c.l.b16 %v1089
    %v2605 = vunpack.c.h.b16 %v1089
    %v2606 = vunpack.c.l.b16 %v1090
    %v2607 = vunpack.c.h.b16 %v1090
    %v2608 = vunpack.c.l.b16 %v1091
    %v2609 = vunpack.c.h.b16 %v1091
    %v2610 = vunpack.c.l.b16 %v1092
    %v2611 = vunpack.c.h.b16 %v1092
    %v2612 = vunpack.c.l.b16 %v1093
    %v2613 = vunpack.c.h.b16 %v1093
    %v2614 = vunpack.c.l.b16 %v1094
    %v2615 = vunpack.c.h.b16 %v1094
    %v2616 = vunpack.c.l.b16 %v1095
    %v2617 = vunpack.c.h.b16 %v1095
    %v2618 = vunpack.c.l.b16 %v1096
    %v2619 = vunpack.c.h.b16 %v1096
    %v2620 = vunpack.c.l.b16 %v1097
    %v2621 = vunpack.c.h.b16 %v1097
    %v2622 = vunpack.c.l.b16 %v1098
    %v2623 = vunpack.c.h.b16 %v1098
    %v2624 = vunpack.c.l.b16 %v1099
    %v2625 = vunpack.c.h.b16 %v1099
    %v2626 = vunpack.c.l.b16 %v1100
    %v2627 = vunpack.c.h.b16 %v1100
    %v2628 = vunpack.c.l.b16 %v1101
    %v2629 = vunpack.c.h.b16 %v1101
    %v2630 = vunpack.c.l.b16 %v1102
    %v2631 = vunpack.c.h.b16 %v1102
    %v2632 = vunpack.c.l.b16 %v1103
    %v2633 = vunpack.c.h.b16 %v1103
    %v2634 = vunpack.c.l.b16 %v1104
    %v2635 = vunpack.c.h.b16 %v1104
    %v2636 = vunpack.c.l.b16 %v1105
    %v2637 = vunpack.c.h.b16 %v1105
    %v2638 = vunpack.c.l.b16 %v1106
    %v2639 = vunpack.c.h.b16 %v1106
    %v2640 = vunpack.c.l.b16 %v1107
    %v2641 = vunpack.c.h.b16 %v1107
    %v2642 = vunpack.c.l.b16 %v1108
    %v2643 = vunpack.c.h.b16 %v1108
    %v2644 = vunpack.c.l.b16 %v1109
    %v2645 = vunpack.c.h.b16 %v1109
    %v2646 = vunpack.c.l.b16 %v1110
    %v2647 = vunpack.c.h.b16 %v1110
    %v2648 = vunpack.c.l.b16 %v1111
    %v2649 = vunpack.c.h.b16 %v1111
    %v2650 = vunpack.c.l.b16 %v1112
    %v2651 = vunpack.c.h.b16 %v1112
    %v2652 = vunpack.c.l.b16 %v1113
    %v2653 = vunpack.c.h.b16 %v1113
    %v2654 = vunpack.c.l.b16 %v1114
    %v2655 = vunpack.c.h.b16 %v1114
    %v2656 = vunpack.c.l.b16 %v1115
    %v2657 = vunpack.c.h.b16 %v1115
    %v2658 = vunpack.c.l.b16 %v1116
    %v2659 = vunpack.c.h.b16 %v1116
    %v2660 = vunpack.c.l.b16 %v1117
    %v2661 = vunpack.c.h.b16 %v1117
    %v2662 = vunpack.c.l.b16 %v1118
    %v2663 = vunpack.c.h.b16 %v1118
    %v2664 = vunpack.c.l.b16 %v1119
    %v2665 = vunpack.c.h.b16 %v1119
    %v2666 = vunpack.c.l.b16 %v1120
    %v2667 = vunpack.c.h.b16 %v1120
    %v2668 = vunpack.c.l.b16 %v1121
    %v2669 = vunpack.c.h.b16 %v1121
    %v2670 = vunpack.c.l.b16 %v1122
    %v2671 = vunpack.c.h.b16 %v1122
    %v2672 = vunpack.c.l.b16 %v1123
    %v2673 = vunpack.c.h.b16 %v1123
    %v2674 = vunpack.c.l.b16 %v1124
    %v2675 = vunpack.c.h.b16 %v1124
    %v2676 = vunpack.c.l.b16 %v1125
    %v2677 = vunpack.c.h.b16 %v1125
    %v2678 = vunpack.c.l.b16 %v1126
    %v2679 = vunpack.c.h.b16 %v1126
    %v2680 = vunpack.c.l.b16 %v1127
    %v2681 = vunpack.c.h.b16 %v1127
    %v2682 = vpack.c.b16 %v1666, %v1658
    %v2683 = vpack.c.b16 %v1667, %v1659
    %v2684 = vpack.c.b16 %v1668, %v1660
    %v2685 = vpack.c.b16 %v1669, %v1661
    %v2686 = vpack.c.b16 %v1670, %v1662
    %v2687 = vpack.c.b16 %v1671, %v1663
    %v2688 = vpack.c.b16 %v1672, %v1664
    %v2689 = vpack.c.b16 %v1673, %v1665
    %v2690 = vpack.c.b16 %v1682, %v1674
    %v2691 = vpack.c.b16 %v1683, %v1675
    %v2692 = vpack.c.b16 %v1684, %v1676
    %v2693 = vpack.c.b16 %v1685, %v1677
    %v2694 = vpack.c.b16 %v1686, %v1678
    %v2695 = vpack.c.b16 %v1687, %v1679
    %v2696 = vpack.c.b16 %v1688, %v1680
    %v2697 = vpack.c.b16 %v1689, %v1681
    %v2698 = vpack.c.b16 %v1698, %v1690
    %v2699 = vpack.c.b16 %v1699, %v1691
    %v2700 = vpack.c.b16 %v1700, %v1692
    %v2701 = vpack.c.b16 %v1701, %v1693
    %v2702 = vpack.c.b16 %v1702, %v1694
    %v2703 = vpack.c.b16 %v1703, %v1695
    %v2704 = vpack.c.b16 %v1704, %v1696
    %v2705 = vpack.c.b16 %v1705, %v1697
    %v2706 = vpack.c.b16 %v1714, %v1706
    %v2707 = vpack.c.b16 %v1715, %v1707
    %v2708 = vpack.c.b16 %v1716, %v1708
    %v2709 = vpack.c.b16 %v1717, %v1709
    %v2710 = vpack.c.b16 %v1718, %v1710
    %v2711 = vpack.c.b16 %v1719, %v1711
    %v2712 = vpack.c.b16 %v1720, %v1712
    %v2713 = vpack.c.b16 %v1721, %v1713
    %v2714 = vpack.c.b16 %v1730, %v1722
    %v2715 = vpack.c.b16 %v1731, %v1723
    %v2716 = vpack.c.b16 %v1732, %v1724
    %v2717 = vpack.c.b16 %v1733, %v1725
    %v2718 = vpack.c.b16 %v1734, %v1726
    %v2719 = vpack.c.b16 %v1735, %v1727
    %v2720 = vpack.c.b16 %v1736, %v1728
    %v2721 = vpack.c.b16 %v1737, %v1729
    %v2722 = vpack.c.b16 %v1746, %v1738
    %v2723 = vpack.c.b16 %v1747, %v1739
    %v2724 = vpack.c.b16 %v1748, %v1740
    %v2725 = vpack.c.b16 %v1749, %v1741
    %v2726 = vpack.c.b16 %v1750, %v1742
    %v2727 = vpack.c.b16 %v1751, %v1743
    %v2728 = vpack.c.b16 %v1752, %v1744
    %v2729 = vpack.c.b16 %v1753, %v1745
    %v2730 = vpack.c.b16 %v1762, %v1754
    %v2731 = vpack.c.b16 %v1763, %v1755
    %v2732 = vpack.c.b16 %v1764, %v1756
    %v2733 = vpack.c.b16 %v1765, %v1757
    %v2734 = vpack.c.b16 %v1766, %v1758
    %v2735 = vpack.c.b16 %v1767, %v1759
    %v2736 = vpack.c.b16 %v1768, %v1760
    %v2737 = vpack.c.b16 %v1769, %v1761
    %v2738 = vpack.c.b16 %v1778, %v1770
    %v2739 = vpack.c.b16 %v1779, %v1771
    %v2740 = vpack.c.b16 %v1780, %v1772
    %v2741 = vpack.c.b16 %v1781, %v1773
    %v2742 = vpack.c.b16 %v1782, %v1774
    %v2743 = vpack.c.b16 %v1783, %v1775
    %v2744 = vpack.c.b16 %v1784, %v1776
    %v2745 = vpack.c.b16 %v1785, %v1777
    %v2746 = vpack.c.b16 %v1794, %v1786
    %v2747 = vpack.c.b16 %v1795, %v1787
    %v2748 = vpack.c.b16 %v1796, %v1788
    %v2749 = vpack.c.b16 %v1797, %v1789
    %v2750 = vpack.c.b16 %v1798, %v1790
    %v2751 = vpack.c.b16 %v1799, %v1791
    %v2752 = vpack.c.b16 %v1800, %v1792
    %v2753 = vpack.c.b16 %v1801, %v1793
    %v2754 = vpack.c.b16 %v1810, %v1802
    %v2755 = vpack.c.b16 %v1811, %v1803
    %v2756 = vpack.c.b16 %v1812, %v1804
    %v2757 = vpack.c.b16 %v1813, %v1805
    %v2758 = vpack.c.b16 %v1814, %v1806
    %v2759 = vpack.c.b16 %v1815, %v1807
    %v2760 = vpack.c.b16 %v1816, %v1808
    %v2761 = vpack.c.b16 %v1817, %v1809
    %v2762 = vpack.c.b16 %v1826, %v1818
    %v2763 = vpack.c.b16 %v1827, %v1819
    %v2764 = vpack.c.b16 %v1828, %v1820
    %v2765 = vpack.c.b16 %v1829, %v1821
    %v2766 = vpack.c.b16 %v1830, %v1822
    %v2767 = vpack.c.b16 %v1831, %v1823
    %v2768 = vpack.c.b16 %v1832, %v1824
    %v2769 = vpack.c.b16 %v1833, %v1825
    %v2770 = vpack.c.b16 %v1842, %v1834
    %v2771 = vpack.c.b16 %v1843, %v1835
    %v2772 = vpack.c.b16 %v1844, %v1836
    %v2773 = vpack.c.b16 %v1845, %v1837
    %v2774 = vpack.c.b16 %v1846, %v1838
    %v2775 = vpack.c.b16 %v1847, %v1839
    %v2776 = vpack.c.b16 %v1848, %v1840
    %v2777 = vpack.c.b16 %v1849, %v1841
    %v2778 = vpack.c.b16 %v1858, %v1850
    %v2779 = vpack.c.b16 %v1859, %v1851
    %v2780 = vpack.c.b16 %v1860, %v1852
    %v2781 = vpack.c.b16 %v1861, %v1853
    %v2782 = vpack.c.b16 %v1862, %v1854
    %v2783 = vpack.c.b16 %v1863, %v1855
    %v2784 = vpack.c.b16 %v1864, %v1856
    %v2785 = vpack.c.b16 %v1865, %v1857
    %v2786 = vpack.c.b16 %v1874, %v1866
    %v2787 = vpack.c.b16 %v1875, %v1867
    %v2788 = vpack.c.b16 %v1876, %v1868
    %v2789 = vpack.c.b16 %v1877, %v1869
    %v2790 = vpack.c.b16 %v1878, %v1870
    %v2791 = vpack.c.b16 %v1879, %v1871
    %v2792 = vpack.c.b16 %v1880, %v1872
    %v2793 = vpack.c.b16 %v1881, %v1873
    %v2794 = vpack.c.b16 %v1890, %v1882
    %v2795 = vpack.c.b16 %v1891, %v1883
    %v2796 = vpack.c.b16 %v1892, %v1884
    %v2797 = vpack.c.b16 %v1893, %v1885
    %v2798 = vpack.c.b16 %v1894, %v1886
    %v2799 = vpack.c.b16 %v1895, %v1887
    %v2800 = vpack.c.b16 %v1896, %v1888
    %v2801 = vpack.c.b16 %v1897, %v1889
    %v2802 = vpack.c.b16 %v1906, %v1898
    %v2803 = vpack.c.b16 %v1907, %v1899
    %v2804 = vpack.c.b16 %v1908, %v1900
    %v2805 = vpack.c.b16 %v1909, %v1901
    %v2806 = vpack.c.b16 %v1910, %v1902
    %v2807 = vpack.c.b16 %v1911, %v1903
    %v2808 = vpack.c.b16 %v1912, %v1904
    %v2809 = vpack.c.b16 %v1913, %v1905
    %v2810 = vpack.c.b16 %v1922, %v1914
    %v2811 = vpack.c.b16 %v1923, %v1915
    %v2812 = vpack.c.b16 %v1924, %v1916
    %v2813 = vpack.c.b16 %v1925, %v1917
    %v2814 = vpack.c.b16 %v1926, %v1918
    %v2815 = vpack.c.b16 %v1927, %v1919
    %v2816 = vpack.c.b16 %v1928, %v1920
    %v2817 = vpack.c.b16 %v1929, %v1921
    %v2818 = vpack.c.b16 %v1938, %v1930
    %v2819 = vpack.c.b16 %v1939, %v1931
    %v2820 = vpack.c.b16 %v1940, %v1932
    %v2821 = vpack.c.b16 %v1941, %v1933
    %v2822 = vpack.c.b16 %v1942, %v1934
    %v2823 = vpack.c.b16 %v1943, %v1935
    %v2824 = vpack.c.b16 %v1944, %v1936
    %v2825 = vpack.c.b16 %v1945, %v1937
    %v2826 = vpack.c.b16 %v1954, %v1946
    %v2827 = vpack.c.b16 %v1955, %v1947
    %v2828 = vpack.c.b16 %v1956, %v1948
    %v2829 = vpack.c.b16 %v1957, %v1949
    %v2830 = vpack.c.b16 %v1958, %v1950
    %v2831 = vpack.c.b16 %v1959, %v1951
    %v2832 = vpack.c.b16 %v1960, %v1952
    %v2833 = vpack.c.b16 %v1961, %v1953
    %v2834 = vpack.c.b16 %v1970, %v1962
    %v2835 = vpack.c.b16 %v1971, %v1963
    %v2836 = vpack.c.b16 %v1972, %v1964
    %v2837 = vpack.c.b16 %v1973, %v1965
    %v2838 = vpack.c.b16 %v1974, %v1966
    %v2839 = vpack.c.b16 %v1975, %v1967
    %v2840 = vpack.c.b16 %v1976, %v1968
    %v2841 = vpack.c.b16 %v1977, %v1969
    %v2842 = vpack.c.b16 %v1986, %v1978
    %v2843 = vpack.c.b16 %v1987, %v1979
    %v2844 = vpack.c.b16 %v1988, %v1980
    %v2845 = vpack.c.b16 %v1989, %v1981
    %v2846 = vpack.c.b16 %v1990, %v1982
    %v2847 = vpack.c.b16 %v1991, %v1983
    %v2848 = vpack.c.b16 %v1992, %v1984
    %v2849 = vpack.c.b16 %v1993, %v1985
    %v2850 = vpack.c.b16 %v2002, %v1994
    %v2851 = vpack.c.b16 %v2003, %v1995
    %v2852 = vpack.c.b16 %v2004, %v1996
    %v2853 = vpack.c.b16 %v2005, %v1997
    %v2854 = vpack.c.b16 %v2006, %v1998
    %v2855 = vpack.c.b16 %v2007, %v1999
    %v2856 = vpack.c.b16 %v2008, %v2000
    %v2857 = vpack.c.b16 %v2009, %v2001
    %v2858 = vpack.c.b16 %v2018, %v2010
    %v2859 = vpack.c.b16 %v2019, %v2011
    %v2860 = vpack.c.b16 %v2020, %v2012
    %v2861 = vpack.c.b16 %v2021, %v2013
    %v2862 = vpack.c.b16 %v2022, %v2014
    %v2863 = vpack.c.b16 %v2023, %v2015
    %v2864 = vpack.c.b16 %v2024, %v2016
    %v2865 = vpack.c.b16 %v2025, %v2017
    %v2866 = vpack.c.b16 %v2034, %v2026
    %v2867 = vpack.c.b16 %v2035, %v2027
    %v2868 = vpack.c.b16 %v2036, %v2028
    %v2869 = vpack.c.b16 %v2037, %v2029
    %v2870 = vpack.c.b16 %v2038, %v2030
    %v2871 = vpack.c.b16 %v2039, %v2031
    %v2872 = vpack.c.b16 %v2040, %v2032
    %v2873 = vpack.c.b16 %v2041, %v2033
    %v2874 = vpack.c.b16 %v2050, %v2042
    %v2875 = vpack.c.b16 %v2051, %v2043
    %v2876 = vpack.c.b16 %v2052, %v2044
    %v2877 = vpack.c.b16 %v2053, %v2045
    %v2878 = vpack.c.b16 %v2054, %v2046
    %v2879 = vpack.c.b16 %v2055, %v2047
    %v2880 = vpack.c.b16 %v2056, %v2048
    %v2881 = vpack.c.b16 %v2057, %v2049
    %v2882 = vpack.c.b16 %v2066, %v2058
    %v2883 = vpack.c.b16 %v2067, %v2059
    %v2884 = vpack.c.b16 %v2068, %v2060
    %v2885 = vpack.c.b16 %v2069, %v2061
    %v2886 = vpack.c.b16 %v2070, %v2062
    %v2887 = vpack.c.b16 %v2071, %v2063
    %v2888 = vpack.c.b16 %v2072, %v2064
    %v2889 = vpack.c.b16 %v2073, %v2065
    %v2890 = vpack.c.b16 %v2082, %v2074
    %v2891 = vpack.c.b16 %v2083, %v2075
    %v2892 = vpack.c.b16 %v2084, %v2076
    %v2893 = vpack.c.b16 %v2085, %v2077
    %v2894 = vpack.c.b16 %v2086, %v2078
    %v2895 = vpack.c.b16 %v2087, %v2079
    %v2896 = vpack.c.b16 %v2088, %v2080
    %v2897 = vpack.c.b16 %v2089, %v2081
    %v2898 = vpack.c.b16 %v2098, %v2090
    %v2899 = vpack.c.b16 %v2099, %v2091
    %v2900 = vpack.c.b16 %v2100, %v2092
    %v2901 = vpack.c.b16 %v2101, %v2093
    %v2902 = vpack.c.b16 %v2102, %v2094
    %v2903 = vpack.c.b16 %v2103, %v2095
    %v2904 = vpack.c.b16 %v2104, %v2096
    %v2905 = vpack.c.b16 %v2105, %v2097
    %v2906 = vpack.c.b16 %v2114, %v2106
    %v2907 = vpack.c.b16 %v2115, %v2107
    %v2908 = vpack.c.b16 %v2116, %v2108
    %v2909 = vpack.c.b16 %v2117, %v2109
    %v2910 = vpack.c.b16 %v2118, %v2110
    %v2911 = vpack.c.b16 %v2119, %v2111
    %v2912 = vpack.c.b16 %v2120, %v2112
    %v2913 = vpack.c.b16 %v2121, %v2113
    %v2914 = vpack.c.b16 %v2130, %v2122
    %v2915 = vpack.c.b16 %v2131, %v2123
    %v2916 = vpack.c.b16 %v2132, %v2124
    %v2917 = vpack.c.b16 %v2133, %v2125
    %v2918 = vpack.c.b16 %v2134, %v2126
    %v2919 = vpack.c.b16 %v2135, %v2127
    %v2920 = vpack.c.b16 %v2136, %v2128
    %v2921 = vpack.c.b16 %v2137, %v2129
    %v2922 = vpack.c.b16 %v2146, %v2138
    %v2923 = vpack.c.b16 %v2147, %v2139
    %v2924 = vpack.c.b16 %v2148, %v2140
    %v2925 = vpack.c.b16 %v2149, %v2141
    %v2926 = vpack.c.b16 %v2150, %v2142
    %v2927 = vpack.c.b16 %v2151, %v2143
    %v2928 = vpack.c.b16 %v2152, %v2144
    %v2929 = vpack.c.b16 %v2153, %v2145
    %v2930 = vpack.c.b16 %v2162, %v2154
    %v2931 = vpack.c.b16 %v2163, %v2155
    %v2932 = vpack.c.b16 %v2164, %v2156
    %v2933 = vpack.c.b16 %v2165, %v2157
    %v2934 = vpack.c.b16 %v2166, %v2158
    %v2935 = vpack.c.b16 %v2167, %v2159
    %v2936 = vpack.c.b16 %v2168, %v2160
    %v2937 = vpack.c.b16 %v2169, %v2161
    %v2938 = vpack.c.b16 %v2178, %v2170
    %v2939 = vpack.c.b16 %v2179, %v2171
    %v2940 = vpack.c.b16 %v2180, %v2172
    %v2941 = vpack.c.b16 %v2181, %v2173
    %v2942 = vpack.c.b16 %v2182, %v2174
    %v2943 = vpack.c.b16 %v2183, %v2175
    %v2944 = vpack.c.b16 %v2184, %v2176
    %v2945 = vpack.c.b16 %v2185, %v2177
    %v2946 = vpack.c.b16 %v2194, %v2186
    %v2947 = vpack.c.b16 %v2195, %v2187
    %v2948 = vpack.c.b16 %v2196, %v2188
    %v2949 = vpack.c.b16 %v2197, %v2189
    %v2950 = vpack.c.b16 %v2198, %v2190
    %v2951 = vpack.c.b16 %v2199, %v2191
    %v2952 = vpack.c.b16 %v2200, %v2192
    %v2953 = vpack.c.b16 %v2201, %v2193
    %v2954 = vpack.c.b16 %v2210, %v2202
    %v2955 = vpack.c.b16 %v2211, %v2203
    %v2956 = vpack.c.b16 %v2212, %v2204
    %v2957 = vpack.c.b16 %v2213, %v2205
    %v2958 = vpack.c.b16 %v2214, %v2206
    %v2959 = vpack.c.b16 %v2215, %v2207
    %v2960 = vpack.c.b16 %v2216, %v2208
    %v2961 = vpack.c.b16 %v2217, %v2209
    %v2962 = vpack.c.b16 %v2226, %v2218
    %v2963 = vpack.c.b16 %v2227, %v2219
    %v2964 = vpack.c.b16 %v2228, %v2220
    %v2965 = vpack.c.b16 %v2229, %v2221
    %v2966 = vpack.c.b16 %v2230, %v2222
    %v2967 = vpack.c.b16 %v2231, %v2223
    %v2968 = vpack.c.b16 %v2232, %v2224
    %v2969 = vpack.c.b16 %v2233, %v2225
    %v2970 = vpack.c.b16 %v2242, %v2234
    %v2971 = vpack.c.b16 %v2243, %v2235
    %v2972 = vpack.c.b16 %v2244, %v2236
    %v2973 = vpack.c.b16 %v2245, %v2237
    %v2974 = vpack.c.b16 %v2246, %v2238
    %v2975 = vpack.c.b16 %v2247, %v2239
    %v2976 = vpack.c.b16 %v2248, %v2240
    %v2977 = vpack.c.b16 %v2249, %v2241
    %v2978 = vpack.c.b16 %v2258, %v2250
    %v2979 = vpack.c.b16 %v2259, %v2251
    %v2980 = vpack.c.b16 %v2260, %v2252
    %v2981 = vpack.c.b16 %v2261, %v2253
    %v2982 = vpack.c.b16 %v2262, %v2254
    %v2983 = vpack.c.b16 %v2263, %v2255
    %v2984 = vpack.c.b16 %v2264, %v2256
    %v2985 = vpack.c.b16 %v2265, %v2257
    %v2986 = vpack.c.b16 %v2274, %v2266
    %v2987 = vpack.c.b16 %v2275, %v2267
    %v2988 = vpack.c.b16 %v2276, %v2268
    %v2989 = vpack.c.b16 %v2277, %v2269
    %v2990 = vpack.c.b16 %v2278, %v2270
    %v2991 = vpack.c.b16 %v2279, %v2271
    %v2992 = vpack.c.b16 %v2280, %v2272
    %v2993 = vpack.c.b16 %v2281, %v2273
    %v2994 = vpack.c.b16 %v2290, %v2282
    %v2995 = vpack.c.b16 %v2291, %v2283
    %v2996 = vpack.c.b16 %v2292, %v2284
    %v2997 = vpack.c.b16 %v2293, %v2285
    %v2998 = vpack.c.b16 %v2294, %v2286
    %v2999 = vpack.c.b16 %v2295, %v2287
    %v3000 = vpack.c.b16 %v2296, %v2288
    %v3001 = vpack.c.b16 %v2297, %v2289
    %v3002 = vpack.c.b16 %v2306, %v2298
    %v3003 = vpack.c.b16 %v2307, %v2299
    %v3004 = vpack.c.b16 %v2308, %v2300
    %v3005 = vpack.c.b16 %v2309, %v2301
    %v3006 = vpack.c.b16 %v2310, %v2302
    %v3007 = vpack.c.b16 %v2311, %v2303
    %v3008 = vpack.c.b16 %v2312, %v2304
    %v3009 = vpack.c.b16 %v2313, %v2305
    %v3010 = vpack.c.b16 %v2322, %v2314
    %v3011 = vpack.c.b16 %v2323, %v2315
    %v3012 = vpack.c.b16 %v2324, %v2316
    %v3013 = vpack.c.b16 %v2325, %v2317
    %v3014 = vpack.c.b16 %v2326, %v2318
    %v3015 = vpack.c.b16 %v2327, %v2319
    %v3016 = vpack.c.b16 %v2328, %v2320
    %v3017 = vpack.c.b16 %v2329, %v2321
    %v3018 = vpack.c.b16 %v2338, %v2330
    %v3019 = vpack.c.b16 %v2339, %v2331
    %v3020 = vpack.c.b16 %v2340, %v2332
    %v3021 = vpack.c.b16 %v2341, %v2333
    %v3022 = vpack.c.b16 %v2342, %v2334
    %v3023 = vpack.c.b16 %v2343, %v2335
    %v3024 = vpack.c.b16 %v2344, %v2336
    %v3025 = vpack.c.b16 %v2345, %v2337
    %v3026 = vpack.c.b16 %v2354, %v2346
    %v3027 = vpack.c.b16 %v2355, %v2347
    %v3028 = vpack.c.b16 %v2356, %v2348
    %v3029 = vpack.c.b16 %v2357, %v2349
    %v3030 = vpack.c.b16 %v2358, %v2350
    %v3031 = vpack.c.b16 %v2359, %v2351
    %v3032 = vpack.c.b16 %v2360, %v2352
    %v3033 = vpack.c.b16 %v2361, %v2353
    %v3034 = vpack.c.b16 %v2370, %v2362
    %v3035 = vpack.c.b16 %v2371, %v2363
    %v3036 = vpack.c.b16 %v2372, %v2364
    %v3037 = vpack.c.b16 %v2373, %v2365
    %v3038 = vpack.c.b16 %v2374, %v2366
    %v3039 = vpack.c.b16 %v2375, %v2367
    %v3040 = vpack.c.b16 %v2376, %v2368
    %v3041 = vpack.c.b16 %v2377, %v2369
    %v3042 = vpack.c.b16 %v2386, %v2378
    %v3043 = vpack.c.b16 %v2387, %v2379
    %v3044 = vpack.c.b16 %v2388, %v2380
    %v3045 = vpack.c.b16 %v2389, %v2381
    %v3046 = vpack.c.b16 %v2390, %v2382
    %v3047 = vpack.c.b16 %v2391, %v2383
    %v3048 = vpack.c.b16 %v2392, %v2384
    %v3049 = vpack.c.b16 %v2393, %v2385
    %v3050 = vpack.c.b16 %v2402, %v2394
    %v3051 = vpack.c.b16 %v2403, %v2395
    %v3052 = vpack.c.b16 %v2404, %v2396
    %v3053 = vpack.c.b16 %v2405, %v2397
    %v3054 = vpack.c.b16 %v2406, %v2398
    %v3055 = vpack.c.b16 %v2407, %v2399
    %v3056 = vpack.c.b16 %v2408, %v2400
    %v3057 = vpack.c.b16 %v2409, %v2401
    %v3058 = vpack.c.b16 %v2418, %v2410
    %v3059 = vpack.c.b16 %v2419, %v2411
    %v3060 = vpack.c.b16 %v2420, %v2412
    %v3061 = vpack.c.b16 %v2421, %v2413
    %v3062 = vpack.c.b16 %v2422, %v2414
    %v3063 = vpack.c.b16 %v2423, %v2415
    %v3064 = vpack.c.b16 %v2424, %v2416
    %v3065 = vpack.c.b16 %v2425, %v2417
    %v3066 = vpack.c.b16 %v2434, %v2426
    %v3067 = vpack.c.b16 %v2435, %v2427
    %v3068 = vpack.c.b16 %v2436, %v2428
    %v3069 = vpack.c.b16 %v2437, %v2429
    %v3070 = vpack.c.b16 %v2438, %v2430
    %v3071 = vpack.c.b16 %v2439, %v2431
    %v3072 = vpack.c.b16 %v2440, %v2432
    %v3073 = vpack.c.b16 %v2441, %v2433
    %v3074 = vpack.c.b16 %v2450, %v2442
    %v3075 = vpack.c.b16 %v2451, %v2443
    %v3076 = vpack.c.b16 %v2452, %v2444
    %v3077 = vpack.c.b16 %v2453, %v2445
    %v3078 = vpack.c.b16 %v2454, %v2446
    %v3079 = vpack.c.b16 %v2455, %v2447
    %v3080 = vpack.c.b16 %v2456, %v2448
    %v3081 = vpack.c.b16 %v2457, %v2449
    %v3082 = vpack.c.b16 %v2466, %v2458
    %v3083 = vpack.c.b16 %v2467, %v2459
    %v3084 = vpack.c.b16 %v2468, %v2460
    %v3085 = vpack.c.b16 %v2469, %v2461
    %v3086 = vpack.c.b16 %v2470, %v2462
    %v3087 = vpack.c.b16 %v2471, %v2463
    %v3088 = vpack.c.b16 %v2472, %v2464
    %v3089 = vpack.c.b16 %v2473, %v2465
    %v3090 = vpack.c.b16 %v2482, %v2474
    %v3091 = vpack.c.b16 %v2483, %v2475
    %v3092 = vpack.c.b16 %v2484, %v2476
    %v3093 = vpack.c.b16 %v2485, %v2477
    %v3094 = vpack.c.b16 %v2486, %v2478
    %v3095 = vpack.c.b16 %v2487, %v2479
    %v3096 = vpack.c.b16 %v2488, %v2480
    %v3097 = vpack.c.b16 %v2489, %v2481
    %v3098 = vpack.c.b16 %v2498, %v2490
    %v3099 = vpack.c.b16 %v2499, %v2491
    %v3100 = vpack.c.b16 %v2500, %v2492
    %v3101 = vpack.c.b16 %v2501, %v2493
    %v3102 = vpack.c.b16 %v2502, %v2494
    %v3103 = vpack.c.b16 %v2503, %v2495
    %v3104 = vpack.c.b16 %v2504, %v2496
    %v3105 = vpack.c.b16 %v2505, %v2497
    %v3106 = vpack.c.b16 %v2514, %v2506
    %v3107 = vpack.c.b16 %v2515, %v2507
    %v3108 = vpack.c.b16 %v2516, %v2508
    %v3109 = vpack.c.b16 %v2517, %v2509
    %v3110 = vpack.c.b16 %v2518, %v2510
    %v3111 = vpack.c.b16 %v2519, %v2511
    %v3112 = vpack.c.b16 %v2520, %v2512
    %v3113 = vpack.c.b16 %v2521, %v2513
    %v3114 = vpack.c.b16 %v2530, %v2522
    %v3115 = vpack.c.b16 %v2531, %v2523
    %v3116 = vpack.c.b16 %v2532, %v2524
    %v3117 = vpack.c.b16 %v2533, %v2525
    %v3118 = vpack.c.b16 %v2534, %v2526
    %v3119 = vpack.c.b16 %v2535, %v2527
    %v3120 = vpack.c.b16 %v2536, %v2528
    %v3121 = vpack.c.b16 %v2537, %v2529
    %v3122 = vpack.c.b16 %v2546, %v2538
    %v3123 = vpack.c.b16 %v2547, %v2539
    %v3124 = vpack.c.b16 %v2548, %v2540
    %v3125 = vpack.c.b16 %v2549, %v2541
    %v3126 = vpack.c.b16 %v2550, %v2542
    %v3127 = vpack.c.b16 %v2551, %v2543
    %v3128 = vpack.c.b16 %v2552, %v2544
    %v3129 = vpack.c.b16 %v2553, %v2545
    %v3130 = vpack.c.b16 %v2562, %v2554
    %v3131 = vpack.c.b16 %v2563, %v2555
    %v3132 = vpack.c.b16 %v2564, %v2556
    %v3133 = vpack.c.b16 %v2565, %v2557
    %v3134 = vpack.c.b16 %v2566, %v2558
    %v3135 = vpack.c.b16 %v2567, %v2559
    %v3136 = vpack.c.b16 %v2568, %v2560
    %v3137 = vpack.c.b16 %v2569, %v2561
    %v3138 = vpack.c.b16 %v2578, %v2570
    %v3139 = vpack.c.b16 %v2579, %v2571
    %v3140 = vpack.c.b16 %v2580, %v2572
    %v3141 = vpack.c.b16 %v2581, %v2573
    %v3142 = vpack.c.b16 %v2582, %v2574
    %v3143 = vpack.c.b16 %v2583, %v2575
    %v3144 = vpack.c.b16 %v2584, %v2576
    %v3145 = vpack.c.b16 %v2585, %v2577
    %v3146 = vpack.c.b16 %v2594, %v2586
    %v3147 = vpack.c.b16 %v2595, %v2587
    %v3148 = vpack.c.b16 %v2596, %v2588
    %v3149 = vpack.c.b16 %v2597, %v2589
    %v3150 = vpack.c.b16 %v2598, %v2590
    %v3151 = vpack.c.b16 %v2599, %v2591
    %v3152 = vpack.c.b16 %v2600, %v2592
    %v3153 = vpack.c.b16 %v2601, %v2593
    %v3154 = vpack.c.b16 %v2610, %v2602
    %v3155 = vpack.c.b16 %v2611, %v2603
    %v3156 = vpack.c.b16 %v2612, %v2604
    %v3157 = vpack.c.b16 %v2613, %v2605
    %v3158 = vpack.c.b16 %v2614, %v2606
    %v3159 = vpack.c.b16 %v2615, %v2607
    %v3160 = vpack.c.b16 %v2616, %v2608
    %v3161 = vpack.c.b16 %v2617, %v2609
    %v3162 = vpack.c.b16 %v2626, %v2618
    %v3163 = vpack.c.b16 %v2627, %v2619
    %v3164 = vpack.c.b16 %v2628, %v2620
    %v3165 = vpack.c.b16 %v2629, %v2621
    %v3166 = vpack.c.b16 %v2630, %v2622
    %v3167 = vpack.c.b16 %v2631, %v2623
    %v3168 = vpack.c.b16 %v2632, %v2624
    %v3169 = vpack.c.b16 %v2633, %v2625
    %v3170 = vpack.c.b16 %v2642, %v2634
    %v3171 = vpack.c.b16 %v2643, %v2635
    %v3172 = vpack.c.b16 %v2644, %v2636
    %v3173 = vpack.c.b16 %v2645, %v2637
    %v3174 = vpack.c.b16 %v2646, %v2638
    %v3175 = vpack.c.b16 %v2647, %v2639
    %v3176 = vpack.c.b16 %v2648, %v2640
    %v3177 = vpack.c.b16 %v2649, %v2641
    %v3178 = vpack.c.b16 %v2658, %v2650
    %v3179 = vpack.c.b16 %v2659, %v2651
    %v3180 = vpack.c.b16 %v2660, %v2652
    %v3181 = vpack.c.b16 %v2661, %v2653
    %v3182 = vpack.c.b16 %v2662, %v2654
    %v3183 = vpack.c.b16 %v2663, %v2655
    %v3184 = vpack.c.b16 %v2664, %v2656
    %v3185 = vpack.c.b16 %v2665, %v2657
    %v3186 = vpack.c.b16 %v2674, %v2666
    %v3187 = vpack.c.b16 %v2675, %v2667
    %v3188 = vpack.c.b16 %v2676, %v2668
    %v3189 = vpack.c.b16 %v2677, %v2669
    %v3190 = vpack.c.b16 %v2678, %v2670
    %v3191 = vpack.c.b16 %v2679, %v2671
    %v3192 = vpack.c.b16 %v2680, %v2672
    %v3193 = vpack.c.b16 %v2681, %v2673
    %3706 = vmatpush.bf16.msra.mxu0 %v2738
    %3707 = vmatpush.bf16.msra.mxu0 %v2730
    %3708 = vmatpush.bf16.msra.mxu0 %v2722
    %3709 = vmatpush.bf16.msra.mxu0 %v2714
    %3710 = vmatpush.bf16.msra.mxu0 %v2706
    %3711 = vmatpush.bf16.msra.mxu0 %v2698
    %3712 = vmatpush.bf16.msra.mxu0 %v2690
    %3713 = vmatpush.bf16.msra.mxu0 %v2682
    %3714 = vmatmul.bf16.gmra.mxu0 %v608
    %v3715 = vpop.f32.mrf.mxu0
    %v3716 = vadd.f32 %v1130, %v3715
    %v3717 = vpop.f32.mrf.mxu0
    %3718 = vdwg.mxu0
    %3719 = vmatpush.bf16.msra.mxu0 %v2802
    %3720 = vmatpush.bf16.msra.mxu0 %v2794
    %3721 = vmatpush.bf16.msra.mxu0 %v2786
    %3722 = vmatpush.bf16.msra.mxu0 %v2778
    %3723 = vmatpush.bf16.msra.mxu0 %v2770
    %3724 = vmatpush.bf16.msra.mxu0 %v2762
    %3725 = vmatpush.bf16.msra.mxu0 %v2754
    %3726 = vmatpush.bf16.msra.mxu0 %v2746
    %3727 = vmatmul.bf16.gmra.mxu0 %v609
    %v3728 = vpop.f32.mrf.mxu0
    %v3729 = vadd.f32 %v3716, %v3728
    %v3730 = vpop.f32.mrf.mxu0
    %3731 = vdwg.mxu0
    %3732 = vmatpush.bf16.msra.mxu0 %v2866
    %3733 = vmatpush.bf16.msra.mxu0 %v2858
    %3734 = vmatpush.bf16.msra.mxu0 %v2850
    %3735 = vmatpush.bf16.msra.mxu0 %v2842
    %3736 = vmatpush.bf16.msra.mxu0 %v2834
    %3737 = vmatpush.bf16.msra.mxu0 %v2826
    %3738 = vmatpush.bf16.msra.mxu0 %v2818
    %3739 = vmatpush.bf16.msra.mxu0 %v2810
    %3740 = vmatmul.bf16.gmra.mxu0 %v610
    %v3741 = vpop.f32.mrf.mxu0
    %v3742 = vadd.f32 %v3729, %v3741
    %v3743 = vpop.f32.mrf.mxu0
    %3744 = vdwg.mxu0
    %3745 = vmatpush.bf16.msra.mxu0 %v2930
    %3746 = vmatpush.bf16.msra.mxu0 %v2922
    %3747 = vmatpush.bf16.msra.mxu0 %v2914
    %3748 = vmatpush.bf16.msra.mxu0 %v2906
    %3749 = vmatpush.bf16.msra.mxu0 %v2898
    %3750 = vmatpush.bf16.msra.mxu0 %v2890
    %3751 = vmatpush.bf16.msra.mxu0 %v2882
    %3752 = vmatpush.bf16.msra.mxu0 %v2874
    %3753 = vmatmul.bf16.gmra.mxu0 %v611
    %v3754 = vpop.f32.mrf.mxu0
    %v3755 = vadd.f32 %v3742, %v3754
    %v3756 = vpop.f32.mrf.mxu0
    %3757 = vdwg.mxu0
    %3758 = vmatpush.bf16.msra.mxu0 %v2994
    %3759 = vmatpush.bf16.msra.mxu0 %v2986
    %3760 = vmatpush.bf16.msra.mxu0 %v2978
    %3761 = vmatpush.bf16.msra.mxu0 %v2970
    %3762 = vmatpush.bf16.msra.mxu0 %v2962
    %3763 = vmatpush.bf16.msra.mxu0 %v2954
    %3764 = vmatpush.bf16.msra.mxu0 %v2946
    %3765 = vmatpush.bf16.msra.mxu0 %v2938
    %3766 = vmatmul.bf16.gmra.mxu0 %v612
    %v3767 = vpop.f32.mrf.mxu0
    %v3768 = vadd.f32 %v3755, %v3767
    %v3769 = vpop.f32.mrf.mxu0
    %3770 = vdwg.mxu0
    %3771 = vmatpush.bf16.msra.mxu0 %v3058
    %3772 = vmatpush.bf16.msra.mxu0 %v3050
    %3773 = vmatpush.bf16.msra.mxu0 %v3042
    %3774 = vmatpush.bf16.msra.mxu0 %v3034
    %3775 = vmatpush.bf16.msra.mxu0 %v3026
    %3776 = vmatpush.bf16.msra.mxu0 %v3018
    %3777 = vmatpush.bf16.msra.mxu0 %v3010
    %3778 = vmatpush.bf16.msra.mxu0 %v3002
    %3779 = vmatmul.bf16.gmra.mxu0 %v613
    %v3780 = vpop.f32.mrf.mxu0
    %v3781 = vadd.f32 %v3768, %v3780
    %v3782 = vpop.f32.mrf.mxu0
    %3783 = vdwg.mxu0
    %3784 = vmatpush.bf16.msra.mxu0 %v3122
    %3785 = vmatpush.bf16.msra.mxu0 %v3114
    %3786 = vmatpush.bf16.msra.mxu0 %v3106
    %3787 = vmatpush.bf16.msra.mxu0 %v3098
    %3788 = vmatpush.bf16.msra.mxu0 %v3090
    %3789 = vmatpush.bf16.msra.mxu0 %v3082
    %3790 = vmatpush.bf16.msra.mxu0 %v3074
    %3791 = vmatpush.bf16.msra.mxu0 %v3066
    %3792 = vmatmul.bf16.gmra.mxu0 %v614
    %v3793 = vpop.f32.mrf.mxu0
    %v3794 = vadd.f32 %v3781, %v3793
    %v3795 = vpop.f32.mrf.mxu0
    %3796 = vdwg.mxu0
    %3797 = vmatpush.bf16.msra.mxu0 %v3186
    %3798 = vmatpush.bf16.msra.mxu0 %v3178
    %3799 = vmatpush.bf16.msra.mxu0 %v3170
    %3800 = vmatpush.bf16.msra.mxu0 %v3162
    %3801 = vmatpush.bf16.msra.mxu0 %v3154
    %3802 = vmatpush.bf16.msra.mxu0 %v3146
    %3803 = vmatpush.bf16.msra.mxu0 %v3138
    %3804 = vmatpush.bf16.msra.mxu0 %v3130
    %3805 = vmatmul.bf16.gmra.mxu0 %v615
    %v3806 = vpop.f32.mrf.mxu0
    %v3807 = vadd.f32 %v3794, %v3806
    %v3808 = vpop.f32.mrf.mxu0
    %3809 = vdwg.mxu0
    %3810 = vmatpush.bf16.msra.mxu0 %v2739
    %3811 = vmatpush.bf16.msra.mxu0 %v2731
    %3812 = vmatpush.bf16.msra.mxu0 %v2723
    %3813 = vmatpush.bf16.msra.mxu0 %v2715
    %3814 = vmatpush.bf16.msra.mxu0 %v2707
    %3815 = vmatpush.bf16.msra.mxu0 %v2699
    %3816 = vmatpush.bf16.msra.mxu0 %v2691
    %3817 = vmatpush.bf16.msra.mxu0 %v2683
    %3818 = vmatmul.bf16.gmra.mxu0 %v608
    %v3819 = vpop.f32.mrf.mxu0
    %v3820 = vadd.f32 %v1131, %v3819
    %v3821 = vpop.f32.mrf.mxu0
    %3822 = vdwg.mxu0
    %3823 = vmatpush.bf16.msra.mxu0 %v2803
    %3824 = vmatpush.bf16.msra.mxu0 %v2795
    %3825 = vmatpush.bf16.msra.mxu0 %v2787
    %3826 = vmatpush.bf16.msra.mxu0 %v2779
    %3827 = vmatpush.bf16.msra.mxu0 %v2771
    %3828 = vmatpush.bf16.msra.mxu0 %v2763
    %3829 = vmatpush.bf16.msra.mxu0 %v2755
    %3830 = vmatpush.bf16.msra.mxu0 %v2747
    %3831 = vmatmul.bf16.gmra.mxu0 %v609
    %v3832 = vpop.f32.mrf.mxu0
    %v3833 = vadd.f32 %v3820, %v3832
    %v3834 = vpop.f32.mrf.mxu0
    %3835 = vdwg.mxu0
    %3836 = vmatpush.bf16.msra.mxu0 %v2867
    %3837 = vmatpush.bf16.msra.mxu0 %v2859
    %3838 = vmatpush.bf16.msra.mxu0 %v2851
    %3839 = vmatpush.bf16.msra.mxu0 %v2843
    %3840 = vmatpush.bf16.msra.mxu0 %v2835
    %3841 = vmatpush.bf16.msra.mxu0 %v2827
    %3842 = vmatpush.bf16.msra.mxu0 %v2819
    %3843 = vmatpush.bf16.msra.mxu0 %v2811
    %3844 = vmatmul.bf16.gmra.mxu0 %v610
    %v3845 = vpop.f32.mrf.mxu0
    %v3846 = vadd.f32 %v3833, %v3845
    %v3847 = vpop.f32.mrf.mxu0
    %3848 = vdwg.mxu0
    %3849 = vmatpush.bf16.msra.mxu0 %v2931
    %3850 = vmatpush.bf16.msra.mxu0 %v2923
    %3851 = vmatpush.bf16.msra.mxu0 %v2915
    %3852 = vmatpush.bf16.msra.mxu0 %v2907
    %3853 = vmatpush.bf16.msra.mxu0 %v2899
    %3854 = vmatpush.bf16.msra.mxu0 %v2891
    %3855 = vmatpush.bf16.msra.mxu0 %v2883
    %3856 = vmatpush.bf16.msra.mxu0 %v2875
    %3857 = vmatmul.bf16.gmra.mxu0 %v611
    %v3858 = vpop.f32.mrf.mxu0
    %v3859 = vadd.f32 %v3846, %v3858
    %v3860 = vpop.f32.mrf.mxu0
    %3861 = vdwg.mxu0
    %3862 = vmatpush.bf16.msra.mxu0 %v2995
    %3863 = vmatpush.bf16.msra.mxu0 %v2987
    %3864 = vmatpush.bf16.msra.mxu0 %v2979
    %3865 = vmatpush.bf16.msra.mxu0 %v2971
    %3866 = vmatpush.bf16.msra.mxu0 %v2963
    %3867 = vmatpush.bf16.msra.mxu0 %v2955
    %3868 = vmatpush.bf16.msra.mxu0 %v2947
    %3869 = vmatpush.bf16.msra.mxu0 %v2939
    %3870 = vmatmul.bf16.gmra.mxu0 %v612
    %v3871 = vpop.f32.mrf.mxu0
    %v3872 = vadd.f32 %v3859, %v3871
    %v3873 = vpop.f32.mrf.mxu0
    %3874 = vdwg.mxu0
    %3875 = vmatpush.bf16.msra.mxu0 %v3059
    %3876 = vmatpush.bf16.msra.mxu0 %v3051
    %3877 = vmatpush.bf16.msra.mxu0 %v3043
    %3878 = vmatpush.bf16.msra.mxu0 %v3035
    %3879 = vmatpush.bf16.msra.mxu0 %v3027
    %3880 = vmatpush.bf16.msra.mxu0 %v3019
    %3881 = vmatpush.bf16.msra.mxu0 %v3011
    %3882 = vmatpush.bf16.msra.mxu0 %v3003
    %3883 = vmatmul.bf16.gmra.mxu0 %v613
    %v3884 = vpop.f32.mrf.mxu0
    %v3885 = vadd.f32 %v3872, %v3884
    %v3886 = vpop.f32.mrf.mxu0
    %3887 = vdwg.mxu0
    %3888 = vmatpush.bf16.msra.mxu0 %v3123
    %3889 = vmatpush.bf16.msra.mxu0 %v3115
    %3890 = vmatpush.bf16.msra.mxu0 %v3107
    %3891 = vmatpush.bf16.msra.mxu0 %v3099
    %3892 = vmatpush.bf16.msra.mxu0 %v3091
    %3893 = vmatpush.bf16.msra.mxu0 %v3083
    %3894 = vmatpush.bf16.msra.mxu0 %v3075
    %3895 = vmatpush.bf16.msra.mxu0 %v3067
    %3896 = vmatmul.bf16.gmra.mxu0 %v614
    %v3897 = vpop.f32.mrf.mxu0
    %v3898 = vadd.f32 %v3885, %v3897
    %v3899 = vpop.f32.mrf.mxu0
    %3900 = vdwg.mxu0
    %3901 = vmatpush.bf16.msra.mxu0 %v3187
    %3902 = vmatpush.bf16.msra.mxu0 %v3179
    %3903 = vmatpush.bf16.msra.mxu0 %v3171
    %3904 = vmatpush.bf16.msra.mxu0 %v3163
    %3905 = vmatpush.bf16.msra.mxu0 %v3155
    %3906 = vmatpush.bf16.msra.mxu0 %v3147
    %3907 = vmatpush.bf16.msra.mxu0 %v3139
    %3908 = vmatpush.bf16.msra.mxu0 %v3131
    %3909 = vmatmul.bf16.gmra.mxu0 %v615
    %v3910 = vpop.f32.mrf.mxu0
    %v3911 = vadd.f32 %v3898, %v3910
    %v3912 = vpop.f32.mrf.mxu0
    %3913 = vdwg.mxu0
    %3914 = vmatpush.bf16.msra.mxu0 %v2740
    %3915 = vmatpush.bf16.msra.mxu0 %v2732
    %3916 = vmatpush.bf16.msra.mxu0 %v2724
    %3917 = vmatpush.bf16.msra.mxu0 %v2716
    %3918 = vmatpush.bf16.msra.mxu0 %v2708
    %3919 = vmatpush.bf16.msra.mxu0 %v2700
    %3920 = vmatpush.bf16.msra.mxu0 %v2692
    %3921 = vmatpush.bf16.msra.mxu0 %v2684
    %3922 = vmatmul.bf16.gmra.mxu0 %v608
    %v3923 = vpop.f32.mrf.mxu0
    %v3924 = vadd.f32 %v1132, %v3923
    %v3925 = vpop.f32.mrf.mxu0
    %3926 = vdwg.mxu0
    %3927 = vmatpush.bf16.msra.mxu0 %v2804
    %3928 = vmatpush.bf16.msra.mxu0 %v2796
    %3929 = vmatpush.bf16.msra.mxu0 %v2788
    %3930 = vmatpush.bf16.msra.mxu0 %v2780
    %3931 = vmatpush.bf16.msra.mxu0 %v2772
    %3932 = vmatpush.bf16.msra.mxu0 %v2764
    %3933 = vmatpush.bf16.msra.mxu0 %v2756
    %3934 = vmatpush.bf16.msra.mxu0 %v2748
    %3935 = vmatmul.bf16.gmra.mxu0 %v609
    %v3936 = vpop.f32.mrf.mxu0
    %v3937 = vadd.f32 %v3924, %v3936
    %v3938 = vpop.f32.mrf.mxu0
    %3939 = vdwg.mxu0
    %3940 = vmatpush.bf16.msra.mxu0 %v2868
    %3941 = vmatpush.bf16.msra.mxu0 %v2860
    %3942 = vmatpush.bf16.msra.mxu0 %v2852
    %3943 = vmatpush.bf16.msra.mxu0 %v2844
    %3944 = vmatpush.bf16.msra.mxu0 %v2836
    %3945 = vmatpush.bf16.msra.mxu0 %v2828
    %3946 = vmatpush.bf16.msra.mxu0 %v2820
    %3947 = vmatpush.bf16.msra.mxu0 %v2812
    %3948 = vmatmul.bf16.gmra.mxu0 %v610
    %v3949 = vpop.f32.mrf.mxu0
    %v3950 = vadd.f32 %v3937, %v3949
    %v3951 = vpop.f32.mrf.mxu0
    %3952 = vdwg.mxu0
    %3953 = vmatpush.bf16.msra.mxu0 %v2932
    %3954 = vmatpush.bf16.msra.mxu0 %v2924
    %3955 = vmatpush.bf16.msra.mxu0 %v2916
    %3956 = vmatpush.bf16.msra.mxu0 %v2908
    %3957 = vmatpush.bf16.msra.mxu0 %v2900
    %3958 = vmatpush.bf16.msra.mxu0 %v2892
    %3959 = vmatpush.bf16.msra.mxu0 %v2884
    %3960 = vmatpush.bf16.msra.mxu0 %v2876
    %3961 = vmatmul.bf16.gmra.mxu0 %v611
    %v3962 = vpop.f32.mrf.mxu0
    %v3963 = vadd.f32 %v3950, %v3962
    %v3964 = vpop.f32.mrf.mxu0
    %3965 = vdwg.mxu0
    %3966 = vmatpush.bf16.msra.mxu0 %v2996
    %3967 = vmatpush.bf16.msra.mxu0 %v2988
    %3968 = vmatpush.bf16.msra.mxu0 %v2980
    %3969 = vmatpush.bf16.msra.mxu0 %v2972
    %3970 = vmatpush.bf16.msra.mxu0 %v2964
    %3971 = vmatpush.bf16.msra.mxu0 %v2956
    %3972 = vmatpush.bf16.msra.mxu0 %v2948
    %3973 = vmatpush.bf16.msra.mxu0 %v2940
    %3974 = vmatmul.bf16.gmra.mxu0 %v612
    %v3975 = vpop.f32.mrf.mxu0
    %v3976 = vadd.f32 %v3963, %v3975
    %v3977 = vpop.f32.mrf.mxu0
    %3978 = vdwg.mxu0
    %3979 = vmatpush.bf16.msra.mxu0 %v3060
    %3980 = vmatpush.bf16.msra.mxu0 %v3052
    %3981 = vmatpush.bf16.msra.mxu0 %v3044
    %3982 = vmatpush.bf16.msra.mxu0 %v3036
    %3983 = vmatpush.bf16.msra.mxu0 %v3028
    %3984 = vmatpush.bf16.msra.mxu0 %v3020
    %3985 = vmatpush.bf16.msra.mxu0 %v3012
    %3986 = vmatpush.bf16.msra.mxu0 %v3004
    %3987 = vmatmul.bf16.gmra.mxu0 %v613
    %v3988 = vpop.f32.mrf.mxu0
    %v3989 = vadd.f32 %v3976, %v3988
    %v3990 = vpop.f32.mrf.mxu0
    %3991 = vdwg.mxu0
    %3992 = vmatpush.bf16.msra.mxu0 %v3124
    %3993 = vmatpush.bf16.msra.mxu0 %v3116
    %3994 = vmatpush.bf16.msra.mxu0 %v3108
    %3995 = vmatpush.bf16.msra.mxu0 %v3100
    %3996 = vmatpush.bf16.msra.mxu0 %v3092
    %3997 = vmatpush.bf16.msra.mxu0 %v3084
    %3998 = vmatpush.bf16.msra.mxu0 %v3076
    %3999 = vmatpush.bf16.msra.mxu0 %v3068
    %4000 = vmatmul.bf16.gmra.mxu0 %v614
    %v4001 = vpop.f32.mrf.mxu0
    %v4002 = vadd.f32 %v3989, %v4001
    %v4003 = vpop.f32.mrf.mxu0
    %4004 = vdwg.mxu0
    %4005 = vmatpush.bf16.msra.mxu0 %v3188
    %4006 = vmatpush.bf16.msra.mxu0 %v3180
    %4007 = vmatpush.bf16.msra.mxu0 %v3172
    %4008 = vmatpush.bf16.msra.mxu0 %v3164
    %4009 = vmatpush.bf16.msra.mxu0 %v3156
    %4010 = vmatpush.bf16.msra.mxu0 %v3148
    %4011 = vmatpush.bf16.msra.mxu0 %v3140
    %4012 = vmatpush.bf16.msra.mxu0 %v3132
    %4013 = vmatmul.bf16.gmra.mxu0 %v615
    %v4014 = vpop.f32.mrf.mxu0
    %v4015 = vadd.f32 %v4002, %v4014
    %v4016 = vpop.f32.mrf.mxu0
    %4017 = vdwg.mxu0
    %4018 = vmatpush.bf16.msra.mxu0 %v2741
    %4019 = vmatpush.bf16.msra.mxu0 %v2733
    %4020 = vmatpush.bf16.msra.mxu0 %v2725
    %4021 = vmatpush.bf16.msra.mxu0 %v2717
    %4022 = vmatpush.bf16.msra.mxu0 %v2709
    %4023 = vmatpush.bf16.msra.mxu0 %v2701
    %4024 = vmatpush.bf16.msra.mxu0 %v2693
    %4025 = vmatpush.bf16.msra.mxu0 %v2685
    %4026 = vmatmul.bf16.gmra.mxu0 %v608
    %v4027 = vpop.f32.mrf.mxu0
    %v4028 = vadd.f32 %v1133, %v4027
    %v4029 = vpop.f32.mrf.mxu0
    %4030 = vdwg.mxu0
    %4031 = vmatpush.bf16.msra.mxu0 %v2805
    %4032 = vmatpush.bf16.msra.mxu0 %v2797
    %4033 = vmatpush.bf16.msra.mxu0 %v2789
    %4034 = vmatpush.bf16.msra.mxu0 %v2781
    %4035 = vmatpush.bf16.msra.mxu0 %v2773
    %4036 = vmatpush.bf16.msra.mxu0 %v2765
    %4037 = vmatpush.bf16.msra.mxu0 %v2757
    %4038 = vmatpush.bf16.msra.mxu0 %v2749
    %4039 = vmatmul.bf16.gmra.mxu0 %v609
    %v4040 = vpop.f32.mrf.mxu0
    %v4041 = vadd.f32 %v4028, %v4040
    %v4042 = vpop.f32.mrf.mxu0
    %4043 = vdwg.mxu0
    %4044 = vmatpush.bf16.msra.mxu0 %v2869
    %4045 = vmatpush.bf16.msra.mxu0 %v2861
    %4046 = vmatpush.bf16.msra.mxu0 %v2853
    %4047 = vmatpush.bf16.msra.mxu0 %v2845
    %4048 = vmatpush.bf16.msra.mxu0 %v2837
    %4049 = vmatpush.bf16.msra.mxu0 %v2829
    %4050 = vmatpush.bf16.msra.mxu0 %v2821
    %4051 = vmatpush.bf16.msra.mxu0 %v2813
    %4052 = vmatmul.bf16.gmra.mxu0 %v610
    %v4053 = vpop.f32.mrf.mxu0
    %v4054 = vadd.f32 %v4041, %v4053
    %v4055 = vpop.f32.mrf.mxu0
    %4056 = vdwg.mxu0
    %4057 = vmatpush.bf16.msra.mxu0 %v2933
    %4058 = vmatpush.bf16.msra.mxu0 %v2925
    %4059 = vmatpush.bf16.msra.mxu0 %v2917
    %4060 = vmatpush.bf16.msra.mxu0 %v2909
    %4061 = vmatpush.bf16.msra.mxu0 %v2901
    %4062 = vmatpush.bf16.msra.mxu0 %v2893
    %4063 = vmatpush.bf16.msra.mxu0 %v2885
    %4064 = vmatpush.bf16.msra.mxu0 %v2877
    %4065 = vmatmul.bf16.gmra.mxu0 %v611
    %v4066 = vpop.f32.mrf.mxu0
    %v4067 = vadd.f32 %v4054, %v4066
    %v4068 = vpop.f32.mrf.mxu0
    %4069 = vdwg.mxu0
    %4070 = vmatpush.bf16.msra.mxu0 %v2997
    %4071 = vmatpush.bf16.msra.mxu0 %v2989
    %4072 = vmatpush.bf16.msra.mxu0 %v2981
    %4073 = vmatpush.bf16.msra.mxu0 %v2973
    %4074 = vmatpush.bf16.msra.mxu0 %v2965
    %4075 = vmatpush.bf16.msra.mxu0 %v2957
    %4076 = vmatpush.bf16.msra.mxu0 %v2949
    %4077 = vmatpush.bf16.msra.mxu0 %v2941
    %4078 = vmatmul.bf16.gmra.mxu0 %v612
    %v4079 = vpop.f32.mrf.mxu0
    %v4080 = vadd.f32 %v4067, %v4079
    %v4081 = vpop.f32.mrf.mxu0
    %4082 = vdwg.mxu0
    %4083 = vmatpush.bf16.msra.mxu0 %v3061
    %4084 = vmatpush.bf16.msra.mxu0 %v3053
    %4085 = vmatpush.bf16.msra.mxu0 %v3045
    %4086 = vmatpush.bf16.msra.mxu0 %v3037
    %4087 = vmatpush.bf16.msra.mxu0 %v3029
    %4088 = vmatpush.bf16.msra.mxu0 %v3021
    %4089 = vmatpush.bf16.msra.mxu0 %v3013
    %4090 = vmatpush.bf16.msra.mxu0 %v3005
    %4091 = vmatmul.bf16.gmra.mxu0 %v613
    %v4092 = vpop.f32.mrf.mxu0
    %v4093 = vadd.f32 %v4080, %v4092
    %v4094 = vpop.f32.mrf.mxu0
    %4095 = vdwg.mxu0
    %4096 = vmatpush.bf16.msra.mxu0 %v3125
    %4097 = vmatpush.bf16.msra.mxu0 %v3117
    %4098 = vmatpush.bf16.msra.mxu0 %v3109
    %4099 = vmatpush.bf16.msra.mxu0 %v3101
    %4100 = vmatpush.bf16.msra.mxu0 %v3093
    %4101 = vmatpush.bf16.msra.mxu0 %v3085
    %4102 = vmatpush.bf16.msra.mxu0 %v3077
    %4103 = vmatpush.bf16.msra.mxu0 %v3069
    %4104 = vmatmul.bf16.gmra.mxu0 %v614
    %v4105 = vpop.f32.mrf.mxu0
    %v4106 = vadd.f32 %v4093, %v4105
    %v4107 = vpop.f32.mrf.mxu0
    %4108 = vdwg.mxu0
    %4109 = vmatpush.bf16.msra.mxu0 %v3189
    %4110 = vmatpush.bf16.msra.mxu0 %v3181
    %4111 = vmatpush.bf16.msra.mxu0 %v3173
    %4112 = vmatpush.bf16.msra.mxu0 %v3165
    %4113 = vmatpush.bf16.msra.mxu0 %v3157
    %4114 = vmatpush.bf16.msra.mxu0 %v3149
    %4115 = vmatpush.bf16.msra.mxu0 %v3141
    %4116 = vmatpush.bf16.msra.mxu0 %v3133
    %4117 = vmatmul.bf16.gmra.mxu0 %v615
    %v4118 = vpop.f32.mrf.mxu0
    %v4119 = vadd.f32 %v4106, %v4118
    %v4120 = vpop.f32.mrf.mxu0
    %4121 = vdwg.mxu0
    %4122 = vmatpush.bf16.msra.mxu0 %v2742
    %4123 = vmatpush.bf16.msra.mxu0 %v2734
    %4124 = vmatpush.bf16.msra.mxu0 %v2726
    %4125 = vmatpush.bf16.msra.mxu0 %v2718
    %4126 = vmatpush.bf16.msra.mxu0 %v2710
    %4127 = vmatpush.bf16.msra.mxu0 %v2702
    %4128 = vmatpush.bf16.msra.mxu0 %v2694
    %4129 = vmatpush.bf16.msra.mxu0 %v2686
    %4130 = vmatmul.bf16.gmra.mxu0 %v608
    %v4131 = vpop.f32.mrf.mxu0
    %v4132 = vadd.f32 %v1134, %v4131
    %v4133 = vpop.f32.mrf.mxu0
    %4134 = vdwg.mxu0
    %4135 = vmatpush.bf16.msra.mxu0 %v2806
    %4136 = vmatpush.bf16.msra.mxu0 %v2798
    %4137 = vmatpush.bf16.msra.mxu0 %v2790
    %4138 = vmatpush.bf16.msra.mxu0 %v2782
    %4139 = vmatpush.bf16.msra.mxu0 %v2774
    %4140 = vmatpush.bf16.msra.mxu0 %v2766
    %4141 = vmatpush.bf16.msra.mxu0 %v2758
    %4142 = vmatpush.bf16.msra.mxu0 %v2750
    %4143 = vmatmul.bf16.gmra.mxu0 %v609
    %v4144 = vpop.f32.mrf.mxu0
    %v4145 = vadd.f32 %v4132, %v4144
    %v4146 = vpop.f32.mrf.mxu0
    %4147 = vdwg.mxu0
    %4148 = vmatpush.bf16.msra.mxu0 %v2870
    %4149 = vmatpush.bf16.msra.mxu0 %v2862
    %4150 = vmatpush.bf16.msra.mxu0 %v2854
    %4151 = vmatpush.bf16.msra.mxu0 %v2846
    %4152 = vmatpush.bf16.msra.mxu0 %v2838
    %4153 = vmatpush.bf16.msra.mxu0 %v2830
    %4154 = vmatpush.bf16.msra.mxu0 %v2822
    %4155 = vmatpush.bf16.msra.mxu0 %v2814
    %4156 = vmatmul.bf16.gmra.mxu0 %v610
    %v4157 = vpop.f32.mrf.mxu0
    %v4158 = vadd.f32 %v4145, %v4157
    %v4159 = vpop.f32.mrf.mxu0
    %4160 = vdwg.mxu0
    %4161 = vmatpush.bf16.msra.mxu0 %v2934
    %4162 = vmatpush.bf16.msra.mxu0 %v2926
    %4163 = vmatpush.bf16.msra.mxu0 %v2918
    %4164 = vmatpush.bf16.msra.mxu0 %v2910
    %4165 = vmatpush.bf16.msra.mxu0 %v2902
    %4166 = vmatpush.bf16.msra.mxu0 %v2894
    %4167 = vmatpush.bf16.msra.mxu0 %v2886
    %4168 = vmatpush.bf16.msra.mxu0 %v2878
    %4169 = vmatmul.bf16.gmra.mxu0 %v611
    %v4170 = vpop.f32.mrf.mxu0
    %v4171 = vadd.f32 %v4158, %v4170
    %v4172 = vpop.f32.mrf.mxu0
    %4173 = vdwg.mxu0
    %4174 = vmatpush.bf16.msra.mxu0 %v2998
    %4175 = vmatpush.bf16.msra.mxu0 %v2990
    %4176 = vmatpush.bf16.msra.mxu0 %v2982
    %4177 = vmatpush.bf16.msra.mxu0 %v2974
    %4178 = vmatpush.bf16.msra.mxu0 %v2966
    %4179 = vmatpush.bf16.msra.mxu0 %v2958
    %4180 = vmatpush.bf16.msra.mxu0 %v2950
    %4181 = vmatpush.bf16.msra.mxu0 %v2942
    %4182 = vmatmul.bf16.gmra.mxu0 %v612
    %v4183 = vpop.f32.mrf.mxu0
    %v4184 = vadd.f32 %v4171, %v4183
    %v4185 = vpop.f32.mrf.mxu0
    %4186 = vdwg.mxu0
    %4187 = vmatpush.bf16.msra.mxu0 %v3062
    %4188 = vmatpush.bf16.msra.mxu0 %v3054
    %4189 = vmatpush.bf16.msra.mxu0 %v3046
    %4190 = vmatpush.bf16.msra.mxu0 %v3038
    %4191 = vmatpush.bf16.msra.mxu0 %v3030
    %4192 = vmatpush.bf16.msra.mxu0 %v3022
    %4193 = vmatpush.bf16.msra.mxu0 %v3014
    %4194 = vmatpush.bf16.msra.mxu0 %v3006
    %4195 = vmatmul.bf16.gmra.mxu0 %v613
    %v4196 = vpop.f32.mrf.mxu0
    %v4197 = vadd.f32 %v4184, %v4196
    %v4198 = vpop.f32.mrf.mxu0
    %4199 = vdwg.mxu0
    %4200 = vmatpush.bf16.msra.mxu0 %v3126
    %4201 = vmatpush.bf16.msra.mxu0 %v3118
    %4202 = vmatpush.bf16.msra.mxu0 %v3110
    %4203 = vmatpush.bf16.msra.mxu0 %v3102
    %4204 = vmatpush.bf16.msra.mxu0 %v3094
    %4205 = vmatpush.bf16.msra.mxu0 %v3086
    %4206 = vmatpush.bf16.msra.mxu0 %v3078
    %4207 = vmatpush.bf16.msra.mxu0 %v3070
    %4208 = vmatmul.bf16.gmra.mxu0 %v614
    %v4209 = vpop.f32.mrf.mxu0
    %v4210 = vadd.f32 %v4197, %v4209
    %v4211 = vpop.f32.mrf.mxu0
    %4212 = vdwg.mxu0
    %4213 = vmatpush.bf16.msra.mxu0 %v3190
    %4214 = vmatpush.bf16.msra.mxu0 %v3182
    %4215 = vmatpush.bf16.msra.mxu0 %v3174
    %4216 = vmatpush.bf16.msra.mxu0 %v3166
    %4217 = vmatpush.bf16.msra.mxu0 %v3158
    %4218 = vmatpush.bf16.msra.mxu0 %v3150
    %4219 = vmatpush.bf16.msra.mxu0 %v3142
    %4220 = vmatpush.bf16.msra.mxu0 %v3134
    %4221 = vmatmul.bf16.gmra.mxu0 %v615
    %v4222 = vpop.f32.mrf.mxu0
    %v4223 = vadd.f32 %v4210, %v4222
    %v4224 = vpop.f32.mrf.mxu0
    %4225 = vdwg.mxu0
    %4226 = vmatpush.bf16.msra.mxu0 %v2743
    %4227 = vmatpush.bf16.msra.mxu0 %v2735
    %4228 = vmatpush.bf16.msra.mxu0 %v2727
    %4229 = vmatpush.bf16.msra.mxu0 %v2719
    %4230 = vmatpush.bf16.msra.mxu0 %v2711
    %4231 = vmatpush.bf16.msra.mxu0 %v2703
    %4232 = vmatpush.bf16.msra.mxu0 %v2695
    %4233 = vmatpush.bf16.msra.mxu0 %v2687
    %4234 = vmatmul.bf16.gmra.mxu0 %v608
    %v4235 = vpop.f32.mrf.mxu0
    %v4236 = vadd.f32 %v1135, %v4235
    %v4237 = vpop.f32.mrf.mxu0
    %4238 = vdwg.mxu0
    %4239 = vmatpush.bf16.msra.mxu0 %v2807
    %4240 = vmatpush.bf16.msra.mxu0 %v2799
    %4241 = vmatpush.bf16.msra.mxu0 %v2791
    %4242 = vmatpush.bf16.msra.mxu0 %v2783
    %4243 = vmatpush.bf16.msra.mxu0 %v2775
    %4244 = vmatpush.bf16.msra.mxu0 %v2767
    %4245 = vmatpush.bf16.msra.mxu0 %v2759
    %4246 = vmatpush.bf16.msra.mxu0 %v2751
    %4247 = vmatmul.bf16.gmra.mxu0 %v609
    %v4248 = vpop.f32.mrf.mxu0
    %v4249 = vadd.f32 %v4236, %v4248
    %v4250 = vpop.f32.mrf.mxu0
    %4251 = vdwg.mxu0
    %4252 = vmatpush.bf16.msra.mxu0 %v2871
    %4253 = vmatpush.bf16.msra.mxu0 %v2863
    %4254 = vmatpush.bf16.msra.mxu0 %v2855
    %4255 = vmatpush.bf16.msra.mxu0 %v2847
    %4256 = vmatpush.bf16.msra.mxu0 %v2839
    %4257 = vmatpush.bf16.msra.mxu0 %v2831
    %4258 = vmatpush.bf16.msra.mxu0 %v2823
    %4259 = vmatpush.bf16.msra.mxu0 %v2815
    %4260 = vmatmul.bf16.gmra.mxu0 %v610
    %v4261 = vpop.f32.mrf.mxu0
    %v4262 = vadd.f32 %v4249, %v4261
    %v4263 = vpop.f32.mrf.mxu0
    %4264 = vdwg.mxu0
    %4265 = vmatpush.bf16.msra.mxu0 %v2935
    %4266 = vmatpush.bf16.msra.mxu0 %v2927
    %4267 = vmatpush.bf16.msra.mxu0 %v2919
    %4268 = vmatpush.bf16.msra.mxu0 %v2911
    %4269 = vmatpush.bf16.msra.mxu0 %v2903
    %4270 = vmatpush.bf16.msra.mxu0 %v2895
    %4271 = vmatpush.bf16.msra.mxu0 %v2887
    %4272 = vmatpush.bf16.msra.mxu0 %v2879
    %4273 = vmatmul.bf16.gmra.mxu0 %v611
    %v4274 = vpop.f32.mrf.mxu0
    %v4275 = vadd.f32 %v4262, %v4274
    %v4276 = vpop.f32.mrf.mxu0
    %4277 = vdwg.mxu0
    %4278 = vmatpush.bf16.msra.mxu0 %v2999
    %4279 = vmatpush.bf16.msra.mxu0 %v2991
    %4280 = vmatpush.bf16.msra.mxu0 %v2983
    %4281 = vmatpush.bf16.msra.mxu0 %v2975
    %4282 = vmatpush.bf16.msra.mxu0 %v2967
    %4283 = vmatpush.bf16.msra.mxu0 %v2959
    %4284 = vmatpush.bf16.msra.mxu0 %v2951
    %4285 = vmatpush.bf16.msra.mxu0 %v2943
    %4286 = vmatmul.bf16.gmra.mxu0 %v612
    %v4287 = vpop.f32.mrf.mxu0
    %v4288 = vadd.f32 %v4275, %v4287
    %v4289 = vpop.f32.mrf.mxu0
    %4290 = vdwg.mxu0
    %4291 = vmatpush.bf16.msra.mxu0 %v3063
    %4292 = vmatpush.bf16.msra.mxu0 %v3055
    %4293 = vmatpush.bf16.msra.mxu0 %v3047
    %4294 = vmatpush.bf16.msra.mxu0 %v3039
    %4295 = vmatpush.bf16.msra.mxu0 %v3031
    %4296 = vmatpush.bf16.msra.mxu0 %v3023
    %4297 = vmatpush.bf16.msra.mxu0 %v3015
    %4298 = vmatpush.bf16.msra.mxu0 %v3007
    %4299 = vmatmul.bf16.gmra.mxu0 %v613
    %v4300 = vpop.f32.mrf.mxu0
    %v4301 = vadd.f32 %v4288, %v4300
    %v4302 = vpop.f32.mrf.mxu0
    %4303 = vdwg.mxu0
    %4304 = vmatpush.bf16.msra.mxu0 %v3127
    %4305 = vmatpush.bf16.msra.mxu0 %v3119
    %4306 = vmatpush.bf16.msra.mxu0 %v3111
    %4307 = vmatpush.bf16.msra.mxu0 %v3103
    %4308 = vmatpush.bf16.msra.mxu0 %v3095
    %4309 = vmatpush.bf16.msra.mxu0 %v3087
    %4310 = vmatpush.bf16.msra.mxu0 %v3079
    %4311 = vmatpush.bf16.msra.mxu0 %v3071
    %4312 = vmatmul.bf16.gmra.mxu0 %v614
    %v4313 = vpop.f32.mrf.mxu0
    %v4314 = vadd.f32 %v4301, %v4313
    %v4315 = vpop.f32.mrf.mxu0
    %4316 = vdwg.mxu0
    %4317 = vmatpush.bf16.msra.mxu0 %v3191
    %4318 = vmatpush.bf16.msra.mxu0 %v3183
    %4319 = vmatpush.bf16.msra.mxu0 %v3175
    %4320 = vmatpush.bf16.msra.mxu0 %v3167
    %4321 = vmatpush.bf16.msra.mxu0 %v3159
    %4322 = vmatpush.bf16.msra.mxu0 %v3151
    %4323 = vmatpush.bf16.msra.mxu0 %v3143
    %4324 = vmatpush.bf16.msra.mxu0 %v3135
    %4325 = vmatmul.bf16.gmra.mxu0 %v615
    %v4326 = vpop.f32.mrf.mxu0
    %v4327 = vadd.f32 %v4314, %v4326
    %v4328 = vpop.f32.mrf.mxu0
    %4329 = vdwg.mxu0
    %4330 = vmatpush.bf16.msra.mxu0 %v2744
    %4331 = vmatpush.bf16.msra.mxu0 %v2736
    %4332 = vmatpush.bf16.msra.mxu0 %v2728
    %4333 = vmatpush.bf16.msra.mxu0 %v2720
    %4334 = vmatpush.bf16.msra.mxu0 %v2712
    %4335 = vmatpush.bf16.msra.mxu0 %v2704
    %4336 = vmatpush.bf16.msra.mxu0 %v2696
    %4337 = vmatpush.bf16.msra.mxu0 %v2688
    %4338 = vmatmul.bf16.gmra.mxu0 %v608
    %v4339 = vpop.f32.mrf.mxu0
    %v4340 = vadd.f32 %v1136, %v4339
    %v4341 = vpop.f32.mrf.mxu0
    %4342 = vdwg.mxu0
    %4343 = vmatpush.bf16.msra.mxu0 %v2808
    %4344 = vmatpush.bf16.msra.mxu0 %v2800
    %4345 = vmatpush.bf16.msra.mxu0 %v2792
    %4346 = vmatpush.bf16.msra.mxu0 %v2784
    %4347 = vmatpush.bf16.msra.mxu0 %v2776
    %4348 = vmatpush.bf16.msra.mxu0 %v2768
    %4349 = vmatpush.bf16.msra.mxu0 %v2760
    %4350 = vmatpush.bf16.msra.mxu0 %v2752
    %4351 = vmatmul.bf16.gmra.mxu0 %v609
    %v4352 = vpop.f32.mrf.mxu0
    %v4353 = vadd.f32 %v4340, %v4352
    %v4354 = vpop.f32.mrf.mxu0
    %4355 = vdwg.mxu0
    %4356 = vmatpush.bf16.msra.mxu0 %v2872
    %4357 = vmatpush.bf16.msra.mxu0 %v2864
    %4358 = vmatpush.bf16.msra.mxu0 %v2856
    %4359 = vmatpush.bf16.msra.mxu0 %v2848
    %4360 = vmatpush.bf16.msra.mxu0 %v2840
    %4361 = vmatpush.bf16.msra.mxu0 %v2832
    %4362 = vmatpush.bf16.msra.mxu0 %v2824
    %4363 = vmatpush.bf16.msra.mxu0 %v2816
    %4364 = vmatmul.bf16.gmra.mxu0 %v610
    %v4365 = vpop.f32.mrf.mxu0
    %v4366 = vadd.f32 %v4353, %v4365
    %v4367 = vpop.f32.mrf.mxu0
    %4368 = vdwg.mxu0
    %4369 = vmatpush.bf16.msra.mxu0 %v2936
    %4370 = vmatpush.bf16.msra.mxu0 %v2928
    %4371 = vmatpush.bf16.msra.mxu0 %v2920
    %4372 = vmatpush.bf16.msra.mxu0 %v2912
    %4373 = vmatpush.bf16.msra.mxu0 %v2904
    %4374 = vmatpush.bf16.msra.mxu0 %v2896
    %4375 = vmatpush.bf16.msra.mxu0 %v2888
    %4376 = vmatpush.bf16.msra.mxu0 %v2880
    %4377 = vmatmul.bf16.gmra.mxu0 %v611
    %v4378 = vpop.f32.mrf.mxu0
    %v4379 = vadd.f32 %v4366, %v4378
    %v4380 = vpop.f32.mrf.mxu0
    %4381 = vdwg.mxu0
    %4382 = vmatpush.bf16.msra.mxu0 %v3000
    %4383 = vmatpush.bf16.msra.mxu0 %v2992
    %4384 = vmatpush.bf16.msra.mxu0 %v2984
    %4385 = vmatpush.bf16.msra.mxu0 %v2976
    %4386 = vmatpush.bf16.msra.mxu0 %v2968
    %4387 = vmatpush.bf16.msra.mxu0 %v2960
    %4388 = vmatpush.bf16.msra.mxu0 %v2952
    %4389 = vmatpush.bf16.msra.mxu0 %v2944
    %4390 = vmatmul.bf16.gmra.mxu0 %v612
    %v4391 = vpop.f32.mrf.mxu0
    %v4392 = vadd.f32 %v4379, %v4391
    %v4393 = vpop.f32.mrf.mxu0
    %4394 = vdwg.mxu0
    %4395 = vmatpush.bf16.msra.mxu0 %v3064
    %4396 = vmatpush.bf16.msra.mxu0 %v3056
    %4397 = vmatpush.bf16.msra.mxu0 %v3048
    %4398 = vmatpush.bf16.msra.mxu0 %v3040
    %4399 = vmatpush.bf16.msra.mxu0 %v3032
    %4400 = vmatpush.bf16.msra.mxu0 %v3024
    %4401 = vmatpush.bf16.msra.mxu0 %v3016
    %4402 = vmatpush.bf16.msra.mxu0 %v3008
    %4403 = vmatmul.bf16.gmra.mxu0 %v613
    %v4404 = vpop.f32.mrf.mxu0
    %v4405 = vadd.f32 %v4392, %v4404
    %v4406 = vpop.f32.mrf.mxu0
    %4407 = vdwg.mxu0
    %4408 = vmatpush.bf16.msra.mxu0 %v3128
    %4409 = vmatpush.bf16.msra.mxu0 %v3120
    %4410 = vmatpush.bf16.msra.mxu0 %v3112
    %4411 = vmatpush.bf16.msra.mxu0 %v3104
    %4412 = vmatpush.bf16.msra.mxu0 %v3096
    %4413 = vmatpush.bf16.msra.mxu0 %v3088
    %4414 = vmatpush.bf16.msra.mxu0 %v3080
    %4415 = vmatpush.bf16.msra.mxu0 %v3072
    %4416 = vmatmul.bf16.gmra.mxu0 %v614
    %v4417 = vpop.f32.mrf.mxu0
    %v4418 = vadd.f32 %v4405, %v4417
    %v4419 = vpop.f32.mrf.mxu0
    %4420 = vdwg.mxu0
    %4421 = vmatpush.bf16.msra.mxu0 %v3192
    %4422 = vmatpush.bf16.msra.mxu0 %v3184
    %4423 = vmatpush.bf16.msra.mxu0 %v3176
    %4424 = vmatpush.bf16.msra.mxu0 %v3168
    %4425 = vmatpush.bf16.msra.mxu0 %v3160
    %4426 = vmatpush.bf16.msra.mxu0 %v3152
    %4427 = vmatpush.bf16.msra.mxu0 %v3144
    %4428 = vmatpush.bf16.msra.mxu0 %v3136
    %4429 = vmatmul.bf16.gmra.mxu0 %v615
    %v4430 = vpop.f32.mrf.mxu0
    %v4431 = vadd.f32 %v4418, %v4430
    %v4432 = vpop.f32.mrf.mxu0
    %4433 = vdwg.mxu0
    %4434 = vmatpush.bf16.msra.mxu0 %v2745
    %4435 = vmatpush.bf16.msra.mxu0 %v2737
    %4436 = vmatpush.bf16.msra.mxu0 %v2729
    %4437 = vmatpush.bf16.msra.mxu0 %v2721
    %4438 = vmatpush.bf16.msra.mxu0 %v2713
    %4439 = vmatpush.bf16.msra.mxu0 %v2705
    %4440 = vmatpush.bf16.msra.mxu0 %v2697
    %4441 = vmatpush.bf16.msra.mxu0 %v2689
    %4442 = vmatmul.bf16.gmra.mxu0 %v608
    %v4443 = vpop.f32.mrf.mxu0
    %v4444 = vadd.f32 %v1137, %v4443
    %v4445 = vpop.f32.mrf.mxu0
    %4446 = vdwg.mxu0
    %4447 = vmatpush.bf16.msra.mxu0 %v2809
    %4448 = vmatpush.bf16.msra.mxu0 %v2801
    %4449 = vmatpush.bf16.msra.mxu0 %v2793
    %4450 = vmatpush.bf16.msra.mxu0 %v2785
    %4451 = vmatpush.bf16.msra.mxu0 %v2777
    %4452 = vmatpush.bf16.msra.mxu0 %v2769
    %4453 = vmatpush.bf16.msra.mxu0 %v2761
    %4454 = vmatpush.bf16.msra.mxu0 %v2753
    %4455 = vmatmul.bf16.gmra.mxu0 %v609
    %v4456 = vpop.f32.mrf.mxu0
    %v4457 = vadd.f32 %v4444, %v4456
    %v4458 = vpop.f32.mrf.mxu0
    %4459 = vdwg.mxu0
    %4460 = vmatpush.bf16.msra.mxu0 %v2873
    %4461 = vmatpush.bf16.msra.mxu0 %v2865
    %4462 = vmatpush.bf16.msra.mxu0 %v2857
    %4463 = vmatpush.bf16.msra.mxu0 %v2849
    %4464 = vmatpush.bf16.msra.mxu0 %v2841
    %4465 = vmatpush.bf16.msra.mxu0 %v2833
    %4466 = vmatpush.bf16.msra.mxu0 %v2825
    %4467 = vmatpush.bf16.msra.mxu0 %v2817
    %4468 = vmatmul.bf16.gmra.mxu0 %v610
    %v4469 = vpop.f32.mrf.mxu0
    %v4470 = vadd.f32 %v4457, %v4469
    %v4471 = vpop.f32.mrf.mxu0
    %4472 = vdwg.mxu0
    %4473 = vmatpush.bf16.msra.mxu0 %v2937
    %4474 = vmatpush.bf16.msra.mxu0 %v2929
    %4475 = vmatpush.bf16.msra.mxu0 %v2921
    %4476 = vmatpush.bf16.msra.mxu0 %v2913
    %4477 = vmatpush.bf16.msra.mxu0 %v2905
    %4478 = vmatpush.bf16.msra.mxu0 %v2897
    %4479 = vmatpush.bf16.msra.mxu0 %v2889
    %4480 = vmatpush.bf16.msra.mxu0 %v2881
    %4481 = vmatmul.bf16.gmra.mxu0 %v611
    %v4482 = vpop.f32.mrf.mxu0
    %v4483 = vadd.f32 %v4470, %v4482
    %v4484 = vpop.f32.mrf.mxu0
    %4485 = vdwg.mxu0
    %4486 = vmatpush.bf16.msra.mxu0 %v3001
    %4487 = vmatpush.bf16.msra.mxu0 %v2993
    %4488 = vmatpush.bf16.msra.mxu0 %v2985
    %4489 = vmatpush.bf16.msra.mxu0 %v2977
    %4490 = vmatpush.bf16.msra.mxu0 %v2969
    %4491 = vmatpush.bf16.msra.mxu0 %v2961
    %4492 = vmatpush.bf16.msra.mxu0 %v2953
    %4493 = vmatpush.bf16.msra.mxu0 %v2945
    %4494 = vmatmul.bf16.gmra.mxu0 %v612
    %v4495 = vpop.f32.mrf.mxu0
    %v4496 = vadd.f32 %v4483, %v4495
    %v4497 = vpop.f32.mrf.mxu0
    %4498 = vdwg.mxu0
    %4499 = vmatpush.bf16.msra.mxu0 %v3065
    %4500 = vmatpush.bf16.msra.mxu0 %v3057
    %4501 = vmatpush.bf16.msra.mxu0 %v3049
    %4502 = vmatpush.bf16.msra.mxu0 %v3041
    %4503 = vmatpush.bf16.msra.mxu0 %v3033
    %4504 = vmatpush.bf16.msra.mxu0 %v3025
    %4505 = vmatpush.bf16.msra.mxu0 %v3017
    %4506 = vmatpush.bf16.msra.mxu0 %v3009
    %4507 = vmatmul.bf16.gmra.mxu0 %v613
    %v4508 = vpop.f32.mrf.mxu0
    %v4509 = vadd.f32 %v4496, %v4508
    %v4510 = vpop.f32.mrf.mxu0
    %4511 = vdwg.mxu0
    %4512 = vmatpush.bf16.msra.mxu0 %v3129
    %4513 = vmatpush.bf16.msra.mxu0 %v3121
    %4514 = vmatpush.bf16.msra.mxu0 %v3113
    %4515 = vmatpush.bf16.msra.mxu0 %v3105
    %4516 = vmatpush.bf16.msra.mxu0 %v3097
    %4517 = vmatpush.bf16.msra.mxu0 %v3089
    %4518 = vmatpush.bf16.msra.mxu0 %v3081
    %4519 = vmatpush.bf16.msra.mxu0 %v3073
    %4520 = vmatmul.bf16.gmra.mxu0 %v614
    %v4521 = vpop.f32.mrf.mxu0
    %v4522 = vadd.f32 %v4509, %v4521
    %v4523 = vpop.f32.mrf.mxu0
    %4524 = vdwg.mxu0
    %4525 = vmatpush.bf16.msra.mxu0 %v3193
    %4526 = vmatpush.bf16.msra.mxu0 %v3185
    %4527 = vmatpush.bf16.msra.mxu0 %v3177
    %4528 = vmatpush.bf16.msra.mxu0 %v3169
    %4529 = vmatpush.bf16.msra.mxu0 %v3161
    %4530 = vmatpush.bf16.msra.mxu0 %v3153
    %4531 = vmatpush.bf16.msra.mxu0 %v3145
    %4532 = vmatpush.bf16.msra.mxu0 %v3137
    %4533 = vmatmul.bf16.gmra.mxu0 %v615
    %v4534 = vpop.f32.mrf.mxu0
    %v4535 = vadd.f32 %v4522, %v4534
    %v4536 = vpop.f32.mrf.mxu0
    %4537 = vdwg.mxu0
    %v4538 = vmax.f32 %v3807, 0.0
    %v4539 = vmax.f32 %v3911, 0.0
    %v4540 = vmax.f32 %v4015, 0.0
    %v4541 = vmax.f32 %v4119, 0.0
    %v4542 = vmax.f32 %v4223, 0.0
    %v4543 = vmax.f32 %v4327, 0.0
    %v4544 = vmax.f32 %v4431, 0.0
    %v4545 = vmax.f32 %v4535, 0.0
    %v4546 = vpack.c.bf16 %v4539, %v4538
    %v4547 = vpack.c.bf16 %v4541, %v4540
    %v4548 = vpack.c.bf16 %v4543, %v4542
    %v4549 = vpack.c.bf16 %v4545, %v4544
    %4550 = vst [vmem:[#allocation11] sm:$0xff] %v4546
    %4551 = vst [vmem:[#allocation11 + $0x8] sm:$0xff] %v4547
    %4552 = vst [vmem:[#allocation11 + $0x10] sm:$0xff] %v4548
    %4553 = vst [vmem:[#allocation11 + $0x18] sm:$0xff] %v4549
    // Predicated region
    $region42: #{tpu_custom_call.1} parent=1 // pred_check
      _
    $region43: #{tpu_custom_call.1} parent=1 // pred_check_branch
      %4555 = sbr.rel (0) target = $region45
    $region44: #{tpu_custom_call.1} parent=1 // pred_region
      %4557 = vsyncadd [#allocation4], 0
      %s4559 = sshll.u32 [#allocation11], 4
      %s4560 = int_to_ptr.vmem [resolvable:$true] %s4559
      %s4561 = sshll.u32 %s5, 4
      %s4562 = int_to_ptr.hbm [resolvable:$true] %s4561
      %4564 = dma.vmem_to_hbm [thread:$0]  %s4560, 512, %s4562, [#allocation4]
    $region45: #{tpu_custom_call.1} parent=1 // pred_fallthru
      _
    // Predicated region
    $region46: #{tpu_custom_call.1} parent=1 // pred_check
      _
    $region47: #{tpu_custom_call.1} parent=1 // pred_check_branch
      %4566 = sbr.rel (0) target = $region49
    $region48: #{tpu_custom_call.1} parent=1 // pred_region
      %4568 = dma.done [#allocation4], 512
    $region49: #{tpu_custom_call.1} parent=1 // pred_fallthru
      _
    %4569 = vsyncpa [#allocation3], 1
    %4570 = vsyncpa [#allocation6], 1
    %4571 = vsyncpa [#allocation9], 1
    %4572 = vsyncpa [#allocation4], 1

</llo_original>
